<compile_context>
chip_gen: v5e
topology: v5e:2x2
jax: 0.10.0
libtpu: 0.0.40
codegen_flags: <defaults>
</compile_context>

<pallas_src>
import functools

import jax
import jax.numpy as jnp
from jax.experimental import pallas as pl
from jax.experimental.pallas import tpu as pltpu


def _all_partial_kernel(x_ref, o_ref, *, rows_total, block_rows, need_mask):
    """One lane-dense (block_rows, C) tile -> one (1, 8, 128) partial.

    Writes 1 iff every valid element of the tile is nonzero, else 0.  Rows past
    `rows_total` (the over-hanging tail of the last block) get the AND
    identity; the mask runs only on the tail block (pl.when-gated), so full
    blocks pay no extra VPU work.
    """
    x = x_ref[...]                                        # (block_rows, C) int32
    nz = (x != 0).astype(jnp.int32)

    if not need_mask:                                     # trace-time: even split
        o_ref[...] = jnp.full(o_ref.shape, jnp.min(nz), jnp.int32)
    else:
        i = pl.program_id(0)
        is_tail = (i + 1) * block_rows > rows_total

        @pl.when(jnp.logical_not(is_tail))
        def _():
            o_ref[...] = jnp.full(o_ref.shape, jnp.min(nz), jnp.int32)

        @pl.when(is_tail)
        def _():
            row_ids = (jax.lax.broadcasted_iota(jnp.int32, x.shape, 0)
                       + i * block_rows)
            masked = jnp.where(row_ids < rows_total, nz, jnp.int32(1))
            o_ref[...] = jnp.full(o_ref.shape, jnp.min(masked), jnp.int32)


def _all_2d(x2d):
    """AND-reduce a lane-dense (rows, C) int32 view with a streaming kernel."""
    rows, cols = x2d.shape
    row_bytes = cols * 4

    # ~8 MiB per input buffer (double-buffered -> 16 MiB), rows multiple of 8.
    target_bytes = 8 * 1024 * 1024
    block_rows = max(8, (target_bytes // row_bytes) // 8 * 8)
    if block_rows >= rows:
        # Whole tensor fits in one block.  If it's more than a few MiB, split
        # into two blocks so the parallel grid axis can use both v7x TCs.
        if rows * row_bytes > 4 * 1024 * 1024 and rows >= 16:
            half = ((rows + 1) // 2 + 7) // 8 * 8
            block_rows = half if half < rows else rows
        else:
            block_rows = rows                             # full-extent block
    nblocks = pl.cdiv(rows, block_rows)
    need_mask = (rows % block_rows) != 0

    kernel = functools.partial(
        _all_partial_kernel,
        rows_total=rows, block_rows=block_rows, need_mask=need_mask)

    partials = pl.pallas_call(
        kernel,
        out_shape=jax.ShapeDtypeStruct((nblocks, 8, 128), jnp.int32),
        grid_spec=pltpu.PrefetchScalarGridSpec(
            num_scalar_prefetch=0,
            grid=(nblocks,),
            in_specs=[pl.BlockSpec((block_rows, cols), lambda i: (i, 0))],
            out_specs=pl.BlockSpec((1, 8, 128), lambda i: (i, 0, 0)),
        ),
        compiler_params=pltpu.CompilerParams(
            dimension_semantics=("parallel",),            # no carried state
            vmem_limit_bytes=32 * 1024 * 1024),
        cost_estimate=pl.CostEstimate(
            flops=rows * cols,
            transcendentals=0,
            bytes_accessed=rows * cols * 4 + nblocks * 8 * 128 * 4),
    )(x2d)

    # Tiny finish outside the kernel: every per-block partial must be 1.
    return jnp.min(partials) != 0


def reduce_all(a):
    """aten.all over a 3D int32 tensor -> scalar bool (True iff all nonzero)."""
    assert a.ndim == 3
    assert a.dtype == jnp.int32, a.dtype   # module annotates int32; no cast pass
    total = a.size
    if total == 0:
        return jnp.asarray(True)           # aten.all of an empty tensor is True

    x_flat = a.reshape(-1)                 # layout-preserving collapse

    # Pick a lane-dense column width C (multiple of 128) dividing the element
    # count exactly -> zero-copy 2D view of contiguous memory.
    cols = 0
    for c in (1024, 512, 256, 128):
        if total % c == 0:
            cols = c
            break
    if cols:
        return _all_2d(x_flat.reshape(total // cols, cols))

    # total not a multiple of 128: kernel on the 512-aligned prefix, tiny jnp
    # reduce on the (<512-element) remainder.
    cols = 512
    main_rows = total // cols
    if main_rows == 0:                      # tiny tensor: plain jnp is cheapest
        return jnp.all(x_flat != 0)
    main_n = main_rows * cols
    main_ok = _all_2d(x_flat[:main_n].reshape(main_rows, cols))
    rem_ok = jnp.all(x_flat[main_n:] != 0)
    return jnp.logical_and(main_ok, rem_ok)


if __name__ == "__main__":
    key = jax.random.PRNGKey(0)
    k0, k1, k2, k3 = jax.random.split(key, 4)

    # Canonical torch-mlir-style small shape (tiny -> wrapper jnp path).
    a_true = jax.random.randint(k0, (3, 4, 5), minval=1, maxval=100,
                                dtype=jnp.int32)
    a_false = a_true.at[1, 2, 3].set(0)

    # 128-divisible total -> single zero-copy lane-dense pass, 2 parallel blocks.
    b = jax.random.randint(k1, (8, 300, 512), minval=1, maxval=7, dtype=jnp.int32)
    b_false = b.at[7, 299, 511].set(0)

    # total divisible by 256 but not 512/1024 -> cols=256, 2 blocks with a
    # pl.when-masked overhanging tail block (zero placed in the tail block).
    c = jax.random.randint(k2, (8, 300, 520), minval=1, maxval=7, dtype=jnp.int32)
    c_false_tail = c.at[7, 299, 519].set(0)

    # total not a multiple of 128 -> kernel on 512-aligned prefix + jnp remainder.
    d = jax.random.randint(k3, (7, 9, 11), minval=1, maxval=9, dtype=jnp.int32)
    d_false_main = d.at[0, 0, 0].set(0)      # zero in the kernel prefix
    d_false_rem = d.at[6, 8, 10].set(0)      # zero in the wrapper remainder

    cases = [a_true, a_false, b, b_false, c, c_false_tail,
             d, d_false_main, d_false_rem]
    results = [reduce_all(x) for x in cases]
    jax.block_until_ready(results)

    for x, got in zip(cases, results):
        exp = bool(jnp.all(x != 0))
        assert bool(got) == exp, (x.shape, bool(got), exp)
    print("KERNEL_OK")
</pallas_src>

<mosaic_0001>
module attributes {stable_mosaic.version = 11 : i64} {
  func.func @_all_partial_kernel(%arg0: i32, %arg1: memref<600x1024xi32, #tpu.memory_space<vmem>>, %arg2: memref<1x8x128xi32, #tpu.memory_space<vmem>>) attributes {dimension_semantics = [#tpu.dimension_semantics<parallel>], iteration_bounds = array<i64: 2>, scalar_prefetch = 0 : i64, scratch_operands = 0 : i64, tpu.core_type = #tpu.core_type<tc>, window_params = [{transform_indices = @transform_0, window_bounds = array<i64: 600, 1024>}, {transform_indices = @transform_1, window_bounds = array<i64: 1, 8, 128>}]} {
    %c0 = arith.constant 0 : index
    %c0_0 = arith.constant 0 : index
    %0 = vector.load %arg1[%c0, %c0_0] : memref<600x1024xi32, #tpu.memory_space<vmem>>, vector<600x1024xi32>
    %c0_i32 = arith.constant 0 : i32
    %1 = vector.broadcast %c0_i32 : i32 to vector<600x1024xi32>
    %2 = arith.cmpi ne, %0, %1 : vector<600x1024xi32>
    %3 = arith.extui %2 : vector<600x1024xi1> to vector<600x1024xi32>
    %4 = vector.shape_cast %3 : vector<600x1024xi32> to vector<1x600x1024xi32>
    %cst = arith.constant dense<2147483647> : vector<1xi32>
    %5 = vector.multi_reduction <minsi>, %4, %cst [1, 2] : vector<1x600x1024xi32> to vector<1xi32>
    %6 = vector.shape_cast %5 : vector<1xi32> to vector<1x1x1xi32>
    %7 = vector.extract %6[0, 0, 0] : i32 from vector<1x1x1xi32>
    %8 = vector.broadcast %7 : i32 to vector<1x8x128xi32>
    %c0_1 = arith.constant 0 : index
    %c0_2 = arith.constant 0 : index
    %c0_3 = arith.constant 0 : index
    %9 = vector.load %arg2[%c0_1, %c0_2, %c0_3] : memref<1x8x128xi32, #tpu.memory_space<vmem>>, vector<1x8x128xi32>
    tpu.vector_store %arg2[%c0_1, %c0_2, %c0_3], %8 {strides = array<i32>} : memref<1x8x128xi32, #tpu.memory_space<vmem>>, vector<1x8x128xi32>,
    return
  }
  func.func @transform_0(%arg0: i32) -> (i32, i32) {
    %c0_i32 = arith.constant 0 : i32
    %c0_i32_0 = arith.constant 0 : i32
    return %arg0, %c0_i32 : i32, i32
  }
  func.func @transform_1(%arg0: i32) -> (i32, i32, i32) {
    %c0_i32 = arith.constant 0 : i32
    %c0_i32_0 = arith.constant 0 : i32
    %c0_i32_1 = arith.constant 0 : i32
    return %arg0, %c0_i32, %c0_i32_0 : i32, i32, i32
  }
}

</mosaic_0001>

<llo_original>
// kernel: tpu_custom_call.1
$region0: #{tpu_custom_call.1}
  #allocation0 [shape = 'u32[]', space=smem, size = 0x4, offset = 0x4, fixed_abs, tag = 'smem constant byte address 0x4 - core index']
  #allocation1 [shape = 'u32[72,128]{1,0:T(1,128)}', space=vmem, size = 0x9000, scoped, tag = 'internal scratch']
  %s0 = inlined_call_operand.hbm [shape: s32[1200,1024], index: 0, kind: input, shape index: {}]
  %s1 = inlined_call_operand.hbm [shape: s32[2,8,128], index: 1, kind: output, shape index: {}]
  %s2 = sld [smem:[#allocation0]]
  $region41: #{tpu_custom_call.1} parent=0
    _
  %s4 = ssub.s32 1, %s2
  %s5 = scalar_select 0, %s4, %s2
  $region1: #{tpu_custom_call.1} parent=0
    #allocation2 [shape = 'u8[4915200]{0}', space=vmem, size = 0x4b0000, scoped, tag = 'input window, operand 0']
    #allocation3 [shape = 's32[2]{0}', space=sflag, size = 0x8, scoped, tag = 'scoped memory for tpu_custom_call.1']
    #allocation4 [shape = 's32[2]{0}', space=sflag, size = 0x8, scoped, tag = 'scoped memory for tpu_custom_call.1']
    #allocation5 [shape = 'u8[8192]{0}', space=vmem, size = 0x2000, scoped, tag = 'output window, operand 0']
    %6 = vsyncpa [#allocation3], 0
    %s7 = scalar_lea.sflag [#allocation3], 1
    %8 = vsyncpa %s7, 0
    %9 = vsyncpa [#allocation4], 0
    %s10 = scalar_lea.sflag [#allocation4], 1
    %11 = vsyncpa %s10, 0
    loop: start=0, step=1, limit=4
    $region2: #{tpu_custom_call.1} parent=1 // loop_pre_header
      _
    $region3: #{tpu_custom_call.1} parent=1 // loop_header
      %s13 = sphi 0, %s17
      %p14 = scmp.ge.s32.totalorder %s13, 4
      %s23 = sphi 0, %s25
      %s26 = sphi 0, %s23
      %s27 = sphi 0, %s26
      %s43 = sphi 0, %s27
      %s49 = sphi 0, %s51
      %s52 = sphi 0, %s49
      %s53 = sphi 0, %s52
      %s69 = sphi 0, %s53
    $region4: #{tpu_custom_call.1} parent=1 // loop_header_branch
      %16 = sbr.rel (%p14) target = $region8
    $region5: #{tpu_custom_call.1} parent=1 // loop_body
      %s18 = ssub.s32 %s13, 1
      %s19 = ssub.s32 %s13, 2
      %s20 = sadd.s32 %s13, 1
      %s21 = ssub.s32 %s13, %s20
      %p22 = scmp.eq.s32.totalorder %s21, 0
      %s24 = sadd.s32 %s23, 1
      %s25 = scalar_select %p22, %s23, %s24
      %p28 = pneg %p22
      %p29 = scmp.eq.s32.totalorder %s13, 1
      %p30 = por %p28, %p29
      %p31 = scmp.ne.s32.totalorder %s23, %s26
      %p32 = scmp.eq.s32.totalorder %s13, 0
      %p33 = por %p31, %p32
      %p34 = scmp.ne.s32.totalorder %s23, %s26
      %p35 = scmp.eq.s32.totalorder %s18, 1
      %p36 = por %p34, %p35
      %p37 = scmp.ne.s32.totalorder %s26, %s27
      %p38 = scmp.eq.s32.totalorder %s18, 0
      %p39 = por %p37, %p38
      %p40 = scmp.ne.s32.totalorder %s26, %s27
      %p41 = scmp.eq.s32.totalorder %s19, 1
      %p42 = por %p40, %p41
      %p44 = scmp.ne.s32.totalorder %s27, %s43
      %p45 = scmp.eq.s32.totalorder %s19, 0
      %p46 = por %p44, %p45
      %s47 = ssub.s32 %s13, %s20
      %p48 = scmp.eq.s32.totalorder %s47, 0
      %s50 = sadd.s32 %s49, 1
      %s51 = scalar_select %p48, %s49, %s50
      %p54 = pneg %p48
      %p55 = scmp.eq.s32.totalorder %s13, 1
      %p56 = por %p54, %p55
      %p57 = scmp.ne.s32.totalorder %s49, %s52
      %p58 = scmp.eq.s32.totalorder %s13, 0
      %p59 = por %p57, %p58
      %p60 = scmp.ne.s32.totalorder %s49, %s52
      %p61 = scmp.eq.s32.totalorder %s18, 1
      %p62 = por %p60, %p61
      %p63 = scmp.ne.s32.totalorder %s52, %s53
      %p64 = scmp.eq.s32.totalorder %s18, 0
      %p65 = por %p63, %p64
      %p66 = scmp.ne.s32.totalorder %s52, %s53
      %p67 = scmp.eq.s32.totalorder %s19, 1
      %p68 = por %p66, %p67
      %p70 = scmp.ne.s32.totalorder %s53, %s69
      %p71 = scmp.eq.s32.totalorder %s19, 0
      %p72 = por %p70, %p71
      %p73 = scmp.le.s32.totalorder 1, %s13
      %p74 = scmp.lt.s32.totalorder %s13, 3
      %p75 = pnand %p73, %p74
      %p76 = pneg %p75
      // Predicated region
      $region9: #{tpu_custom_call.1} parent=5 // pred_check
        _
      $region10: #{tpu_custom_call.1} parent=5 // pred_check_branch
        %78 = sbr.rel (%p75) target = $region12
      $region11: #{tpu_custom_call.1} parent=5 // pred_region
        %s79 = ssub.s32 %s13, 1
      $region12: #{tpu_custom_call.1} parent=5 // pred_fallthru
        _
      %p80 = scmp.lt.s32.totalorder %s13, 2
      // Predicated region
      $region13: #{tpu_custom_call.1} parent=5 // pred_check
        %p81 = pneg %p80
      $region14: #{tpu_custom_call.1} parent=5 // pred_check_branch
        %83 = sbr.rel (%p81) target = $region16
      $region15: #{tpu_custom_call.1} parent=5 // pred_region
        // Predicated region
        $region17: #{tpu_custom_call.1} parent=15 // pred_check
          %p84 = pneg %p33
        $region18: #{tpu_custom_call.1} parent=15 // pred_check_branch
          %86 = sbr.rel (%p84) target = $region20
        $region19: #{tpu_custom_call.1} parent=15 // pred_region
          %s87 = sand.u32 %s23, 1
          %s88 = scalar_lea.sflag [#allocation3], %s87
          %s89 = sand.u32 %s23, 1
          %s90 = smul.addr %s89, 4800
          %s91 = scalar_lea.vmem [#allocation2], %s90
          %s92 = smul.u32 75, %s13
          %94 = vsyncadd %s88, 0
          %s95 = smul.addr %s92, 8
          %s96 = smul.addr %s95, 8
          %s97 = scalar_lea.hbm %s0, %s96
          %s98 = sshll.u32 %s97, 4
          %s99 = int_to_ptr.hbm [resolvable:$true] %s98
          %s100 = sshll.u32 %s91, 4
          %s101 = int_to_ptr.vmem [resolvable:$true] %s100
          %106 = dma.hbm_to_vmem [thread:$0]  %s99, 76800, %s101, %s88, 1024, 1024, 64
        $region20: #{tpu_custom_call.1} parent=15 // pred_fallthru
          _
      $region16: #{tpu_custom_call.1} parent=5 // pred_fallthru
        _
      %p107 = scmp.le.s32.totalorder 1, %s13
      %p108 = scmp.lt.s32.totalorder %s13, 3
      %p109 = pnand %p107, %p108
      %p110 = pneg %p109
      // Predicated region
      $region21: #{tpu_custom_call.1} parent=5 // pred_check
        _
      $region22: #{tpu_custom_call.1} parent=5 // pred_check_branch
        %112 = sbr.rel (%p109) target = $region24
      $region23: #{tpu_custom_call.1} parent=5 // pred_region
        %s113 = ssub.s32 %s13, 1
        %s114 = sand.u32 %s26, 1
        %s115 = scalar_lea.sflag [#allocation3], %s114
        %s116 = sand.u32 %s26, 1
        %s117 = smul.addr %s116, 4800
        %s118 = scalar_lea.vmem [#allocation2], %s117
        // Predicated region
        $region25: #{tpu_custom_call.1} parent=23 // pred_check
          %p119 = pneg %p39
        $region26: #{tpu_custom_call.1} parent=23 // pred_check_branch
          %121 = sbr.rel (%p119) target = $region28
        $region27: #{tpu_custom_call.1} parent=23 // pred_region
          %123 = dma.done %s115, 76800
        $region28: #{tpu_custom_call.1} parent=23 // pred_fallthru
          _
        %s124 = sand.u32 %s26, 1
        %s125 = scalar_lea.sflag [#allocation3], %s124
        %s126 = sand.u32 %s26, 1
        %s127 = smul.addr %s126, 4800
        %s128 = scalar_lea.vmem [#allocation2], %s127
        %p129 = pneg %p39
        %p130 = pneg %p36
        %p131 = pneg %p65
        %p132 = pneg %p62
        %s133 = sand.u32 %s52, 1
        %s134 = scalar_lea.sflag [#allocation4], %s133
        %s135 = sand.u32 %s52, 1
        %s136 = smul.addr %s135, 8
        %s137 = scalar_lea.vmem [#allocation5], %s136
        %s138 = smul.u32 75, %s18
        %v139 = vld [vmem:[%s118] sm:$0xff]
        %v140 = vld [vmem:[%s118 + $0x8] sm:$0xff]
        %v141 = vld [vmem:[%s118 + $0x10] sm:$0xff]
        %v142 = vld [vmem:[%s118 + $0x18] sm:$0xff]
        %v143 = vld [vmem:[%s118 + $0x20] sm:$0xff]
        %v144 = vld [vmem:[%s118 + $0x28] sm:$0xff]
        %v145 = vld [vmem:[%s118 + $0x30] sm:$0xff]
        %v146 = vld [vmem:[%s118 + $0x38] sm:$0xff]
        %v147 = vld [vmem:[%s118 + $0x40] sm:$0xff]
        %v148 = vld [vmem:[%s118 + $0x48] sm:$0xff]
        %v149 = vld [vmem:[%s118 + $0x50] sm:$0xff]
        %v150 = vld [vmem:[%s118 + $0x58] sm:$0xff]
        %v151 = vld [vmem:[%s118 + $0x60] sm:$0xff]
        %v152 = vld [vmem:[%s118 + $0x68] sm:$0xff]
        %v153 = vld [vmem:[%s118 + $0x70] sm:$0xff]
        %v154 = vld [vmem:[%s118 + $0x78] sm:$0xff]
        %v155 = vld [vmem:[%s118 + $0x80] sm:$0xff]
        %v156 = vld [vmem:[%s118 + $0x88] sm:$0xff]
        %v157 = vld [vmem:[%s118 + $0x90] sm:$0xff]
        %v158 = vld [vmem:[%s118 + $0x98] sm:$0xff]
        %v159 = vld [vmem:[%s118 + $0xa0] sm:$0xff]
        %v160 = vld [vmem:[%s118 + $0xa8] sm:$0xff]
        %v161 = vld [vmem:[%s118 + $0xb0] sm:$0xff]
        %v162 = vld [vmem:[%s118 + $0xb8] sm:$0xff]
        %v163 = vld [vmem:[%s118 + $0xc0] sm:$0xff]
        %v164 = vld [vmem:[%s118 + $0xc8] sm:$0xff]
        %v165 = vld [vmem:[%s118 + $0xd0] sm:$0xff]
        %v166 = vld [vmem:[%s118 + $0xd8] sm:$0xff]
        %v167 = vld [vmem:[%s118 + $0xe0] sm:$0xff]
        %v168 = vld [vmem:[%s118 + $0xe8] sm:$0xff]
        %v169 = vld [vmem:[%s118 + $0xf0] sm:$0xff]
        %v170 = vld [vmem:[%s118 + $0xf8] sm:$0xff]
        %v171 = vld [vmem:[%s118 + $0x100] sm:$0xff]
        %v172 = vld [vmem:[%s118 + $0x108] sm:$0xff]
        %v173 = vld [vmem:[%s118 + $0x110] sm:$0xff]
        %v174 = vld [vmem:[%s118 + $0x118] sm:$0xff]
        %v175 = vld [vmem:[%s118 + $0x120] sm:$0xff]
        %v176 = vld [vmem:[%s118 + $0x128] sm:$0xff]
        %v177 = vld [vmem:[%s118 + $0x130] sm:$0xff]
        %v178 = vld [vmem:[%s118 + $0x138] sm:$0xff]
        %v179 = vld [vmem:[%s118 + $0x140] sm:$0xff]
        %v180 = vld [vmem:[%s118 + $0x148] sm:$0xff]
        %v181 = vld [vmem:[%s118 + $0x150] sm:$0xff]
        %v182 = vld [vmem:[%s118 + $0x158] sm:$0xff]
        %v183 = vld [vmem:[%s118 + $0x160] sm:$0xff]
        %v184 = vld [vmem:[%s118 + $0x168] sm:$0xff]
        %v185 = vld [vmem:[%s118 + $0x170] sm:$0xff]
        %v186 = vld [vmem:[%s118 + $0x178] sm:$0xff]
        %v187 = vld [vmem:[%s118 + $0x180] sm:$0xff]
        %v188 = vld [vmem:[%s118 + $0x188] sm:$0xff]
        %v189 = vld [vmem:[%s118 + $0x190] sm:$0xff]
        %v190 = vld [vmem:[%s118 + $0x198] sm:$0xff]
        %v191 = vld [vmem:[%s118 + $0x1a0] sm:$0xff]
        %v192 = vld [vmem:[%s118 + $0x1a8] sm:$0xff]
        %v193 = vld [vmem:[%s118 + $0x1b0] sm:$0xff]
        %v194 = vld [vmem:[%s118 + $0x1b8] sm:$0xff]
        %v195 = vld [vmem:[%s118 + $0x1c0] sm:$0xff]
        %v196 = vld [vmem:[%s118 + $0x1c8] sm:$0xff]
        %v197 = vld [vmem:[%s118 + $0x1d0] sm:$0xff]
        %v198 = vld [vmem:[%s118 + $0x1d8] sm:$0xff]
        %v199 = vld [vmem:[%s118 + $0x1e0] sm:$0xff]
        %v200 = vld [vmem:[%s118 + $0x1e8] sm:$0xff]
        %v201 = vld [vmem:[%s118 + $0x1f0] sm:$0xff]
        %v202 = vld [vmem:[%s118 + $0x1f8] sm:$0xff]
        %v203 = vld [vmem:[%s118 + $0x200] sm:$0xff]
        %v204 = vld [vmem:[%s118 + $0x208] sm:$0xff]
        %v205 = vld [vmem:[%s118 + $0x210] sm:$0xff]
        %v206 = vld [vmem:[%s118 + $0x218] sm:$0xff]
        %v207 = vld [vmem:[%s118 + $0x220] sm:$0xff]
        %v208 = vld [vmem:[%s118 + $0x228] sm:$0xff]
        %v209 = vld [vmem:[%s118 + $0x230] sm:$0xff]
        %v210 = vld [vmem:[%s118 + $0x238] sm:$0xff]
        %v211 = vld [vmem:[%s118 + $0x240] sm:$0xff]
        %v212 = vld [vmem:[%s118 + $0x248] sm:$0xff]
        %v213 = vld [vmem:[%s118 + $0x250] sm:$0xff]
        %v214 = vld [vmem:[%s118 + $0x258] sm:$0xff]
        %v215 = vld [vmem:[%s118 + $0x260] sm:$0xff]
        %v216 = vld [vmem:[%s118 + $0x268] sm:$0xff]
        %v217 = vld [vmem:[%s118 + $0x270] sm:$0xff]
        %v218 = vld [vmem:[%s118 + $0x278] sm:$0xff]
        %v219 = vld [vmem:[%s118 + $0x280] sm:$0xff]
        %v220 = vld [vmem:[%s118 + $0x288] sm:$0xff]
        %v221 = vld [vmem:[%s118 + $0x290] sm:$0xff]
        %v222 = vld [vmem:[%s118 + $0x298] sm:$0xff]
        %v223 = vld [vmem:[%s118 + $0x2a0] sm:$0xff]
        %v224 = vld [vmem:[%s118 + $0x2a8] sm:$0xff]
        %v225 = vld [vmem:[%s118 + $0x2b0] sm:$0xff]
        %v226 = vld [vmem:[%s118 + $0x2b8] sm:$0xff]
        %v227 = vld [vmem:[%s118 + $0x2c0] sm:$0xff]
        %v228 = vld [vmem:[%s118 + $0x2c8] sm:$0xff]
        %v229 = vld [vmem:[%s118 + $0x2d0] sm:$0xff]
        %v230 = vld [vmem:[%s118 + $0x2d8] sm:$0xff]
        %v231 = vld [vmem:[%s118 + $0x2e0] sm:$0xff]
        %v232 = vld [vmem:[%s118 + $0x2e8] sm:$0xff]
        %v233 = vld [vmem:[%s118 + $0x2f0] sm:$0xff]
        %v234 = vld [vmem:[%s118 + $0x2f8] sm:$0xff]
        %v235 = vld [vmem:[%s118 + $0x300] sm:$0xff]
        %v236 = vld [vmem:[%s118 + $0x308] sm:$0xff]
        %v237 = vld [vmem:[%s118 + $0x310] sm:$0xff]
        %v238 = vld [vmem:[%s118 + $0x318] sm:$0xff]
        %v239 = vld [vmem:[%s118 + $0x320] sm:$0xff]
        %v240 = vld [vmem:[%s118 + $0x328] sm:$0xff]
        %v241 = vld [vmem:[%s118 + $0x330] sm:$0xff]
        %v242 = vld [vmem:[%s118 + $0x338] sm:$0xff]
        %v243 = vld [vmem:[%s118 + $0x340] sm:$0xff]
        %v244 = vld [vmem:[%s118 + $0x348] sm:$0xff]
        %v245 = vld [vmem:[%s118 + $0x350] sm:$0xff]
        %v246 = vld [vmem:[%s118 + $0x358] sm:$0xff]
        %v247 = vld [vmem:[%s118 + $0x360] sm:$0xff]
        %v248 = vld [vmem:[%s118 + $0x368] sm:$0xff]
        %v249 = vld [vmem:[%s118 + $0x370] sm:$0xff]
        %v250 = vld [vmem:[%s118 + $0x378] sm:$0xff]
        %v251 = vld [vmem:[%s118 + $0x380] sm:$0xff]
        %v252 = vld [vmem:[%s118 + $0x388] sm:$0xff]
        %v253 = vld [vmem:[%s118 + $0x390] sm:$0xff]
        %v254 = vld [vmem:[%s118 + $0x398] sm:$0xff]
        %v255 = vld [vmem:[%s118 + $0x3a0] sm:$0xff]
        %v256 = vld [vmem:[%s118 + $0x3a8] sm:$0xff]
        %v257 = vld [vmem:[%s118 + $0x3b0] sm:$0xff]
        %v258 = vld [vmem:[%s118 + $0x3b8] sm:$0xff]
        %v259 = vld [vmem:[%s118 + $0x3c0] sm:$0xff]
        %v260 = vld [vmem:[%s118 + $0x3c8] sm:$0xff]
        %v261 = vld [vmem:[%s118 + $0x3d0] sm:$0xff]
        %v262 = vld [vmem:[%s118 + $0x3d8] sm:$0xff]
        %v263 = vld [vmem:[%s118 + $0x3e0] sm:$0xff]
        %v264 = vld [vmem:[%s118 + $0x3e8] sm:$0xff]
        %v265 = vld [vmem:[%s118 + $0x3f0] sm:$0xff]
        %v266 = vld [vmem:[%s118 + $0x3f8] sm:$0xff]
        %v267 = vld [vmem:[%s118 + $0x400] sm:$0xff]
        %v268 = vld [vmem:[%s118 + $0x408] sm:$0xff]
        %v269 = vld [vmem:[%s118 + $0x410] sm:$0xff]
        %v270 = vld [vmem:[%s118 + $0x418] sm:$0xff]
        %v271 = vld [vmem:[%s118 + $0x420] sm:$0xff]
        %v272 = vld [vmem:[%s118 + $0x428] sm:$0xff]
        %v273 = vld [vmem:[%s118 + $0x430] sm:$0xff]
        %v274 = vld [vmem:[%s118 + $0x438] sm:$0xff]
        %v275 = vld [vmem:[%s118 + $0x440] sm:$0xff]
        %v276 = vld [vmem:[%s118 + $0x448] sm:$0xff]
        %v277 = vld [vmem:[%s118 + $0x450] sm:$0xff]
        %v278 = vld [vmem:[%s118 + $0x458] sm:$0xff]
        %v279 = vld [vmem:[%s118 + $0x460] sm:$0xff]
        %v280 = vld [vmem:[%s118 + $0x468] sm:$0xff]
        %v281 = vld [vmem:[%s118 + $0x470] sm:$0xff]
        %v282 = vld [vmem:[%s118 + $0x478] sm:$0xff]
        %v283 = vld [vmem:[%s118 + $0x480] sm:$0xff]
        %v284 = vld [vmem:[%s118 + $0x488] sm:$0xff]
        %v285 = vld [vmem:[%s118 + $0x490] sm:$0xff]
        %v286 = vld [vmem:[%s118 + $0x498] sm:$0xff]
        %v287 = vld [vmem:[%s118 + $0x4a0] sm:$0xff]
        %v288 = vld [vmem:[%s118 + $0x4a8] sm:$0xff]
        %v289 = vld [vmem:[%s118 + $0x4b0] sm:$0xff]
        %v290 = vld [vmem:[%s118 + $0x4b8] sm:$0xff]
        %v291 = vld [vmem:[%s118 + $0x4c0] sm:$0xff]
        %v292 = vld [vmem:[%s118 + $0x4c8] sm:$0xff]
        %v293 = vld [vmem:[%s118 + $0x4d0] sm:$0xff]
        %v294 = vld [vmem:[%s118 + $0x4d8] sm:$0xff]
        %v295 = vld [vmem:[%s118 + $0x4e0] sm:$0xff]
        %v296 = vld [vmem:[%s118 + $0x4e8] sm:$0xff]
        %v297 = vld [vmem:[%s118 + $0x4f0] sm:$0xff]
        %v298 = vld [vmem:[%s118 + $0x4f8] sm:$0xff]
        %v299 = vld [vmem:[%s118 + $0x500] sm:$0xff]
        %v300 = vld [vmem:[%s118 + $0x508] sm:$0xff]
        %v301 = vld [vmem:[%s118 + $0x510] sm:$0xff]
        %v302 = vld [vmem:[%s118 + $0x518] sm:$0xff]
        %v303 = vld [vmem:[%s118 + $0x520] sm:$0xff]
        %v304 = vld [vmem:[%s118 + $0x528] sm:$0xff]
        %v305 = vld [vmem:[%s118 + $0x530] sm:$0xff]
        %v306 = vld [vmem:[%s118 + $0x538] sm:$0xff]
        %v307 = vld [vmem:[%s118 + $0x540] sm:$0xff]
        %v308 = vld [vmem:[%s118 + $0x548] sm:$0xff]
        %v309 = vld [vmem:[%s118 + $0x550] sm:$0xff]
        %v310 = vld [vmem:[%s118 + $0x558] sm:$0xff]
        %v311 = vld [vmem:[%s118 + $0x560] sm:$0xff]
        %v312 = vld [vmem:[%s118 + $0x568] sm:$0xff]
        %v313 = vld [vmem:[%s118 + $0x570] sm:$0xff]
        %v314 = vld [vmem:[%s118 + $0x578] sm:$0xff]
        %v315 = vld [vmem:[%s118 + $0x580] sm:$0xff]
        %v316 = vld [vmem:[%s118 + $0x588] sm:$0xff]
        %v317 = vld [vmem:[%s118 + $0x590] sm:$0xff]
        %v318 = vld [vmem:[%s118 + $0x598] sm:$0xff]
        %v319 = vld [vmem:[%s118 + $0x5a0] sm:$0xff]
        %v320 = vld [vmem:[%s118 + $0x5a8] sm:$0xff]
        %v321 = vld [vmem:[%s118 + $0x5b0] sm:$0xff]
        %v322 = vld [vmem:[%s118 + $0x5b8] sm:$0xff]
        %v323 = vld [vmem:[%s118 + $0x5c0] sm:$0xff]
        %v324 = vld [vmem:[%s118 + $0x5c8] sm:$0xff]
        %v325 = vld [vmem:[%s118 + $0x5d0] sm:$0xff]
        %v326 = vld [vmem:[%s118 + $0x5d8] sm:$0xff]
        %v327 = vld [vmem:[%s118 + $0x5e0] sm:$0xff]
        %v328 = vld [vmem:[%s118 + $0x5e8] sm:$0xff]
        %v329 = vld [vmem:[%s118 + $0x5f0] sm:$0xff]
        %v330 = vld [vmem:[%s118 + $0x5f8] sm:$0xff]
        %v331 = vld [vmem:[%s118 + $0x600] sm:$0xff]
        %v332 = vld [vmem:[%s118 + $0x608] sm:$0xff]
        %v333 = vld [vmem:[%s118 + $0x610] sm:$0xff]
        %v334 = vld [vmem:[%s118 + $0x618] sm:$0xff]
        %v335 = vld [vmem:[%s118 + $0x620] sm:$0xff]
        %v336 = vld [vmem:[%s118 + $0x628] sm:$0xff]
        %v337 = vld [vmem:[%s118 + $0x630] sm:$0xff]
        %v338 = vld [vmem:[%s118 + $0x638] sm:$0xff]
        %v339 = vld [vmem:[%s118 + $0x640] sm:$0xff]
        %v340 = vld [vmem:[%s118 + $0x648] sm:$0xff]
        %v341 = vld [vmem:[%s118 + $0x650] sm:$0xff]
        %v342 = vld [vmem:[%s118 + $0x658] sm:$0xff]
        %v343 = vld [vmem:[%s118 + $0x660] sm:$0xff]
        %v344 = vld [vmem:[%s118 + $0x668] sm:$0xff]
        %v345 = vld [vmem:[%s118 + $0x670] sm:$0xff]
        %v346 = vld [vmem:[%s118 + $0x678] sm:$0xff]
        %v347 = vld [vmem:[%s118 + $0x680] sm:$0xff]
        %v348 = vld [vmem:[%s118 + $0x688] sm:$0xff]
        %v349 = vld [vmem:[%s118 + $0x690] sm:$0xff]
        %v350 = vld [vmem:[%s118 + $0x698] sm:$0xff]
        %v351 = vld [vmem:[%s118 + $0x6a0] sm:$0xff]
        %v352 = vld [vmem:[%s118 + $0x6a8] sm:$0xff]
        %v353 = vld [vmem:[%s118 + $0x6b0] sm:$0xff]
        %v354 = vld [vmem:[%s118 + $0x6b8] sm:$0xff]
        %v355 = vld [vmem:[%s118 + $0x6c0] sm:$0xff]
        %v356 = vld [vmem:[%s118 + $0x6c8] sm:$0xff]
        %v357 = vld [vmem:[%s118 + $0x6d0] sm:$0xff]
        %v358 = vld [vmem:[%s118 + $0x6d8] sm:$0xff]
        %v359 = vld [vmem:[%s118 + $0x6e0] sm:$0xff]
        %v360 = vld [vmem:[%s118 + $0x6e8] sm:$0xff]
        %v361 = vld [vmem:[%s118 + $0x6f0] sm:$0xff]
        %v362 = vld [vmem:[%s118 + $0x6f8] sm:$0xff]
        %v363 = vld [vmem:[%s118 + $0x700] sm:$0xff]
        %v364 = vld [vmem:[%s118 + $0x708] sm:$0xff]
        %v365 = vld [vmem:[%s118 + $0x710] sm:$0xff]
        %v366 = vld [vmem:[%s118 + $0x718] sm:$0xff]
        %v367 = vld [vmem:[%s118 + $0x720] sm:$0xff]
        %v368 = vld [vmem:[%s118 + $0x728] sm:$0xff]
        %v369 = vld [vmem:[%s118 + $0x730] sm:$0xff]
        %v370 = vld [vmem:[%s118 + $0x738] sm:$0xff]
        %v371 = vld [vmem:[%s118 + $0x740] sm:$0xff]
        %v372 = vld [vmem:[%s118 + $0x748] sm:$0xff]
        %v373 = vld [vmem:[%s118 + $0x750] sm:$0xff]
        %v374 = vld [vmem:[%s118 + $0x758] sm:$0xff]
        %v375 = vld [vmem:[%s118 + $0x760] sm:$0xff]
        %v376 = vld [vmem:[%s118 + $0x768] sm:$0xff]
        %v377 = vld [vmem:[%s118 + $0x770] sm:$0xff]
        %v378 = vld [vmem:[%s118 + $0x778] sm:$0xff]
        %v379 = vld [vmem:[%s118 + $0x780] sm:$0xff]
        %v380 = vld [vmem:[%s118 + $0x788] sm:$0xff]
        %v381 = vld [vmem:[%s118 + $0x790] sm:$0xff]
        %v382 = vld [vmem:[%s118 + $0x798] sm:$0xff]
        %v383 = vld [vmem:[%s118 + $0x7a0] sm:$0xff]
        %v384 = vld [vmem:[%s118 + $0x7a8] sm:$0xff]
        %v385 = vld [vmem:[%s118 + $0x7b0] sm:$0xff]
        %v386 = vld [vmem:[%s118 + $0x7b8] sm:$0xff]
        %v387 = vld [vmem:[%s118 + $0x7c0] sm:$0xff]
        %v388 = vld [vmem:[%s118 + $0x7c8] sm:$0xff]
        %v389 = vld [vmem:[%s118 + $0x7d0] sm:$0xff]
        %v390 = vld [vmem:[%s118 + $0x7d8] sm:$0xff]
        %v391 = vld [vmem:[%s118 + $0x7e0] sm:$0xff]
        %v392 = vld [vmem:[%s118 + $0x7e8] sm:$0xff]
        %v393 = vld [vmem:[%s118 + $0x7f0] sm:$0xff]
        %v394 = vld [vmem:[%s118 + $0x7f8] sm:$0xff]
        %v395 = vld [vmem:[%s118 + $0x800] sm:$0xff]
        %v396 = vld [vmem:[%s118 + $0x808] sm:$0xff]
        %v397 = vld [vmem:[%s118 + $0x810] sm:$0xff]
        %v398 = vld [vmem:[%s118 + $0x818] sm:$0xff]
        %v399 = vld [vmem:[%s118 + $0x820] sm:$0xff]
        %v400 = vld [vmem:[%s118 + $0x828] sm:$0xff]
        %v401 = vld [vmem:[%s118 + $0x830] sm:$0xff]
        %v402 = vld [vmem:[%s118 + $0x838] sm:$0xff]
        %v403 = vld [vmem:[%s118 + $0x840] sm:$0xff]
        %v404 = vld [vmem:[%s118 + $0x848] sm:$0xff]
        %v405 = vld [vmem:[%s118 + $0x850] sm:$0xff]
        %v406 = vld [vmem:[%s118 + $0x858] sm:$0xff]
        %v407 = vld [vmem:[%s118 + $0x860] sm:$0xff]
        %v408 = vld [vmem:[%s118 + $0x868] sm:$0xff]
        %v409 = vld [vmem:[%s118 + $0x870] sm:$0xff]
        %v410 = vld [vmem:[%s118 + $0x878] sm:$0xff]
        %v411 = vld [vmem:[%s118 + $0x880] sm:$0xff]
        %v412 = vld [vmem:[%s118 + $0x888] sm:$0xff]
        %v413 = vld [vmem:[%s118 + $0x890] sm:$0xff]
        %v414 = vld [vmem:[%s118 + $0x898] sm:$0xff]
        %v415 = vld [vmem:[%s118 + $0x8a0] sm:$0xff]
        %v416 = vld [vmem:[%s118 + $0x8a8] sm:$0xff]
        %v417 = vld [vmem:[%s118 + $0x8b0] sm:$0xff]
        %v418 = vld [vmem:[%s118 + $0x8b8] sm:$0xff]
        %v419 = vld [vmem:[%s118 + $0x8c0] sm:$0xff]
        %v420 = vld [vmem:[%s118 + $0x8c8] sm:$0xff]
        %v421 = vld [vmem:[%s118 + $0x8d0] sm:$0xff]
        %v422 = vld [vmem:[%s118 + $0x8d8] sm:$0xff]
        %v423 = vld [vmem:[%s118 + $0x8e0] sm:$0xff]
        %v424 = vld [vmem:[%s118 + $0x8e8] sm:$0xff]
        %v425 = vld [vmem:[%s118 + $0x8f0] sm:$0xff]
        %v426 = vld [vmem:[%s118 + $0x8f8] sm:$0xff]
        %v427 = vld [vmem:[%s118 + $0x900] sm:$0xff]
        %v428 = vld [vmem:[%s118 + $0x908] sm:$0xff]
        %v429 = vld [vmem:[%s118 + $0x910] sm:$0xff]
        %v430 = vld [vmem:[%s118 + $0x918] sm:$0xff]
        %v431 = vld [vmem:[%s118 + $0x920] sm:$0xff]
        %v432 = vld [vmem:[%s118 + $0x928] sm:$0xff]
        %v433 = vld [vmem:[%s118 + $0x930] sm:$0xff]
        %v434 = vld [vmem:[%s118 + $0x938] sm:$0xff]
        %v435 = vld [vmem:[%s118 + $0x940] sm:$0xff]
        %v436 = vld [vmem:[%s118 + $0x948] sm:$0xff]
        %v437 = vld [vmem:[%s118 + $0x950] sm:$0xff]
        %v438 = vld [vmem:[%s118 + $0x958] sm:$0xff]
        %v439 = vld [vmem:[%s118 + $0x960] sm:$0xff]
        %v440 = vld [vmem:[%s118 + $0x968] sm:$0xff]
        %v441 = vld [vmem:[%s118 + $0x970] sm:$0xff]
        %v442 = vld [vmem:[%s118 + $0x978] sm:$0xff]
        %v443 = vld [vmem:[%s118 + $0x980] sm:$0xff]
        %v444 = vld [vmem:[%s118 + $0x988] sm:$0xff]
        %v445 = vld [vmem:[%s118 + $0x990] sm:$0xff]
        %v446 = vld [vmem:[%s118 + $0x998] sm:$0xff]
        %v447 = vld [vmem:[%s118 + $0x9a0] sm:$0xff]
        %v448 = vld [vmem:[%s118 + $0x9a8] sm:$0xff]
        %v449 = vld [vmem:[%s118 + $0x9b0] sm:$0xff]
        %v450 = vld [vmem:[%s118 + $0x9b8] sm:$0xff]
        %v451 = vld [vmem:[%s118 + $0x9c0] sm:$0xff]
        %v452 = vld [vmem:[%s118 + $0x9c8] sm:$0xff]
        %v453 = vld [vmem:[%s118 + $0x9d0] sm:$0xff]
        %v454 = vld [vmem:[%s118 + $0x9d8] sm:$0xff]
        %v455 = vld [vmem:[%s118 + $0x9e0] sm:$0xff]
        %v456 = vld [vmem:[%s118 + $0x9e8] sm:$0xff]
        %v457 = vld [vmem:[%s118 + $0x9f0] sm:$0xff]
        %v458 = vld [vmem:[%s118 + $0x9f8] sm:$0xff]
        %v459 = vld [vmem:[%s118 + $0xa00] sm:$0xff]
        %v460 = vld [vmem:[%s118 + $0xa08] sm:$0xff]
        %v461 = vld [vmem:[%s118 + $0xa10] sm:$0xff]
        %v462 = vld [vmem:[%s118 + $0xa18] sm:$0xff]
        %v463 = vld [vmem:[%s118 + $0xa20] sm:$0xff]
        %v464 = vld [vmem:[%s118 + $0xa28] sm:$0xff]
        %v465 = vld [vmem:[%s118 + $0xa30] sm:$0xff]
        %v466 = vld [vmem:[%s118 + $0xa38] sm:$0xff]
        %v467 = vld [vmem:[%s118 + $0xa40] sm:$0xff]
        %v468 = vld [vmem:[%s118 + $0xa48] sm:$0xff]
        %v469 = vld [vmem:[%s118 + $0xa50] sm:$0xff]
        %v470 = vld [vmem:[%s118 + $0xa58] sm:$0xff]
        %v471 = vld [vmem:[%s118 + $0xa60] sm:$0xff]
        %v472 = vld [vmem:[%s118 + $0xa68] sm:$0xff]
        %v473 = vld [vmem:[%s118 + $0xa70] sm:$0xff]
        %v474 = vld [vmem:[%s118 + $0xa78] sm:$0xff]
        %v475 = vld [vmem:[%s118 + $0xa80] sm:$0xff]
        %v476 = vld [vmem:[%s118 + $0xa88] sm:$0xff]
        %v477 = vld [vmem:[%s118 + $0xa90] sm:$0xff]
        %v478 = vld [vmem:[%s118 + $0xa98] sm:$0xff]
        %v479 = vld [vmem:[%s118 + $0xaa0] sm:$0xff]
        %v480 = vld [vmem:[%s118 + $0xaa8] sm:$0xff]
        %v481 = vld [vmem:[%s118 + $0xab0] sm:$0xff]
        %v482 = vld [vmem:[%s118 + $0xab8] sm:$0xff]
        %v483 = vld [vmem:[%s118 + $0xac0] sm:$0xff]
        %v484 = vld [vmem:[%s118 + $0xac8] sm:$0xff]
        %v485 = vld [vmem:[%s118 + $0xad0] sm:$0xff]
        %v486 = vld [vmem:[%s118 + $0xad8] sm:$0xff]
        %v487 = vld [vmem:[%s118 + $0xae0] sm:$0xff]
        %v488 = vld [vmem:[%s118 + $0xae8] sm:$0xff]
        %v489 = vld [vmem:[%s118 + $0xaf0] sm:$0xff]
        %v490 = vld [vmem:[%s118 + $0xaf8] sm:$0xff]
        %v491 = vld [vmem:[%s118 + $0xb00] sm:$0xff]
        %v492 = vld [vmem:[%s118 + $0xb08] sm:$0xff]
        %v493 = vld [vmem:[%s118 + $0xb10] sm:$0xff]
        %v494 = vld [vmem:[%s118 + $0xb18] sm:$0xff]
        %v495 = vld [vmem:[%s118 + $0xb20] sm:$0xff]
        %v496 = vld [vmem:[%s118 + $0xb28] sm:$0xff]
        %v497 = vld [vmem:[%s118 + $0xb30] sm:$0xff]
        %v498 = vld [vmem:[%s118 + $0xb38] sm:$0xff]
        %v499 = vld [vmem:[%s118 + $0xb40] sm:$0xff]
        %v500 = vld [vmem:[%s118 + $0xb48] sm:$0xff]
        %v501 = vld [vmem:[%s118 + $0xb50] sm:$0xff]
        %v502 = vld [vmem:[%s118 + $0xb58] sm:$0xff]
        %v503 = vld [vmem:[%s118 + $0xb60] sm:$0xff]
        %v504 = vld [vmem:[%s118 + $0xb68] sm:$0xff]
        %v505 = vld [vmem:[%s118 + $0xb70] sm:$0xff]
        %v506 = vld [vmem:[%s118 + $0xb78] sm:$0xff]
        %v507 = vld [vmem:[%s118 + $0xb80] sm:$0xff]
        %v508 = vld [vmem:[%s118 + $0xb88] sm:$0xff]
        %v509 = vld [vmem:[%s118 + $0xb90] sm:$0xff]
        %v510 = vld [vmem:[%s118 + $0xb98] sm:$0xff]
        %v511 = vld [vmem:[%s118 + $0xba0] sm:$0xff]
        %v512 = vld [vmem:[%s118 + $0xba8] sm:$0xff]
        %v513 = vld [vmem:[%s118 + $0xbb0] sm:$0xff]
        %v514 = vld [vmem:[%s118 + $0xbb8] sm:$0xff]
        %v515 = vld [vmem:[%s118 + $0xbc0] sm:$0xff]
        %v516 = vld [vmem:[%s118 + $0xbc8] sm:$0xff]
        %v517 = vld [vmem:[%s118 + $0xbd0] sm:$0xff]
        %v518 = vld [vmem:[%s118 + $0xbd8] sm:$0xff]
        %v519 = vld [vmem:[%s118 + $0xbe0] sm:$0xff]
        %v520 = vld [vmem:[%s118 + $0xbe8] sm:$0xff]
        %v521 = vld [vmem:[%s118 + $0xbf0] sm:$0xff]
        %v522 = vld [vmem:[%s118 + $0xbf8] sm:$0xff]
        %v523 = vld [vmem:[%s118 + $0xc00] sm:$0xff]
        %v524 = vld [vmem:[%s118 + $0xc08] sm:$0xff]
        %v525 = vld [vmem:[%s118 + $0xc10] sm:$0xff]
        %v526 = vld [vmem:[%s118 + $0xc18] sm:$0xff]
        %v527 = vld [vmem:[%s118 + $0xc20] sm:$0xff]
        %v528 = vld [vmem:[%s118 + $0xc28] sm:$0xff]
        %v529 = vld [vmem:[%s118 + $0xc30] sm:$0xff]
        %v530 = vld [vmem:[%s118 + $0xc38] sm:$0xff]
        %v531 = vld [vmem:[%s118 + $0xc40] sm:$0xff]
        %v532 = vld [vmem:[%s118 + $0xc48] sm:$0xff]
        %v533 = vld [vmem:[%s118 + $0xc50] sm:$0xff]
        %v534 = vld [vmem:[%s118 + $0xc58] sm:$0xff]
        %v535 = vld [vmem:[%s118 + $0xc60] sm:$0xff]
        %v536 = vld [vmem:[%s118 + $0xc68] sm:$0xff]
        %v537 = vld [vmem:[%s118 + $0xc70] sm:$0xff]
        %v538 = vld [vmem:[%s118 + $0xc78] sm:$0xff]
        %v539 = vld [vmem:[%s118 + $0xc80] sm:$0xff]
        %v540 = vld [vmem:[%s118 + $0xc88] sm:$0xff]
        %v541 = vld [vmem:[%s118 + $0xc90] sm:$0xff]
        %v542 = vld [vmem:[%s118 + $0xc98] sm:$0xff]
        %v543 = vld [vmem:[%s118 + $0xca0] sm:$0xff]
        %v544 = vld [vmem:[%s118 + $0xca8] sm:$0xff]
        %v545 = vld [vmem:[%s118 + $0xcb0] sm:$0xff]
        %v546 = vld [vmem:[%s118 + $0xcb8] sm:$0xff]
        %v547 = vld [vmem:[%s118 + $0xcc0] sm:$0xff]
        %v548 = vld [vmem:[%s118 + $0xcc8] sm:$0xff]
        %v549 = vld [vmem:[%s118 + $0xcd0] sm:$0xff]
        %v550 = vld [vmem:[%s118 + $0xcd8] sm:$0xff]
        %v551 = vld [vmem:[%s118 + $0xce0] sm:$0xff]
        %v552 = vld [vmem:[%s118 + $0xce8] sm:$0xff]
        %v553 = vld [vmem:[%s118 + $0xcf0] sm:$0xff]
        %v554 = vld [vmem:[%s118 + $0xcf8] sm:$0xff]
        %v555 = vld [vmem:[%s118 + $0xd00] sm:$0xff]
        %v556 = vld [vmem:[%s118 + $0xd08] sm:$0xff]
        %v557 = vld [vmem:[%s118 + $0xd10] sm:$0xff]
        %v558 = vld [vmem:[%s118 + $0xd18] sm:$0xff]
        %v559 = vld [vmem:[%s118 + $0xd20] sm:$0xff]
        %v560 = vld [vmem:[%s118 + $0xd28] sm:$0xff]
        %v561 = vld [vmem:[%s118 + $0xd30] sm:$0xff]
        %v562 = vld [vmem:[%s118 + $0xd38] sm:$0xff]
        %v563 = vld [vmem:[%s118 + $0xd40] sm:$0xff]
        %v564 = vld [vmem:[%s118 + $0xd48] sm:$0xff]
        %v565 = vld [vmem:[%s118 + $0xd50] sm:$0xff]
        %v566 = vld [vmem:[%s118 + $0xd58] sm:$0xff]
        %v567 = vld [vmem:[%s118 + $0xd60] sm:$0xff]
        %v568 = vld [vmem:[%s118 + $0xd68] sm:$0xff]
        %v569 = vld [vmem:[%s118 + $0xd70] sm:$0xff]
        %v570 = vld [vmem:[%s118 + $0xd78] sm:$0xff]
        %v571 = vld [vmem:[%s118 + $0xd80] sm:$0xff]
        %v572 = vld [vmem:[%s118 + $0xd88] sm:$0xff]
        %v573 = vld [vmem:[%s118 + $0xd90] sm:$0xff]
        %v574 = vld [vmem:[%s118 + $0xd98] sm:$0xff]
        %v575 = vld [vmem:[%s118 + $0xda0] sm:$0xff]
        %v576 = vld [vmem:[%s118 + $0xda8] sm:$0xff]
        %v577 = vld [vmem:[%s118 + $0xdb0] sm:$0xff]
        %v578 = vld [vmem:[%s118 + $0xdb8] sm:$0xff]
        %v579 = vld [vmem:[%s118 + $0xdc0] sm:$0xff]
        %v580 = vld [vmem:[%s118 + $0xdc8] sm:$0xff]
        %v581 = vld [vmem:[%s118 + $0xdd0] sm:$0xff]
        %v582 = vld [vmem:[%s118 + $0xdd8] sm:$0xff]
        %v583 = vld [vmem:[%s118 + $0xde0] sm:$0xff]
        %v584 = vld [vmem:[%s118 + $0xde8] sm:$0xff]
        %v585 = vld [vmem:[%s118 + $0xdf0] sm:$0xff]
        %v586 = vld [vmem:[%s118 + $0xdf8] sm:$0xff]
        %v587 = vld [vmem:[%s118 + $0xe00] sm:$0xff]
        %v588 = vld [vmem:[%s118 + $0xe08] sm:$0xff]
        %v589 = vld [vmem:[%s118 + $0xe10] sm:$0xff]
        %v590 = vld [vmem:[%s118 + $0xe18] sm:$0xff]
        %v591 = vld [vmem:[%s118 + $0xe20] sm:$0xff]
        %v592 = vld [vmem:[%s118 + $0xe28] sm:$0xff]
        %v593 = vld [vmem:[%s118 + $0xe30] sm:$0xff]
        %v594 = vld [vmem:[%s118 + $0xe38] sm:$0xff]
        %v595 = vld [vmem:[%s118 + $0xe40] sm:$0xff]
        %v596 = vld [vmem:[%s118 + $0xe48] sm:$0xff]
        %v597 = vld [vmem:[%s118 + $0xe50] sm:$0xff]
        %v598 = vld [vmem:[%s118 + $0xe58] sm:$0xff]
        %v599 = vld [vmem:[%s118 + $0xe60] sm:$0xff]
        %v600 = vld [vmem:[%s118 + $0xe68] sm:$0xff]
        %v601 = vld [vmem:[%s118 + $0xe70] sm:$0xff]
        %v602 = vld [vmem:[%s118 + $0xe78] sm:$0xff]
        %v603 = vld [vmem:[%s118 + $0xe80] sm:$0xff]
        %v604 = vld [vmem:[%s118 + $0xe88] sm:$0xff]
        %v605 = vld [vmem:[%s118 + $0xe90] sm:$0xff]
        %v606 = vld [vmem:[%s118 + $0xe98] sm:$0xff]
        %v607 = vld [vmem:[%s118 + $0xea0] sm:$0xff]
        %v608 = vld [vmem:[%s118 + $0xea8] sm:$0xff]
        %v609 = vld [vmem:[%s118 + $0xeb0] sm:$0xff]
        %v610 = vld [vmem:[%s118 + $0xeb8] sm:$0xff]
        %v611 = vld [vmem:[%s118 + $0xec0] sm:$0xff]
        %v612 = vld [vmem:[%s118 + $0xec8] sm:$0xff]
        %v613 = vld [vmem:[%s118 + $0xed0] sm:$0xff]
        %v614 = vld [vmem:[%s118 + $0xed8] sm:$0xff]
        %v615 = vld [vmem:[%s118 + $0xee0] sm:$0xff]
        %v616 = vld [vmem:[%s118 + $0xee8] sm:$0xff]
        %v617 = vld [vmem:[%s118 + $0xef0] sm:$0xff]
        %v618 = vld [vmem:[%s118 + $0xef8] sm:$0xff]
        %v619 = vld [vmem:[%s118 + $0xf00] sm:$0xff]
        %v620 = vld [vmem:[%s118 + $0xf08] sm:$0xff]
        %v621 = vld [vmem:[%s118 + $0xf10] sm:$0xff]
        %v622 = vld [vmem:[%s118 + $0xf18] sm:$0xff]
        %v623 = vld [vmem:[%s118 + $0xf20] sm:$0xff]
        %v624 = vld [vmem:[%s118 + $0xf28] sm:$0xff]
        %v625 = vld [vmem:[%s118 + $0xf30] sm:$0xff]
        %v626 = vld [vmem:[%s118 + $0xf38] sm:$0xff]
        %v627 = vld [vmem:[%s118 + $0xf40] sm:$0xff]
        %v628 = vld [vmem:[%s118 + $0xf48] sm:$0xff]
        %v629 = vld [vmem:[%s118 + $0xf50] sm:$0xff]
        %v630 = vld [vmem:[%s118 + $0xf58] sm:$0xff]
        %v631 = vld [vmem:[%s118 + $0xf60] sm:$0xff]
        %v632 = vld [vmem:[%s118 + $0xf68] sm:$0xff]
        %v633 = vld [vmem:[%s118 + $0xf70] sm:$0xff]
        %v634 = vld [vmem:[%s118 + $0xf78] sm:$0xff]
        %v635 = vld [vmem:[%s118 + $0xf80] sm:$0xff]
        %v636 = vld [vmem:[%s118 + $0xf88] sm:$0xff]
        %v637 = vld [vmem:[%s118 + $0xf90] sm:$0xff]
        %v638 = vld [vmem:[%s118 + $0xf98] sm:$0xff]
        %v639 = vld [vmem:[%s118 + $0xfa0] sm:$0xff]
        %v640 = vld [vmem:[%s118 + $0xfa8] sm:$0xff]
        %v641 = vld [vmem:[%s118 + $0xfb0] sm:$0xff]
        %v642 = vld [vmem:[%s118 + $0xfb8] sm:$0xff]
        %v643 = vld [vmem:[%s118 + $0xfc0] sm:$0xff]
        %v644 = vld [vmem:[%s118 + $0xfc8] sm:$0xff]
        %v645 = vld [vmem:[%s118 + $0xfd0] sm:$0xff]
        %v646 = vld [vmem:[%s118 + $0xfd8] sm:$0xff]
        %v647 = vld [vmem:[%s118 + $0xfe0] sm:$0xff]
        %v648 = vld [vmem:[%s118 + $0xfe8] sm:$0xff]
        %v649 = vld [vmem:[%s118 + $0xff0] sm:$0xff]
        %v650 = vld [vmem:[%s118 + $0xff8] sm:$0xff]
        %v651 = vld [vmem:[%s118 + $0x1000] sm:$0xff]
        %v652 = vld [vmem:[%s118 + $0x1008] sm:$0xff]
        %v653 = vld [vmem:[%s118 + $0x1010] sm:$0xff]
        %v654 = vld [vmem:[%s118 + $0x1018] sm:$0xff]
        %v655 = vld [vmem:[%s118 + $0x1020] sm:$0xff]
        %v656 = vld [vmem:[%s118 + $0x1028] sm:$0xff]
        %v657 = vld [vmem:[%s118 + $0x1030] sm:$0xff]
        %v658 = vld [vmem:[%s118 + $0x1038] sm:$0xff]
        %v659 = vld [vmem:[%s118 + $0x1040] sm:$0xff]
        %v660 = vld [vmem:[%s118 + $0x1048] sm:$0xff]
        %v661 = vld [vmem:[%s118 + $0x1050] sm:$0xff]
        %v662 = vld [vmem:[%s118 + $0x1058] sm:$0xff]
        %v663 = vld [vmem:[%s118 + $0x1060] sm:$0xff]
        %v664 = vld [vmem:[%s118 + $0x1068] sm:$0xff]
        %v665 = vld [vmem:[%s118 + $0x1070] sm:$0xff]
        %v666 = vld [vmem:[%s118 + $0x1078] sm:$0xff]
        %v667 = vld [vmem:[%s118 + $0x1080] sm:$0xff]
        %v668 = vld [vmem:[%s118 + $0x1088] sm:$0xff]
        %v669 = vld [vmem:[%s118 + $0x1090] sm:$0xff]
        %v670 = vld [vmem:[%s118 + $0x1098] sm:$0xff]
        %v671 = vld [vmem:[%s118 + $0x10a0] sm:$0xff]
        %v672 = vld [vmem:[%s118 + $0x10a8] sm:$0xff]
        %v673 = vld [vmem:[%s118 + $0x10b0] sm:$0xff]
        %v674 = vld [vmem:[%s118 + $0x10b8] sm:$0xff]
        %v675 = vld [vmem:[%s118 + $0x10c0] sm:$0xff]
        %v676 = vld [vmem:[%s118 + $0x10c8] sm:$0xff]
        %v677 = vld [vmem:[%s118 + $0x10d0] sm:$0xff]
        %v678 = vld [vmem:[%s118 + $0x10d8] sm:$0xff]
        %v679 = vld [vmem:[%s118 + $0x10e0] sm:$0xff]
        %v680 = vld [vmem:[%s118 + $0x10e8] sm:$0xff]
        %v681 = vld [vmem:[%s118 + $0x10f0] sm:$0xff]
        %v682 = vld [vmem:[%s118 + $0x10f8] sm:$0xff]
        %v683 = vld [vmem:[%s118 + $0x1100] sm:$0xff]
        %v684 = vld [vmem:[%s118 + $0x1108] sm:$0xff]
        %v685 = vld [vmem:[%s118 + $0x1110] sm:$0xff]
        %v686 = vld [vmem:[%s118 + $0x1118] sm:$0xff]
        %v687 = vld [vmem:[%s118 + $0x1120] sm:$0xff]
        %v688 = vld [vmem:[%s118 + $0x1128] sm:$0xff]
        %v689 = vld [vmem:[%s118 + $0x1130] sm:$0xff]
        %v690 = vld [vmem:[%s118 + $0x1138] sm:$0xff]
        %v691 = vld [vmem:[%s118 + $0x1140] sm:$0xff]
        %v692 = vld [vmem:[%s118 + $0x1148] sm:$0xff]
        %v693 = vld [vmem:[%s118 + $0x1150] sm:$0xff]
        %v694 = vld [vmem:[%s118 + $0x1158] sm:$0xff]
        %v695 = vld [vmem:[%s118 + $0x1160] sm:$0xff]
        %v696 = vld [vmem:[%s118 + $0x1168] sm:$0xff]
        %v697 = vld [vmem:[%s118 + $0x1170] sm:$0xff]
        %v698 = vld [vmem:[%s118 + $0x1178] sm:$0xff]
        %v699 = vld [vmem:[%s118 + $0x1180] sm:$0xff]
        %v700 = vld [vmem:[%s118 + $0x1188] sm:$0xff]
        %v701 = vld [vmem:[%s118 + $0x1190] sm:$0xff]
        %v702 = vld [vmem:[%s118 + $0x1198] sm:$0xff]
        %v703 = vld [vmem:[%s118 + $0x11a0] sm:$0xff]
        %v704 = vld [vmem:[%s118 + $0x11a8] sm:$0xff]
        %v705 = vld [vmem:[%s118 + $0x11b0] sm:$0xff]
        %v706 = vld [vmem:[%s118 + $0x11b8] sm:$0xff]
        %v707 = vld [vmem:[%s118 + $0x11c0] sm:$0xff]
        %v708 = vld [vmem:[%s118 + $0x11c8] sm:$0xff]
        %v709 = vld [vmem:[%s118 + $0x11d0] sm:$0xff]
        %v710 = vld [vmem:[%s118 + $0x11d8] sm:$0xff]
        %v711 = vld [vmem:[%s118 + $0x11e0] sm:$0xff]
        %v712 = vld [vmem:[%s118 + $0x11e8] sm:$0xff]
        %v713 = vld [vmem:[%s118 + $0x11f0] sm:$0xff]
        %v714 = vld [vmem:[%s118 + $0x11f8] sm:$0xff]
        %v715 = vld [vmem:[%s118 + $0x1200] sm:$0xff]
        %v716 = vld [vmem:[%s118 + $0x1208] sm:$0xff]
        %v717 = vld [vmem:[%s118 + $0x1210] sm:$0xff]
        %v718 = vld [vmem:[%s118 + $0x1218] sm:$0xff]
        %v719 = vld [vmem:[%s118 + $0x1220] sm:$0xff]
        %v720 = vld [vmem:[%s118 + $0x1228] sm:$0xff]
        %v721 = vld [vmem:[%s118 + $0x1230] sm:$0xff]
        %v722 = vld [vmem:[%s118 + $0x1238] sm:$0xff]
        %v723 = vld [vmem:[%s118 + $0x1240] sm:$0xff]
        %v724 = vld [vmem:[%s118 + $0x1248] sm:$0xff]
        %v725 = vld [vmem:[%s118 + $0x1250] sm:$0xff]
        %v726 = vld [vmem:[%s118 + $0x1258] sm:$0xff]
        %v727 = vld [vmem:[%s118 + $0x1260] sm:$0xff]
        %v728 = vld [vmem:[%s118 + $0x1268] sm:$0xff]
        %v729 = vld [vmem:[%s118 + $0x1270] sm:$0xff]
        %v730 = vld [vmem:[%s118 + $0x1278] sm:$0xff]
        %v731 = vld [vmem:[%s118 + $0x1280] sm:$0xff]
        %v732 = vld [vmem:[%s118 + $0x1288] sm:$0xff]
        %v733 = vld [vmem:[%s118 + $0x1290] sm:$0xff]
        %v734 = vld [vmem:[%s118 + $0x1298] sm:$0xff]
        %v735 = vld [vmem:[%s118 + $0x12a0] sm:$0xff]
        %v736 = vld [vmem:[%s118 + $0x12a8] sm:$0xff]
        %v737 = vld [vmem:[%s118 + $0x12b0] sm:$0xff]
        %v738 = vld [vmem:[%s118 + $0x12b8] sm:$0xff]
        %vm739 = vcmp.ne.s32.totalorder %v139, 0
        %vm740 = vcmp.ne.s32.totalorder %v140, 0
        %vm741 = vcmp.ne.s32.totalorder %v141, 0
        %vm742 = vcmp.ne.s32.totalorder %v142, 0
        %vm743 = vcmp.ne.s32.totalorder %v143, 0
        %vm744 = vcmp.ne.s32.totalorder %v144, 0
        %vm745 = vcmp.ne.s32.totalorder %v145, 0
        %vm746 = vcmp.ne.s32.totalorder %v146, 0
        %vm747 = vcmp.ne.s32.totalorder %v147, 0
        %vm748 = vcmp.ne.s32.totalorder %v148, 0
        %vm749 = vcmp.ne.s32.totalorder %v149, 0
        %vm750 = vcmp.ne.s32.totalorder %v150, 0
        %vm751 = vcmp.ne.s32.totalorder %v151, 0
        %vm752 = vcmp.ne.s32.totalorder %v152, 0
        %vm753 = vcmp.ne.s32.totalorder %v153, 0
        %vm754 = vcmp.ne.s32.totalorder %v154, 0
        %vm755 = vcmp.ne.s32.totalorder %v155, 0
        %vm756 = vcmp.ne.s32.totalorder %v156, 0
        %vm757 = vcmp.ne.s32.totalorder %v157, 0
        %vm758 = vcmp.ne.s32.totalorder %v158, 0
        %vm759 = vcmp.ne.s32.totalorder %v159, 0
        %vm760 = vcmp.ne.s32.totalorder %v160, 0
        %vm761 = vcmp.ne.s32.totalorder %v161, 0
        %vm762 = vcmp.ne.s32.totalorder %v162, 0
        %vm763 = vcmp.ne.s32.totalorder %v163, 0
        %vm764 = vcmp.ne.s32.totalorder %v164, 0
        %vm765 = vcmp.ne.s32.totalorder %v165, 0
        %vm766 = vcmp.ne.s32.totalorder %v166, 0
        %vm767 = vcmp.ne.s32.totalorder %v167, 0
        %vm768 = vcmp.ne.s32.totalorder %v168, 0
        %vm769 = vcmp.ne.s32.totalorder %v169, 0
        %vm770 = vcmp.ne.s32.totalorder %v170, 0
        %vm771 = vcmp.ne.s32.totalorder %v171, 0
        %vm772 = vcmp.ne.s32.totalorder %v172, 0
        %vm773 = vcmp.ne.s32.totalorder %v173, 0
        %vm774 = vcmp.ne.s32.totalorder %v174, 0
        %vm775 = vcmp.ne.s32.totalorder %v175, 0
        %vm776 = vcmp.ne.s32.totalorder %v176, 0
        %vm777 = vcmp.ne.s32.totalorder %v177, 0
        %vm778 = vcmp.ne.s32.totalorder %v178, 0
        %vm779 = vcmp.ne.s32.totalorder %v179, 0
        %vm780 = vcmp.ne.s32.totalorder %v180, 0
        %vm781 = vcmp.ne.s32.totalorder %v181, 0
        %vm782 = vcmp.ne.s32.totalorder %v182, 0
        %vm783 = vcmp.ne.s32.totalorder %v183, 0
        %vm784 = vcmp.ne.s32.totalorder %v184, 0
        %vm785 = vcmp.ne.s32.totalorder %v185, 0
        %vm786 = vcmp.ne.s32.totalorder %v186, 0
        %vm787 = vcmp.ne.s32.totalorder %v187, 0
        %vm788 = vcmp.ne.s32.totalorder %v188, 0
        %vm789 = vcmp.ne.s32.totalorder %v189, 0
        %vm790 = vcmp.ne.s32.totalorder %v190, 0
        %vm791 = vcmp.ne.s32.totalorder %v191, 0
        %vm792 = vcmp.ne.s32.totalorder %v192, 0
        %vm793 = vcmp.ne.s32.totalorder %v193, 0
        %vm794 = vcmp.ne.s32.totalorder %v194, 0
        %vm795 = vcmp.ne.s32.totalorder %v195, 0
        %vm796 = vcmp.ne.s32.totalorder %v196, 0
        %vm797 = vcmp.ne.s32.totalorder %v197, 0
        %vm798 = vcmp.ne.s32.totalorder %v198, 0
        %vm799 = vcmp.ne.s32.totalorder %v199, 0
        %vm800 = vcmp.ne.s32.totalorder %v200, 0
        %vm801 = vcmp.ne.s32.totalorder %v201, 0
        %vm802 = vcmp.ne.s32.totalorder %v202, 0
        %vm803 = vcmp.ne.s32.totalorder %v203, 0
        %vm804 = vcmp.ne.s32.totalorder %v204, 0
        %vm805 = vcmp.ne.s32.totalorder %v205, 0
        %vm806 = vcmp.ne.s32.totalorder %v206, 0
        %vm807 = vcmp.ne.s32.totalorder %v207, 0
        %vm808 = vcmp.ne.s32.totalorder %v208, 0
        %vm809 = vcmp.ne.s32.totalorder %v209, 0
        %vm810 = vcmp.ne.s32.totalorder %v210, 0
        %vm811 = vcmp.ne.s32.totalorder %v211, 0
        %vm812 = vcmp.ne.s32.totalorder %v212, 0
        %vm813 = vcmp.ne.s32.totalorder %v213, 0
        %vm814 = vcmp.ne.s32.totalorder %v214, 0
        %vm815 = vcmp.ne.s32.totalorder %v215, 0
        %vm816 = vcmp.ne.s32.totalorder %v216, 0
        %vm817 = vcmp.ne.s32.totalorder %v217, 0
        %vm818 = vcmp.ne.s32.totalorder %v218, 0
        %vm819 = vcmp.ne.s32.totalorder %v219, 0
        %vm820 = vcmp.ne.s32.totalorder %v220, 0
        %vm821 = vcmp.ne.s32.totalorder %v221, 0
        %vm822 = vcmp.ne.s32.totalorder %v222, 0
        %vm823 = vcmp.ne.s32.totalorder %v223, 0
        %vm824 = vcmp.ne.s32.totalorder %v224, 0
        %vm825 = vcmp.ne.s32.totalorder %v225, 0
        %vm826 = vcmp.ne.s32.totalorder %v226, 0
        %vm827 = vcmp.ne.s32.totalorder %v227, 0
        %vm828 = vcmp.ne.s32.totalorder %v228, 0
        %vm829 = vcmp.ne.s32.totalorder %v229, 0
        %vm830 = vcmp.ne.s32.totalorder %v230, 0
        %vm831 = vcmp.ne.s32.totalorder %v231, 0
        %vm832 = vcmp.ne.s32.totalorder %v232, 0
        %vm833 = vcmp.ne.s32.totalorder %v233, 0
        %vm834 = vcmp.ne.s32.totalorder %v234, 0
        %vm835 = vcmp.ne.s32.totalorder %v235, 0
        %vm836 = vcmp.ne.s32.totalorder %v236, 0
        %vm837 = vcmp.ne.s32.totalorder %v237, 0
        %vm838 = vcmp.ne.s32.totalorder %v238, 0
        %vm839 = vcmp.ne.s32.totalorder %v239, 0
        %vm840 = vcmp.ne.s32.totalorder %v240, 0
        %vm841 = vcmp.ne.s32.totalorder %v241, 0
        %vm842 = vcmp.ne.s32.totalorder %v242, 0
        %vm843 = vcmp.ne.s32.totalorder %v243, 0
        %vm844 = vcmp.ne.s32.totalorder %v244, 0
        %vm845 = vcmp.ne.s32.totalorder %v245, 0
        %vm846 = vcmp.ne.s32.totalorder %v246, 0
        %vm847 = vcmp.ne.s32.totalorder %v247, 0
        %vm848 = vcmp.ne.s32.totalorder %v248, 0
        %vm849 = vcmp.ne.s32.totalorder %v249, 0
        %vm850 = vcmp.ne.s32.totalorder %v250, 0
        %vm851 = vcmp.ne.s32.totalorder %v251, 0
        %vm852 = vcmp.ne.s32.totalorder %v252, 0
        %vm853 = vcmp.ne.s32.totalorder %v253, 0
        %vm854 = vcmp.ne.s32.totalorder %v254, 0
        %vm855 = vcmp.ne.s32.totalorder %v255, 0
        %vm856 = vcmp.ne.s32.totalorder %v256, 0
        %vm857 = vcmp.ne.s32.totalorder %v257, 0
        %vm858 = vcmp.ne.s32.totalorder %v258, 0
        %vm859 = vcmp.ne.s32.totalorder %v259, 0
        %vm860 = vcmp.ne.s32.totalorder %v260, 0
        %vm861 = vcmp.ne.s32.totalorder %v261, 0
        %vm862 = vcmp.ne.s32.totalorder %v262, 0
        %vm863 = vcmp.ne.s32.totalorder %v263, 0
        %vm864 = vcmp.ne.s32.totalorder %v264, 0
        %vm865 = vcmp.ne.s32.totalorder %v265, 0
        %vm866 = vcmp.ne.s32.totalorder %v266, 0
        %vm867 = vcmp.ne.s32.totalorder %v267, 0
        %vm868 = vcmp.ne.s32.totalorder %v268, 0
        %vm869 = vcmp.ne.s32.totalorder %v269, 0
        %vm870 = vcmp.ne.s32.totalorder %v270, 0
        %vm871 = vcmp.ne.s32.totalorder %v271, 0
        %vm872 = vcmp.ne.s32.totalorder %v272, 0
        %vm873 = vcmp.ne.s32.totalorder %v273, 0
        %vm874 = vcmp.ne.s32.totalorder %v274, 0
        %vm875 = vcmp.ne.s32.totalorder %v275, 0
        %vm876 = vcmp.ne.s32.totalorder %v276, 0
        %vm877 = vcmp.ne.s32.totalorder %v277, 0
        %vm878 = vcmp.ne.s32.totalorder %v278, 0
        %vm879 = vcmp.ne.s32.totalorder %v279, 0
        %vm880 = vcmp.ne.s32.totalorder %v280, 0
        %vm881 = vcmp.ne.s32.totalorder %v281, 0
        %vm882 = vcmp.ne.s32.totalorder %v282, 0
        %vm883 = vcmp.ne.s32.totalorder %v283, 0
        %vm884 = vcmp.ne.s32.totalorder %v284, 0
        %vm885 = vcmp.ne.s32.totalorder %v285, 0
        %vm886 = vcmp.ne.s32.totalorder %v286, 0
        %vm887 = vcmp.ne.s32.totalorder %v287, 0
        %vm888 = vcmp.ne.s32.totalorder %v288, 0
        %vm889 = vcmp.ne.s32.totalorder %v289, 0
        %vm890 = vcmp.ne.s32.totalorder %v290, 0
        %vm891 = vcmp.ne.s32.totalorder %v291, 0
        %vm892 = vcmp.ne.s32.totalorder %v292, 0
        %vm893 = vcmp.ne.s32.totalorder %v293, 0
        %vm894 = vcmp.ne.s32.totalorder %v294, 0
        %vm895 = vcmp.ne.s32.totalorder %v295, 0
        %vm896 = vcmp.ne.s32.totalorder %v296, 0
        %vm897 = vcmp.ne.s32.totalorder %v297, 0
        %vm898 = vcmp.ne.s32.totalorder %v298, 0
        %vm899 = vcmp.ne.s32.totalorder %v299, 0
        %vm900 = vcmp.ne.s32.totalorder %v300, 0
        %vm901 = vcmp.ne.s32.totalorder %v301, 0
        %vm902 = vcmp.ne.s32.totalorder %v302, 0
        %vm903 = vcmp.ne.s32.totalorder %v303, 0
        %vm904 = vcmp.ne.s32.totalorder %v304, 0
        %vm905 = vcmp.ne.s32.totalorder %v305, 0
        %vm906 = vcmp.ne.s32.totalorder %v306, 0
        %vm907 = vcmp.ne.s32.totalorder %v307, 0
        %vm908 = vcmp.ne.s32.totalorder %v308, 0
        %vm909 = vcmp.ne.s32.totalorder %v309, 0
        %vm910 = vcmp.ne.s32.totalorder %v310, 0
        %vm911 = vcmp.ne.s32.totalorder %v311, 0
        %vm912 = vcmp.ne.s32.totalorder %v312, 0
        %vm913 = vcmp.ne.s32.totalorder %v313, 0
        %vm914 = vcmp.ne.s32.totalorder %v314, 0
        %vm915 = vcmp.ne.s32.totalorder %v315, 0
        %vm916 = vcmp.ne.s32.totalorder %v316, 0
        %vm917 = vcmp.ne.s32.totalorder %v317, 0
        %vm918 = vcmp.ne.s32.totalorder %v318, 0
        %vm919 = vcmp.ne.s32.totalorder %v319, 0
        %vm920 = vcmp.ne.s32.totalorder %v320, 0
        %vm921 = vcmp.ne.s32.totalorder %v321, 0
        %vm922 = vcmp.ne.s32.totalorder %v322, 0
        %vm923 = vcmp.ne.s32.totalorder %v323, 0
        %vm924 = vcmp.ne.s32.totalorder %v324, 0
        %vm925 = vcmp.ne.s32.totalorder %v325, 0
        %vm926 = vcmp.ne.s32.totalorder %v326, 0
        %vm927 = vcmp.ne.s32.totalorder %v327, 0
        %vm928 = vcmp.ne.s32.totalorder %v328, 0
        %vm929 = vcmp.ne.s32.totalorder %v329, 0
        %vm930 = vcmp.ne.s32.totalorder %v330, 0
        %vm931 = vcmp.ne.s32.totalorder %v331, 0
        %vm932 = vcmp.ne.s32.totalorder %v332, 0
        %vm933 = vcmp.ne.s32.totalorder %v333, 0
        %vm934 = vcmp.ne.s32.totalorder %v334, 0
        %vm935 = vcmp.ne.s32.totalorder %v335, 0
        %vm936 = vcmp.ne.s32.totalorder %v336, 0
        %vm937 = vcmp.ne.s32.totalorder %v337, 0
        %vm938 = vcmp.ne.s32.totalorder %v338, 0
        %vm939 = vcmp.ne.s32.totalorder %v339, 0
        %vm940 = vcmp.ne.s32.totalorder %v340, 0
        %vm941 = vcmp.ne.s32.totalorder %v341, 0
        %vm942 = vcmp.ne.s32.totalorder %v342, 0
        %vm943 = vcmp.ne.s32.totalorder %v343, 0
        %vm944 = vcmp.ne.s32.totalorder %v344, 0
        %vm945 = vcmp.ne.s32.totalorder %v345, 0
        %vm946 = vcmp.ne.s32.totalorder %v346, 0
        %vm947 = vcmp.ne.s32.totalorder %v347, 0
        %vm948 = vcmp.ne.s32.totalorder %v348, 0
        %vm949 = vcmp.ne.s32.totalorder %v349, 0
        %vm950 = vcmp.ne.s32.totalorder %v350, 0
        %vm951 = vcmp.ne.s32.totalorder %v351, 0
        %vm952 = vcmp.ne.s32.totalorder %v352, 0
        %vm953 = vcmp.ne.s32.totalorder %v353, 0
        %vm954 = vcmp.ne.s32.totalorder %v354, 0
        %vm955 = vcmp.ne.s32.totalorder %v355, 0
        %vm956 = vcmp.ne.s32.totalorder %v356, 0
        %vm957 = vcmp.ne.s32.totalorder %v357, 0
        %vm958 = vcmp.ne.s32.totalorder %v358, 0
        %vm959 = vcmp.ne.s32.totalorder %v359, 0
        %vm960 = vcmp.ne.s32.totalorder %v360, 0
        %vm961 = vcmp.ne.s32.totalorder %v361, 0
        %vm962 = vcmp.ne.s32.totalorder %v362, 0
        %vm963 = vcmp.ne.s32.totalorder %v363, 0
        %vm964 = vcmp.ne.s32.totalorder %v364, 0
        %vm965 = vcmp.ne.s32.totalorder %v365, 0
        %vm966 = vcmp.ne.s32.totalorder %v366, 0
        %vm967 = vcmp.ne.s32.totalorder %v367, 0
        %vm968 = vcmp.ne.s32.totalorder %v368, 0
        %vm969 = vcmp.ne.s32.totalorder %v369, 0
        %vm970 = vcmp.ne.s32.totalorder %v370, 0
        %vm971 = vcmp.ne.s32.totalorder %v371, 0
        %vm972 = vcmp.ne.s32.totalorder %v372, 0
        %vm973 = vcmp.ne.s32.totalorder %v373, 0
        %vm974 = vcmp.ne.s32.totalorder %v374, 0
        %vm975 = vcmp.ne.s32.totalorder %v375, 0
        %vm976 = vcmp.ne.s32.totalorder %v376, 0
        %vm977 = vcmp.ne.s32.totalorder %v377, 0
        %vm978 = vcmp.ne.s32.totalorder %v378, 0
        %vm979 = vcmp.ne.s32.totalorder %v379, 0
        %vm980 = vcmp.ne.s32.totalorder %v380, 0
        %vm981 = vcmp.ne.s32.totalorder %v381, 0
        %vm982 = vcmp.ne.s32.totalorder %v382, 0
        %vm983 = vcmp.ne.s32.totalorder %v383, 0
        %vm984 = vcmp.ne.s32.totalorder %v384, 0
        %vm985 = vcmp.ne.s32.totalorder %v385, 0
        %vm986 = vcmp.ne.s32.totalorder %v386, 0
        %vm987 = vcmp.ne.s32.totalorder %v387, 0
        %vm988 = vcmp.ne.s32.totalorder %v388, 0
        %vm989 = vcmp.ne.s32.totalorder %v389, 0
        %vm990 = vcmp.ne.s32.totalorder %v390, 0
        %vm991 = vcmp.ne.s32.totalorder %v391, 0
        %vm992 = vcmp.ne.s32.totalorder %v392, 0
        %vm993 = vcmp.ne.s32.totalorder %v393, 0
        %vm994 = vcmp.ne.s32.totalorder %v394, 0
        %vm995 = vcmp.ne.s32.totalorder %v395, 0
        %vm996 = vcmp.ne.s32.totalorder %v396, 0
        %vm997 = vcmp.ne.s32.totalorder %v397, 0
        %vm998 = vcmp.ne.s32.totalorder %v398, 0
        %vm999 = vcmp.ne.s32.totalorder %v399, 0
        %vm1000 = vcmp.ne.s32.totalorder %v400, 0
        %vm1001 = vcmp.ne.s32.totalorder %v401, 0
        %vm1002 = vcmp.ne.s32.totalorder %v402, 0
        %vm1003 = vcmp.ne.s32.totalorder %v403, 0
        %vm1004 = vcmp.ne.s32.totalorder %v404, 0
        %vm1005 = vcmp.ne.s32.totalorder %v405, 0
        %vm1006 = vcmp.ne.s32.totalorder %v406, 0
        %vm1007 = vcmp.ne.s32.totalorder %v407, 0
        %vm1008 = vcmp.ne.s32.totalorder %v408, 0
        %vm1009 = vcmp.ne.s32.totalorder %v409, 0
        %vm1010 = vcmp.ne.s32.totalorder %v410, 0
        %vm1011 = vcmp.ne.s32.totalorder %v411, 0
        %vm1012 = vcmp.ne.s32.totalorder %v412, 0
        %vm1013 = vcmp.ne.s32.totalorder %v413, 0
        %vm1014 = vcmp.ne.s32.totalorder %v414, 0
        %vm1015 = vcmp.ne.s32.totalorder %v415, 0
        %vm1016 = vcmp.ne.s32.totalorder %v416, 0
        %vm1017 = vcmp.ne.s32.totalorder %v417, 0
        %vm1018 = vcmp.ne.s32.totalorder %v418, 0
        %vm1019 = vcmp.ne.s32.totalorder %v419, 0
        %vm1020 = vcmp.ne.s32.totalorder %v420, 0
        %vm1021 = vcmp.ne.s32.totalorder %v421, 0
        %vm1022 = vcmp.ne.s32.totalorder %v422, 0
        %vm1023 = vcmp.ne.s32.totalorder %v423, 0
        %vm1024 = vcmp.ne.s32.totalorder %v424, 0
        %vm1025 = vcmp.ne.s32.totalorder %v425, 0
        %vm1026 = vcmp.ne.s32.totalorder %v426, 0
        %vm1027 = vcmp.ne.s32.totalorder %v427, 0
        %vm1028 = vcmp.ne.s32.totalorder %v428, 0
        %vm1029 = vcmp.ne.s32.totalorder %v429, 0
        %vm1030 = vcmp.ne.s32.totalorder %v430, 0
        %vm1031 = vcmp.ne.s32.totalorder %v431, 0
        %vm1032 = vcmp.ne.s32.totalorder %v432, 0
        %vm1033 = vcmp.ne.s32.totalorder %v433, 0
        %vm1034 = vcmp.ne.s32.totalorder %v434, 0
        %vm1035 = vcmp.ne.s32.totalorder %v435, 0
        %vm1036 = vcmp.ne.s32.totalorder %v436, 0
        %vm1037 = vcmp.ne.s32.totalorder %v437, 0
        %vm1038 = vcmp.ne.s32.totalorder %v438, 0
        %vm1039 = vcmp.ne.s32.totalorder %v439, 0
        %vm1040 = vcmp.ne.s32.totalorder %v440, 0
        %vm1041 = vcmp.ne.s32.totalorder %v441, 0
        %vm1042 = vcmp.ne.s32.totalorder %v442, 0
        %vm1043 = vcmp.ne.s32.totalorder %v443, 0
        %vm1044 = vcmp.ne.s32.totalorder %v444, 0
        %vm1045 = vcmp.ne.s32.totalorder %v445, 0
        %vm1046 = vcmp.ne.s32.totalorder %v446, 0
        %vm1047 = vcmp.ne.s32.totalorder %v447, 0
        %vm1048 = vcmp.ne.s32.totalorder %v448, 0
        %vm1049 = vcmp.ne.s32.totalorder %v449, 0
        %vm1050 = vcmp.ne.s32.totalorder %v450, 0
        %vm1051 = vcmp.ne.s32.totalorder %v451, 0
        %vm1052 = vcmp.ne.s32.totalorder %v452, 0
        %vm1053 = vcmp.ne.s32.totalorder %v453, 0
        %vm1054 = vcmp.ne.s32.totalorder %v454, 0
        %vm1055 = vcmp.ne.s32.totalorder %v455, 0
        %vm1056 = vcmp.ne.s32.totalorder %v456, 0
        %vm1057 = vcmp.ne.s32.totalorder %v457, 0
        %vm1058 = vcmp.ne.s32.totalorder %v458, 0
        %vm1059 = vcmp.ne.s32.totalorder %v459, 0
        %vm1060 = vcmp.ne.s32.totalorder %v460, 0
        %vm1061 = vcmp.ne.s32.totalorder %v461, 0
        %vm1062 = vcmp.ne.s32.totalorder %v462, 0
        %vm1063 = vcmp.ne.s32.totalorder %v463, 0
        %vm1064 = vcmp.ne.s32.totalorder %v464, 0
        %vm1065 = vcmp.ne.s32.totalorder %v465, 0
        %vm1066 = vcmp.ne.s32.totalorder %v466, 0
        %vm1067 = vcmp.ne.s32.totalorder %v467, 0
        %vm1068 = vcmp.ne.s32.totalorder %v468, 0
        %vm1069 = vcmp.ne.s32.totalorder %v469, 0
        %vm1070 = vcmp.ne.s32.totalorder %v470, 0
        %vm1071 = vcmp.ne.s32.totalorder %v471, 0
        %vm1072 = vcmp.ne.s32.totalorder %v472, 0
        %vm1073 = vcmp.ne.s32.totalorder %v473, 0
        %vm1074 = vcmp.ne.s32.totalorder %v474, 0
        %vm1075 = vcmp.ne.s32.totalorder %v475, 0
        %vm1076 = vcmp.ne.s32.totalorder %v476, 0
        %vm1077 = vcmp.ne.s32.totalorder %v477, 0
        %vm1078 = vcmp.ne.s32.totalorder %v478, 0
        %vm1079 = vcmp.ne.s32.totalorder %v479, 0
        %vm1080 = vcmp.ne.s32.totalorder %v480, 0
        %vm1081 = vcmp.ne.s32.totalorder %v481, 0
        %vm1082 = vcmp.ne.s32.totalorder %v482, 0
        %vm1083 = vcmp.ne.s32.totalorder %v483, 0
        %vm1084 = vcmp.ne.s32.totalorder %v484, 0
        %vm1085 = vcmp.ne.s32.totalorder %v485, 0
        %vm1086 = vcmp.ne.s32.totalorder %v486, 0
        %vm1087 = vcmp.ne.s32.totalorder %v487, 0
        %vm1088 = vcmp.ne.s32.totalorder %v488, 0
        %vm1089 = vcmp.ne.s32.totalorder %v489, 0
        %vm1090 = vcmp.ne.s32.totalorder %v490, 0
        %vm1091 = vcmp.ne.s32.totalorder %v491, 0
        %vm1092 = vcmp.ne.s32.totalorder %v492, 0
        %vm1093 = vcmp.ne.s32.totalorder %v493, 0
        %vm1094 = vcmp.ne.s32.totalorder %v494, 0
        %vm1095 = vcmp.ne.s32.totalorder %v495, 0
        %vm1096 = vcmp.ne.s32.totalorder %v496, 0
        %vm1097 = vcmp.ne.s32.totalorder %v497, 0
        %vm1098 = vcmp.ne.s32.totalorder %v498, 0
        %vm1099 = vcmp.ne.s32.totalorder %v499, 0
        %vm1100 = vcmp.ne.s32.totalorder %v500, 0
        %vm1101 = vcmp.ne.s32.totalorder %v501, 0
        %vm1102 = vcmp.ne.s32.totalorder %v502, 0
        %vm1103 = vcmp.ne.s32.totalorder %v503, 0
        %vm1104 = vcmp.ne.s32.totalorder %v504, 0
        %vm1105 = vcmp.ne.s32.totalorder %v505, 0
        %vm1106 = vcmp.ne.s32.totalorder %v506, 0
        %vm1107 = vcmp.ne.s32.totalorder %v507, 0
        %vm1108 = vcmp.ne.s32.totalorder %v508, 0
        %vm1109 = vcmp.ne.s32.totalorder %v509, 0
        %vm1110 = vcmp.ne.s32.totalorder %v510, 0
        %vm1111 = vcmp.ne.s32.totalorder %v511, 0
        %vm1112 = vcmp.ne.s32.totalorder %v512, 0
        %vm1113 = vcmp.ne.s32.totalorder %v513, 0
        %vm1114 = vcmp.ne.s32.totalorder %v514, 0
        %vm1115 = vcmp.ne.s32.totalorder %v515, 0
        %vm1116 = vcmp.ne.s32.totalorder %v516, 0
        %vm1117 = vcmp.ne.s32.totalorder %v517, 0
        %vm1118 = vcmp.ne.s32.totalorder %v518, 0
        %vm1119 = vcmp.ne.s32.totalorder %v519, 0
        %vm1120 = vcmp.ne.s32.totalorder %v520, 0
        %vm1121 = vcmp.ne.s32.totalorder %v521, 0
        %vm1122 = vcmp.ne.s32.totalorder %v522, 0
        %vm1123 = vcmp.ne.s32.totalorder %v523, 0
        %vm1124 = vcmp.ne.s32.totalorder %v524, 0
        %vm1125 = vcmp.ne.s32.totalorder %v525, 0
        %vm1126 = vcmp.ne.s32.totalorder %v526, 0
        %vm1127 = vcmp.ne.s32.totalorder %v527, 0
        %vm1128 = vcmp.ne.s32.totalorder %v528, 0
        %vm1129 = vcmp.ne.s32.totalorder %v529, 0
        %vm1130 = vcmp.ne.s32.totalorder %v530, 0
        %vm1131 = vcmp.ne.s32.totalorder %v531, 0
        %vm1132 = vcmp.ne.s32.totalorder %v532, 0
        %vm1133 = vcmp.ne.s32.totalorder %v533, 0
        %vm1134 = vcmp.ne.s32.totalorder %v534, 0
        %vm1135 = vcmp.ne.s32.totalorder %v535, 0
        %vm1136 = vcmp.ne.s32.totalorder %v536, 0
        %vm1137 = vcmp.ne.s32.totalorder %v537, 0
        %vm1138 = vcmp.ne.s32.totalorder %v538, 0
        %vm1139 = vcmp.ne.s32.totalorder %v539, 0
        %vm1140 = vcmp.ne.s32.totalorder %v540, 0
        %vm1141 = vcmp.ne.s32.totalorder %v541, 0
        %vm1142 = vcmp.ne.s32.totalorder %v542, 0
        %vm1143 = vcmp.ne.s32.totalorder %v543, 0
        %vm1144 = vcmp.ne.s32.totalorder %v544, 0
        %vm1145 = vcmp.ne.s32.totalorder %v545, 0
        %vm1146 = vcmp.ne.s32.totalorder %v546, 0
        %vm1147 = vcmp.ne.s32.totalorder %v547, 0
        %vm1148 = vcmp.ne.s32.totalorder %v548, 0
        %vm1149 = vcmp.ne.s32.totalorder %v549, 0
        %vm1150 = vcmp.ne.s32.totalorder %v550, 0
        %vm1151 = vcmp.ne.s32.totalorder %v551, 0
        %vm1152 = vcmp.ne.s32.totalorder %v552, 0
        %vm1153 = vcmp.ne.s32.totalorder %v553, 0
        %vm1154 = vcmp.ne.s32.totalorder %v554, 0
        %vm1155 = vcmp.ne.s32.totalorder %v555, 0
        %vm1156 = vcmp.ne.s32.totalorder %v556, 0
        %vm1157 = vcmp.ne.s32.totalorder %v557, 0
        %vm1158 = vcmp.ne.s32.totalorder %v558, 0
        %vm1159 = vcmp.ne.s32.totalorder %v559, 0
        %vm1160 = vcmp.ne.s32.totalorder %v560, 0
        %vm1161 = vcmp.ne.s32.totalorder %v561, 0
        %vm1162 = vcmp.ne.s32.totalorder %v562, 0
        %vm1163 = vcmp.ne.s32.totalorder %v563, 0
        %vm1164 = vcmp.ne.s32.totalorder %v564, 0
        %vm1165 = vcmp.ne.s32.totalorder %v565, 0
        %vm1166 = vcmp.ne.s32.totalorder %v566, 0
        %vm1167 = vcmp.ne.s32.totalorder %v567, 0
        %vm1168 = vcmp.ne.s32.totalorder %v568, 0
        %vm1169 = vcmp.ne.s32.totalorder %v569, 0
        %vm1170 = vcmp.ne.s32.totalorder %v570, 0
        %vm1171 = vcmp.ne.s32.totalorder %v571, 0
        %vm1172 = vcmp.ne.s32.totalorder %v572, 0
        %vm1173 = vcmp.ne.s32.totalorder %v573, 0
        %vm1174 = vcmp.ne.s32.totalorder %v574, 0
        %vm1175 = vcmp.ne.s32.totalorder %v575, 0
        %vm1176 = vcmp.ne.s32.totalorder %v576, 0
        %vm1177 = vcmp.ne.s32.totalorder %v577, 0
        %vm1178 = vcmp.ne.s32.totalorder %v578, 0
        %vm1179 = vcmp.ne.s32.totalorder %v579, 0
        %vm1180 = vcmp.ne.s32.totalorder %v580, 0
        %vm1181 = vcmp.ne.s32.totalorder %v581, 0
        %vm1182 = vcmp.ne.s32.totalorder %v582, 0
        %vm1183 = vcmp.ne.s32.totalorder %v583, 0
        %vm1184 = vcmp.ne.s32.totalorder %v584, 0
        %vm1185 = vcmp.ne.s32.totalorder %v585, 0
        %vm1186 = vcmp.ne.s32.totalorder %v586, 0
        %vm1187 = vcmp.ne.s32.totalorder %v587, 0
        %vm1188 = vcmp.ne.s32.totalorder %v588, 0
        %vm1189 = vcmp.ne.s32.totalorder %v589, 0
        %vm1190 = vcmp.ne.s32.totalorder %v590, 0
        %vm1191 = vcmp.ne.s32.totalorder %v591, 0
        %vm1192 = vcmp.ne.s32.totalorder %v592, 0
        %vm1193 = vcmp.ne.s32.totalorder %v593, 0
        %vm1194 = vcmp.ne.s32.totalorder %v594, 0
        %vm1195 = vcmp.ne.s32.totalorder %v595, 0
        %vm1196 = vcmp.ne.s32.totalorder %v596, 0
        %vm1197 = vcmp.ne.s32.totalorder %v597, 0
        %vm1198 = vcmp.ne.s32.totalorder %v598, 0
        %vm1199 = vcmp.ne.s32.totalorder %v599, 0
        %vm1200 = vcmp.ne.s32.totalorder %v600, 0
        %vm1201 = vcmp.ne.s32.totalorder %v601, 0
        %vm1202 = vcmp.ne.s32.totalorder %v602, 0
        %vm1203 = vcmp.ne.s32.totalorder %v603, 0
        %vm1204 = vcmp.ne.s32.totalorder %v604, 0
        %vm1205 = vcmp.ne.s32.totalorder %v605, 0
        %vm1206 = vcmp.ne.s32.totalorder %v606, 0
        %vm1207 = vcmp.ne.s32.totalorder %v607, 0
        %vm1208 = vcmp.ne.s32.totalorder %v608, 0
        %vm1209 = vcmp.ne.s32.totalorder %v609, 0
        %vm1210 = vcmp.ne.s32.totalorder %v610, 0
        %vm1211 = vcmp.ne.s32.totalorder %v611, 0
        %vm1212 = vcmp.ne.s32.totalorder %v612, 0
        %vm1213 = vcmp.ne.s32.totalorder %v613, 0
        %vm1214 = vcmp.ne.s32.totalorder %v614, 0
        %vm1215 = vcmp.ne.s32.totalorder %v615, 0
        %vm1216 = vcmp.ne.s32.totalorder %v616, 0
        %vm1217 = vcmp.ne.s32.totalorder %v617, 0
        %vm1218 = vcmp.ne.s32.totalorder %v618, 0
        %vm1219 = vcmp.ne.s32.totalorder %v619, 0
        %vm1220 = vcmp.ne.s32.totalorder %v620, 0
        %vm1221 = vcmp.ne.s32.totalorder %v621, 0
        %vm1222 = vcmp.ne.s32.totalorder %v622, 0
        %vm1223 = vcmp.ne.s32.totalorder %v623, 0
        %vm1224 = vcmp.ne.s32.totalorder %v624, 0
        %vm1225 = vcmp.ne.s32.totalorder %v625, 0
        %vm1226 = vcmp.ne.s32.totalorder %v626, 0
        %vm1227 = vcmp.ne.s32.totalorder %v627, 0
        %vm1228 = vcmp.ne.s32.totalorder %v628, 0
        %vm1229 = vcmp.ne.s32.totalorder %v629, 0
        %vm1230 = vcmp.ne.s32.totalorder %v630, 0
        %vm1231 = vcmp.ne.s32.totalorder %v631, 0
        %vm1232 = vcmp.ne.s32.totalorder %v632, 0
        %vm1233 = vcmp.ne.s32.totalorder %v633, 0
        %vm1234 = vcmp.ne.s32.totalorder %v634, 0
        %vm1235 = vcmp.ne.s32.totalorder %v635, 0
        %vm1236 = vcmp.ne.s32.totalorder %v636, 0
        %vm1237 = vcmp.ne.s32.totalorder %v637, 0
        %vm1238 = vcmp.ne.s32.totalorder %v638, 0
        %vm1239 = vcmp.ne.s32.totalorder %v639, 0
        %vm1240 = vcmp.ne.s32.totalorder %v640, 0
        %vm1241 = vcmp.ne.s32.totalorder %v641, 0
        %vm1242 = vcmp.ne.s32.totalorder %v642, 0
        %vm1243 = vcmp.ne.s32.totalorder %v643, 0
        %vm1244 = vcmp.ne.s32.totalorder %v644, 0
        %vm1245 = vcmp.ne.s32.totalorder %v645, 0
        %vm1246 = vcmp.ne.s32.totalorder %v646, 0
        %vm1247 = vcmp.ne.s32.totalorder %v647, 0
        %vm1248 = vcmp.ne.s32.totalorder %v648, 0
        %vm1249 = vcmp.ne.s32.totalorder %v649, 0
        %vm1250 = vcmp.ne.s32.totalorder %v650, 0
        %vm1251 = vcmp.ne.s32.totalorder %v651, 0
        %vm1252 = vcmp.ne.s32.totalorder %v652, 0
        %vm1253 = vcmp.ne.s32.totalorder %v653, 0
        %vm1254 = vcmp.ne.s32.totalorder %v654, 0
        %vm1255 = vcmp.ne.s32.totalorder %v655, 0
        %vm1256 = vcmp.ne.s32.totalorder %v656, 0
        %vm1257 = vcmp.ne.s32.totalorder %v657, 0
        %vm1258 = vcmp.ne.s32.totalorder %v658, 0
        %vm1259 = vcmp.ne.s32.totalorder %v659, 0
        %vm1260 = vcmp.ne.s32.totalorder %v660, 0
        %vm1261 = vcmp.ne.s32.totalorder %v661, 0
        %vm1262 = vcmp.ne.s32.totalorder %v662, 0
        %vm1263 = vcmp.ne.s32.totalorder %v663, 0
        %vm1264 = vcmp.ne.s32.totalorder %v664, 0
        %vm1265 = vcmp.ne.s32.totalorder %v665, 0
        %vm1266 = vcmp.ne.s32.totalorder %v666, 0
        %vm1267 = vcmp.ne.s32.totalorder %v667, 0
        %vm1268 = vcmp.ne.s32.totalorder %v668, 0
        %vm1269 = vcmp.ne.s32.totalorder %v669, 0
        %vm1270 = vcmp.ne.s32.totalorder %v670, 0
        %vm1271 = vcmp.ne.s32.totalorder %v671, 0
        %vm1272 = vcmp.ne.s32.totalorder %v672, 0
        %vm1273 = vcmp.ne.s32.totalorder %v673, 0
        %vm1274 = vcmp.ne.s32.totalorder %v674, 0
        %vm1275 = vcmp.ne.s32.totalorder %v675, 0
        %vm1276 = vcmp.ne.s32.totalorder %v676, 0
        %vm1277 = vcmp.ne.s32.totalorder %v677, 0
        %vm1278 = vcmp.ne.s32.totalorder %v678, 0
        %vm1279 = vcmp.ne.s32.totalorder %v679, 0
        %vm1280 = vcmp.ne.s32.totalorder %v680, 0
        %vm1281 = vcmp.ne.s32.totalorder %v681, 0
        %vm1282 = vcmp.ne.s32.totalorder %v682, 0
        %vm1283 = vcmp.ne.s32.totalorder %v683, 0
        %vm1284 = vcmp.ne.s32.totalorder %v684, 0
        %vm1285 = vcmp.ne.s32.totalorder %v685, 0
        %vm1286 = vcmp.ne.s32.totalorder %v686, 0
        %vm1287 = vcmp.ne.s32.totalorder %v687, 0
        %vm1288 = vcmp.ne.s32.totalorder %v688, 0
        %vm1289 = vcmp.ne.s32.totalorder %v689, 0
        %vm1290 = vcmp.ne.s32.totalorder %v690, 0
        %vm1291 = vcmp.ne.s32.totalorder %v691, 0
        %vm1292 = vcmp.ne.s32.totalorder %v692, 0
        %vm1293 = vcmp.ne.s32.totalorder %v693, 0
        %vm1294 = vcmp.ne.s32.totalorder %v694, 0
        %vm1295 = vcmp.ne.s32.totalorder %v695, 0
        %vm1296 = vcmp.ne.s32.totalorder %v696, 0
        %vm1297 = vcmp.ne.s32.totalorder %v697, 0
        %vm1298 = vcmp.ne.s32.totalorder %v698, 0
        %vm1299 = vcmp.ne.s32.totalorder %v699, 0
        %vm1300 = vcmp.ne.s32.totalorder %v700, 0
        %vm1301 = vcmp.ne.s32.totalorder %v701, 0
        %vm1302 = vcmp.ne.s32.totalorder %v702, 0
        %vm1303 = vcmp.ne.s32.totalorder %v703, 0
        %vm1304 = vcmp.ne.s32.totalorder %v704, 0
        %vm1305 = vcmp.ne.s32.totalorder %v705, 0
        %vm1306 = vcmp.ne.s32.totalorder %v706, 0
        %vm1307 = vcmp.ne.s32.totalorder %v707, 0
        %vm1308 = vcmp.ne.s32.totalorder %v708, 0
        %vm1309 = vcmp.ne.s32.totalorder %v709, 0
        %vm1310 = vcmp.ne.s32.totalorder %v710, 0
        %vm1311 = vcmp.ne.s32.totalorder %v711, 0
        %vm1312 = vcmp.ne.s32.totalorder %v712, 0
        %vm1313 = vcmp.ne.s32.totalorder %v713, 0
        %vm1314 = vcmp.ne.s32.totalorder %v714, 0
        %vm1315 = vcmp.ne.s32.totalorder %v715, 0
        %vm1316 = vcmp.ne.s32.totalorder %v716, 0
        %vm1317 = vcmp.ne.s32.totalorder %v717, 0
        %vm1318 = vcmp.ne.s32.totalorder %v718, 0
        %vm1319 = vcmp.ne.s32.totalorder %v719, 0
        %vm1320 = vcmp.ne.s32.totalorder %v720, 0
        %vm1321 = vcmp.ne.s32.totalorder %v721, 0
        %vm1322 = vcmp.ne.s32.totalorder %v722, 0
        %vm1323 = vcmp.ne.s32.totalorder %v723, 0
        %vm1324 = vcmp.ne.s32.totalorder %v724, 0
        %vm1325 = vcmp.ne.s32.totalorder %v725, 0
        %vm1326 = vcmp.ne.s32.totalorder %v726, 0
        %vm1327 = vcmp.ne.s32.totalorder %v727, 0
        %vm1328 = vcmp.ne.s32.totalorder %v728, 0
        %vm1329 = vcmp.ne.s32.totalorder %v729, 0
        %vm1330 = vcmp.ne.s32.totalorder %v730, 0
        %vm1331 = vcmp.ne.s32.totalorder %v731, 0
        %vm1332 = vcmp.ne.s32.totalorder %v732, 0
        %vm1333 = vcmp.ne.s32.totalorder %v733, 0
        %vm1334 = vcmp.ne.s32.totalorder %v734, 0
        %vm1335 = vcmp.ne.s32.totalorder %v735, 0
        %vm1336 = vcmp.ne.s32.totalorder %v736, 0
        %vm1337 = vcmp.ne.s32.totalorder %v737, 0
        %vm1338 = vcmp.ne.s32.totalorder %v738, 0
        %v1339 = vsel %vm739, 1, 0
        %v1340 = vsel %vm740, 1, 0
        %v1341 = vsel %vm741, 1, 0
        %v1342 = vsel %vm742, 1, 0
        %v1343 = vsel %vm743, 1, 0
        %v1344 = vsel %vm744, 1, 0
        %v1345 = vsel %vm745, 1, 0
        %v1346 = vsel %vm746, 1, 0
        %v1347 = vsel %vm747, 1, 0
        %v1348 = vsel %vm748, 1, 0
        %v1349 = vsel %vm749, 1, 0
        %v1350 = vsel %vm750, 1, 0
        %v1351 = vsel %vm751, 1, 0
        %v1352 = vsel %vm752, 1, 0
        %v1353 = vsel %vm753, 1, 0
        %v1354 = vsel %vm754, 1, 0
        %v1355 = vsel %vm755, 1, 0
        %v1356 = vsel %vm756, 1, 0
        %v1357 = vsel %vm757, 1, 0
        %v1358 = vsel %vm758, 1, 0
        %v1359 = vsel %vm759, 1, 0
        %v1360 = vsel %vm760, 1, 0
        %v1361 = vsel %vm761, 1, 0
        %v1362 = vsel %vm762, 1, 0
        %v1363 = vsel %vm763, 1, 0
        %v1364 = vsel %vm764, 1, 0
        %v1365 = vsel %vm765, 1, 0
        %v1366 = vsel %vm766, 1, 0
        %v1367 = vsel %vm767, 1, 0
        %v1368 = vsel %vm768, 1, 0
        %v1369 = vsel %vm769, 1, 0
        %v1370 = vsel %vm770, 1, 0
        %v1371 = vsel %vm771, 1, 0
        %v1372 = vsel %vm772, 1, 0
        %v1373 = vsel %vm773, 1, 0
        %v1374 = vsel %vm774, 1, 0
        %v1375 = vsel %vm775, 1, 0
        %v1376 = vsel %vm776, 1, 0
        %v1377 = vsel %vm777, 1, 0
        %v1378 = vsel %vm778, 1, 0
        %v1379 = vsel %vm779, 1, 0
        %v1380 = vsel %vm780, 1, 0
        %v1381 = vsel %vm781, 1, 0
        %v1382 = vsel %vm782, 1, 0
        %v1383 = vsel %vm783, 1, 0
        %v1384 = vsel %vm784, 1, 0
        %v1385 = vsel %vm785, 1, 0
        %v1386 = vsel %vm786, 1, 0
        %v1387 = vsel %vm787, 1, 0
        %v1388 = vsel %vm788, 1, 0
        %v1389 = vsel %vm789, 1, 0
        %v1390 = vsel %vm790, 1, 0
        %v1391 = vsel %vm791, 1, 0
        %v1392 = vsel %vm792, 1, 0
        %v1393 = vsel %vm793, 1, 0
        %v1394 = vsel %vm794, 1, 0
        %v1395 = vsel %vm795, 1, 0
        %v1396 = vsel %vm796, 1, 0
        %v1397 = vsel %vm797, 1, 0
        %v1398 = vsel %vm798, 1, 0
        %v1399 = vsel %vm799, 1, 0
        %v1400 = vsel %vm800, 1, 0
        %v1401 = vsel %vm801, 1, 0
        %v1402 = vsel %vm802, 1, 0
        %v1403 = vsel %vm803, 1, 0
        %v1404 = vsel %vm804, 1, 0
        %v1405 = vsel %vm805, 1, 0
        %v1406 = vsel %vm806, 1, 0
        %v1407 = vsel %vm807, 1, 0
        %v1408 = vsel %vm808, 1, 0
        %v1409 = vsel %vm809, 1, 0
        %v1410 = vsel %vm810, 1, 0
        %v1411 = vsel %vm811, 1, 0
        %v1412 = vsel %vm812, 1, 0
        %v1413 = vsel %vm813, 1, 0
        %v1414 = vsel %vm814, 1, 0
        %v1415 = vsel %vm815, 1, 0
        %v1416 = vsel %vm816, 1, 0
        %v1417 = vsel %vm817, 1, 0
        %v1418 = vsel %vm818, 1, 0
        %v1419 = vsel %vm819, 1, 0
        %v1420 = vsel %vm820, 1, 0
        %v1421 = vsel %vm821, 1, 0
        %v1422 = vsel %vm822, 1, 0
        %v1423 = vsel %vm823, 1, 0
        %v1424 = vsel %vm824, 1, 0
        %v1425 = vsel %vm825, 1, 0
        %v1426 = vsel %vm826, 1, 0
        %v1427 = vsel %vm827, 1, 0
        %v1428 = vsel %vm828, 1, 0
        %v1429 = vsel %vm829, 1, 0
        %v1430 = vsel %vm830, 1, 0
        %v1431 = vsel %vm831, 1, 0
        %v1432 = vsel %vm832, 1, 0
        %v1433 = vsel %vm833, 1, 0
        %v1434 = vsel %vm834, 1, 0
        %v1435 = vsel %vm835, 1, 0
        %v1436 = vsel %vm836, 1, 0
        %v1437 = vsel %vm837, 1, 0
        %v1438 = vsel %vm838, 1, 0
        %v1439 = vsel %vm839, 1, 0
        %v1440 = vsel %vm840, 1, 0
        %v1441 = vsel %vm841, 1, 0
        %v1442 = vsel %vm842, 1, 0
        %v1443 = vsel %vm843, 1, 0
        %v1444 = vsel %vm844, 1, 0
        %v1445 = vsel %vm845, 1, 0
        %v1446 = vsel %vm846, 1, 0
        %v1447 = vsel %vm847, 1, 0
        %v1448 = vsel %vm848, 1, 0
        %v1449 = vsel %vm849, 1, 0
        %v1450 = vsel %vm850, 1, 0
        %v1451 = vsel %vm851, 1, 0
        %v1452 = vsel %vm852, 1, 0
        %v1453 = vsel %vm853, 1, 0
        %v1454 = vsel %vm854, 1, 0
        %v1455 = vsel %vm855, 1, 0
        %v1456 = vsel %vm856, 1, 0
        %v1457 = vsel %vm857, 1, 0
        %v1458 = vsel %vm858, 1, 0
        %v1459 = vsel %vm859, 1, 0
        %v1460 = vsel %vm860, 1, 0
        %v1461 = vsel %vm861, 1, 0
        %v1462 = vsel %vm862, 1, 0
        %v1463 = vsel %vm863, 1, 0
        %v1464 = vsel %vm864, 1, 0
        %v1465 = vsel %vm865, 1, 0
        %v1466 = vsel %vm866, 1, 0
        %v1467 = vsel %vm867, 1, 0
        %v1468 = vsel %vm868, 1, 0
        %v1469 = vsel %vm869, 1, 0
        %v1470 = vsel %vm870, 1, 0
        %v1471 = vsel %vm871, 1, 0
        %v1472 = vsel %vm872, 1, 0
        %v1473 = vsel %vm873, 1, 0
        %v1474 = vsel %vm874, 1, 0
        %v1475 = vsel %vm875, 1, 0
        %v1476 = vsel %vm876, 1, 0
        %v1477 = vsel %vm877, 1, 0
        %v1478 = vsel %vm878, 1, 0
        %v1479 = vsel %vm879, 1, 0
        %v1480 = vsel %vm880, 1, 0
        %v1481 = vsel %vm881, 1, 0
        %v1482 = vsel %vm882, 1, 0
        %v1483 = vsel %vm883, 1, 0
        %v1484 = vsel %vm884, 1, 0
        %v1485 = vsel %vm885, 1, 0
        %v1486 = vsel %vm886, 1, 0
        %v1487 = vsel %vm887, 1, 0
        %v1488 = vsel %vm888, 1, 0
        %v1489 = vsel %vm889, 1, 0
        %v1490 = vsel %vm890, 1, 0
        %v1491 = vsel %vm891, 1, 0
        %v1492 = vsel %vm892, 1, 0
        %v1493 = vsel %vm893, 1, 0
        %v1494 = vsel %vm894, 1, 0
        %v1495 = vsel %vm895, 1, 0
        %v1496 = vsel %vm896, 1, 0
        %v1497 = vsel %vm897, 1, 0
        %v1498 = vsel %vm898, 1, 0
        %v1499 = vsel %vm899, 1, 0
        %v1500 = vsel %vm900, 1, 0
        %v1501 = vsel %vm901, 1, 0
        %v1502 = vsel %vm902, 1, 0
        %v1503 = vsel %vm903, 1, 0
        %v1504 = vsel %vm904, 1, 0
        %v1505 = vsel %vm905, 1, 0
        %v1506 = vsel %vm906, 1, 0
        %v1507 = vsel %vm907, 1, 0
        %v1508 = vsel %vm908, 1, 0
        %v1509 = vsel %vm909, 1, 0
        %v1510 = vsel %vm910, 1, 0
        %v1511 = vsel %vm911, 1, 0
        %v1512 = vsel %vm912, 1, 0
        %v1513 = vsel %vm913, 1, 0
        %v1514 = vsel %vm914, 1, 0
        %v1515 = vsel %vm915, 1, 0
        %v1516 = vsel %vm916, 1, 0
        %v1517 = vsel %vm917, 1, 0
        %v1518 = vsel %vm918, 1, 0
        %v1519 = vsel %vm919, 1, 0
        %v1520 = vsel %vm920, 1, 0
        %v1521 = vsel %vm921, 1, 0
        %v1522 = vsel %vm922, 1, 0
        %v1523 = vsel %vm923, 1, 0
        %v1524 = vsel %vm924, 1, 0
        %v1525 = vsel %vm925, 1, 0
        %v1526 = vsel %vm926, 1, 0
        %v1527 = vsel %vm927, 1, 0
        %v1528 = vsel %vm928, 1, 0
        %v1529 = vsel %vm929, 1, 0
        %v1530 = vsel %vm930, 1, 0
        %v1531 = vsel %vm931, 1, 0
        %v1532 = vsel %vm932, 1, 0
        %v1533 = vsel %vm933, 1, 0
        %v1534 = vsel %vm934, 1, 0
        %v1535 = vsel %vm935, 1, 0
        %v1536 = vsel %vm936, 1, 0
        %v1537 = vsel %vm937, 1, 0
        %v1538 = vsel %vm938, 1, 0
        %v1539 = vsel %vm939, 1, 0
        %v1540 = vsel %vm940, 1, 0
        %v1541 = vsel %vm941, 1, 0
        %v1542 = vsel %vm942, 1, 0
        %v1543 = vsel %vm943, 1, 0
        %v1544 = vsel %vm944, 1, 0
        %v1545 = vsel %vm945, 1, 0
        %v1546 = vsel %vm946, 1, 0
        %v1547 = vsel %vm947, 1, 0
        %v1548 = vsel %vm948, 1, 0
        %v1549 = vsel %vm949, 1, 0
        %v1550 = vsel %vm950, 1, 0
        %v1551 = vsel %vm951, 1, 0
        %v1552 = vsel %vm952, 1, 0
        %v1553 = vsel %vm953, 1, 0
        %v1554 = vsel %vm954, 1, 0
        %v1555 = vsel %vm955, 1, 0
        %v1556 = vsel %vm956, 1, 0
        %v1557 = vsel %vm957, 1, 0
        %v1558 = vsel %vm958, 1, 0
        %v1559 = vsel %vm959, 1, 0
        %v1560 = vsel %vm960, 1, 0
        %v1561 = vsel %vm961, 1, 0
        %v1562 = vsel %vm962, 1, 0
        %v1563 = vsel %vm963, 1, 0
        %v1564 = vsel %vm964, 1, 0
        %v1565 = vsel %vm965, 1, 0
        %v1566 = vsel %vm966, 1, 0
        %v1567 = vsel %vm967, 1, 0
        %v1568 = vsel %vm968, 1, 0
        %v1569 = vsel %vm969, 1, 0
        %v1570 = vsel %vm970, 1, 0
        %v1571 = vsel %vm971, 1, 0
        %v1572 = vsel %vm972, 1, 0
        %v1573 = vsel %vm973, 1, 0
        %v1574 = vsel %vm974, 1, 0
        %v1575 = vsel %vm975, 1, 0
        %v1576 = vsel %vm976, 1, 0
        %v1577 = vsel %vm977, 1, 0
        %v1578 = vsel %vm978, 1, 0
        %v1579 = vsel %vm979, 1, 0
        %v1580 = vsel %vm980, 1, 0
        %v1581 = vsel %vm981, 1, 0
        %v1582 = vsel %vm982, 1, 0
        %v1583 = vsel %vm983, 1, 0
        %v1584 = vsel %vm984, 1, 0
        %v1585 = vsel %vm985, 1, 0
        %v1586 = vsel %vm986, 1, 0
        %v1587 = vsel %vm987, 1, 0
        %v1588 = vsel %vm988, 1, 0
        %v1589 = vsel %vm989, 1, 0
        %v1590 = vsel %vm990, 1, 0
        %v1591 = vsel %vm991, 1, 0
        %v1592 = vsel %vm992, 1, 0
        %v1593 = vsel %vm993, 1, 0
        %v1594 = vsel %vm994, 1, 0
        %v1595 = vsel %vm995, 1, 0
        %v1596 = vsel %vm996, 1, 0
        %v1597 = vsel %vm997, 1, 0
        %v1598 = vsel %vm998, 1, 0
        %v1599 = vsel %vm999, 1, 0
        %v1600 = vsel %vm1000, 1, 0
        %v1601 = vsel %vm1001, 1, 0
        %v1602 = vsel %vm1002, 1, 0
        %v1603 = vsel %vm1003, 1, 0
        %v1604 = vsel %vm1004, 1, 0
        %v1605 = vsel %vm1005, 1, 0
        %v1606 = vsel %vm1006, 1, 0
        %v1607 = vsel %vm1007, 1, 0
        %v1608 = vsel %vm1008, 1, 0
        %v1609 = vsel %vm1009, 1, 0
        %v1610 = vsel %vm1010, 1, 0
        %v1611 = vsel %vm1011, 1, 0
        %v1612 = vsel %vm1012, 1, 0
        %v1613 = vsel %vm1013, 1, 0
        %v1614 = vsel %vm1014, 1, 0
        %v1615 = vsel %vm1015, 1, 0
        %v1616 = vsel %vm1016, 1, 0
        %v1617 = vsel %vm1017, 1, 0
        %v1618 = vsel %vm1018, 1, 0
        %v1619 = vsel %vm1019, 1, 0
        %v1620 = vsel %vm1020, 1, 0
        %v1621 = vsel %vm1021, 1, 0
        %v1622 = vsel %vm1022, 1, 0
        %v1623 = vsel %vm1023, 1, 0
        %v1624 = vsel %vm1024, 1, 0
        %v1625 = vsel %vm1025, 1, 0
        %v1626 = vsel %vm1026, 1, 0
        %v1627 = vsel %vm1027, 1, 0
        %v1628 = vsel %vm1028, 1, 0
        %v1629 = vsel %vm1029, 1, 0
        %v1630 = vsel %vm1030, 1, 0
        %v1631 = vsel %vm1031, 1, 0
        %v1632 = vsel %vm1032, 1, 0
        %v1633 = vsel %vm1033, 1, 0
        %v1634 = vsel %vm1034, 1, 0
        %v1635 = vsel %vm1035, 1, 0
        %v1636 = vsel %vm1036, 1, 0
        %v1637 = vsel %vm1037, 1, 0
        %v1638 = vsel %vm1038, 1, 0
        %v1639 = vsel %vm1039, 1, 0
        %v1640 = vsel %vm1040, 1, 0
        %v1641 = vsel %vm1041, 1, 0
        %v1642 = vsel %vm1042, 1, 0
        %v1643 = vsel %vm1043, 1, 0
        %v1644 = vsel %vm1044, 1, 0
        %v1645 = vsel %vm1045, 1, 0
        %v1646 = vsel %vm1046, 1, 0
        %v1647 = vsel %vm1047, 1, 0
        %v1648 = vsel %vm1048, 1, 0
        %v1649 = vsel %vm1049, 1, 0
        %v1650 = vsel %vm1050, 1, 0
        %v1651 = vsel %vm1051, 1, 0
        %v1652 = vsel %vm1052, 1, 0
        %v1653 = vsel %vm1053, 1, 0
        %v1654 = vsel %vm1054, 1, 0
        %v1655 = vsel %vm1055, 1, 0
        %v1656 = vsel %vm1056, 1, 0
        %v1657 = vsel %vm1057, 1, 0
        %v1658 = vsel %vm1058, 1, 0
        %v1659 = vsel %vm1059, 1, 0
        %v1660 = vsel %vm1060, 1, 0
        %v1661 = vsel %vm1061, 1, 0
        %v1662 = vsel %vm1062, 1, 0
        %v1663 = vsel %vm1063, 1, 0
        %v1664 = vsel %vm1064, 1, 0
        %v1665 = vsel %vm1065, 1, 0
        %v1666 = vsel %vm1066, 1, 0
        %v1667 = vsel %vm1067, 1, 0
        %v1668 = vsel %vm1068, 1, 0
        %v1669 = vsel %vm1069, 1, 0
        %v1670 = vsel %vm1070, 1, 0
        %v1671 = vsel %vm1071, 1, 0
        %v1672 = vsel %vm1072, 1, 0
        %v1673 = vsel %vm1073, 1, 0
        %v1674 = vsel %vm1074, 1, 0
        %v1675 = vsel %vm1075, 1, 0
        %v1676 = vsel %vm1076, 1, 0
        %v1677 = vsel %vm1077, 1, 0
        %v1678 = vsel %vm1078, 1, 0
        %v1679 = vsel %vm1079, 1, 0
        %v1680 = vsel %vm1080, 1, 0
        %v1681 = vsel %vm1081, 1, 0
        %v1682 = vsel %vm1082, 1, 0
        %v1683 = vsel %vm1083, 1, 0
        %v1684 = vsel %vm1084, 1, 0
        %v1685 = vsel %vm1085, 1, 0
        %v1686 = vsel %vm1086, 1, 0
        %v1687 = vsel %vm1087, 1, 0
        %v1688 = vsel %vm1088, 1, 0
        %v1689 = vsel %vm1089, 1, 0
        %v1690 = vsel %vm1090, 1, 0
        %v1691 = vsel %vm1091, 1, 0
        %v1692 = vsel %vm1092, 1, 0
        %v1693 = vsel %vm1093, 1, 0
        %v1694 = vsel %vm1094, 1, 0
        %v1695 = vsel %vm1095, 1, 0
        %v1696 = vsel %vm1096, 1, 0
        %v1697 = vsel %vm1097, 1, 0
        %v1698 = vsel %vm1098, 1, 0
        %v1699 = vsel %vm1099, 1, 0
        %v1700 = vsel %vm1100, 1, 0
        %v1701 = vsel %vm1101, 1, 0
        %v1702 = vsel %vm1102, 1, 0
        %v1703 = vsel %vm1103, 1, 0
        %v1704 = vsel %vm1104, 1, 0
        %v1705 = vsel %vm1105, 1, 0
        %v1706 = vsel %vm1106, 1, 0
        %v1707 = vsel %vm1107, 1, 0
        %v1708 = vsel %vm1108, 1, 0
        %v1709 = vsel %vm1109, 1, 0
        %v1710 = vsel %vm1110, 1, 0
        %v1711 = vsel %vm1111, 1, 0
        %v1712 = vsel %vm1112, 1, 0
        %v1713 = vsel %vm1113, 1, 0
        %v1714 = vsel %vm1114, 1, 0
        %v1715 = vsel %vm1115, 1, 0
        %v1716 = vsel %vm1116, 1, 0
        %v1717 = vsel %vm1117, 1, 0
        %v1718 = vsel %vm1118, 1, 0
        %v1719 = vsel %vm1119, 1, 0
        %v1720 = vsel %vm1120, 1, 0
        %v1721 = vsel %vm1121, 1, 0
        %v1722 = vsel %vm1122, 1, 0
        %v1723 = vsel %vm1123, 1, 0
        %v1724 = vsel %vm1124, 1, 0
        %v1725 = vsel %vm1125, 1, 0
        %v1726 = vsel %vm1126, 1, 0
        %v1727 = vsel %vm1127, 1, 0
        %v1728 = vsel %vm1128, 1, 0
        %v1729 = vsel %vm1129, 1, 0
        %v1730 = vsel %vm1130, 1, 0
        %v1731 = vsel %vm1131, 1, 0
        %v1732 = vsel %vm1132, 1, 0
        %v1733 = vsel %vm1133, 1, 0
        %v1734 = vsel %vm1134, 1, 0
        %v1735 = vsel %vm1135, 1, 0
        %v1736 = vsel %vm1136, 1, 0
        %v1737 = vsel %vm1137, 1, 0
        %v1738 = vsel %vm1138, 1, 0
        %v1739 = vsel %vm1139, 1, 0
        %v1740 = vsel %vm1140, 1, 0
        %v1741 = vsel %vm1141, 1, 0
        %v1742 = vsel %vm1142, 1, 0
        %v1743 = vsel %vm1143, 1, 0
        %v1744 = vsel %vm1144, 1, 0
        %v1745 = vsel %vm1145, 1, 0
        %v1746 = vsel %vm1146, 1, 0
        %v1747 = vsel %vm1147, 1, 0
        %v1748 = vsel %vm1148, 1, 0
        %v1749 = vsel %vm1149, 1, 0
        %v1750 = vsel %vm1150, 1, 0
        %v1751 = vsel %vm1151, 1, 0
        %v1752 = vsel %vm1152, 1, 0
        %v1753 = vsel %vm1153, 1, 0
        %v1754 = vsel %vm1154, 1, 0
        %v1755 = vsel %vm1155, 1, 0
        %v1756 = vsel %vm1156, 1, 0
        %v1757 = vsel %vm1157, 1, 0
        %v1758 = vsel %vm1158, 1, 0
        %v1759 = vsel %vm1159, 1, 0
        %v1760 = vsel %vm1160, 1, 0
        %v1761 = vsel %vm1161, 1, 0
        %v1762 = vsel %vm1162, 1, 0
        %v1763 = vsel %vm1163, 1, 0
        %v1764 = vsel %vm1164, 1, 0
        %v1765 = vsel %vm1165, 1, 0
        %v1766 = vsel %vm1166, 1, 0
        %v1767 = vsel %vm1167, 1, 0
        %v1768 = vsel %vm1168, 1, 0
        %v1769 = vsel %vm1169, 1, 0
        %v1770 = vsel %vm1170, 1, 0
        %v1771 = vsel %vm1171, 1, 0
        %v1772 = vsel %vm1172, 1, 0
        %v1773 = vsel %vm1173, 1, 0
        %v1774 = vsel %vm1174, 1, 0
        %v1775 = vsel %vm1175, 1, 0
        %v1776 = vsel %vm1176, 1, 0
        %v1777 = vsel %vm1177, 1, 0
        %v1778 = vsel %vm1178, 1, 0
        %v1779 = vsel %vm1179, 1, 0
        %v1780 = vsel %vm1180, 1, 0
        %v1781 = vsel %vm1181, 1, 0
        %v1782 = vsel %vm1182, 1, 0
        %v1783 = vsel %vm1183, 1, 0
        %v1784 = vsel %vm1184, 1, 0
        %v1785 = vsel %vm1185, 1, 0
        %v1786 = vsel %vm1186, 1, 0
        %v1787 = vsel %vm1187, 1, 0
        %v1788 = vsel %vm1188, 1, 0
        %v1789 = vsel %vm1189, 1, 0
        %v1790 = vsel %vm1190, 1, 0
        %v1791 = vsel %vm1191, 1, 0
        %v1792 = vsel %vm1192, 1, 0
        %v1793 = vsel %vm1193, 1, 0
        %v1794 = vsel %vm1194, 1, 0
        %v1795 = vsel %vm1195, 1, 0
        %v1796 = vsel %vm1196, 1, 0
        %v1797 = vsel %vm1197, 1, 0
        %v1798 = vsel %vm1198, 1, 0
        %v1799 = vsel %vm1199, 1, 0
        %v1800 = vsel %vm1200, 1, 0
        %v1801 = vsel %vm1201, 1, 0
        %v1802 = vsel %vm1202, 1, 0
        %v1803 = vsel %vm1203, 1, 0
        %v1804 = vsel %vm1204, 1, 0
        %v1805 = vsel %vm1205, 1, 0
        %v1806 = vsel %vm1206, 1, 0
        %v1807 = vsel %vm1207, 1, 0
        %v1808 = vsel %vm1208, 1, 0
        %v1809 = vsel %vm1209, 1, 0
        %v1810 = vsel %vm1210, 1, 0
        %v1811 = vsel %vm1211, 1, 0
        %v1812 = vsel %vm1212, 1, 0
        %v1813 = vsel %vm1213, 1, 0
        %v1814 = vsel %vm1214, 1, 0
        %v1815 = vsel %vm1215, 1, 0
        %v1816 = vsel %vm1216, 1, 0
        %v1817 = vsel %vm1217, 1, 0
        %v1818 = vsel %vm1218, 1, 0
        %v1819 = vsel %vm1219, 1, 0
        %v1820 = vsel %vm1220, 1, 0
        %v1821 = vsel %vm1221, 1, 0
        %v1822 = vsel %vm1222, 1, 0
        %v1823 = vsel %vm1223, 1, 0
        %v1824 = vsel %vm1224, 1, 0
        %v1825 = vsel %vm1225, 1, 0
        %v1826 = vsel %vm1226, 1, 0
        %v1827 = vsel %vm1227, 1, 0
        %v1828 = vsel %vm1228, 1, 0
        %v1829 = vsel %vm1229, 1, 0
        %v1830 = vsel %vm1230, 1, 0
        %v1831 = vsel %vm1231, 1, 0
        %v1832 = vsel %vm1232, 1, 0
        %v1833 = vsel %vm1233, 1, 0
        %v1834 = vsel %vm1234, 1, 0
        %v1835 = vsel %vm1235, 1, 0
        %v1836 = vsel %vm1236, 1, 0
        %v1837 = vsel %vm1237, 1, 0
        %v1838 = vsel %vm1238, 1, 0
        %v1839 = vsel %vm1239, 1, 0
        %v1840 = vsel %vm1240, 1, 0
        %v1841 = vsel %vm1241, 1, 0
        %v1842 = vsel %vm1242, 1, 0
        %v1843 = vsel %vm1243, 1, 0
        %v1844 = vsel %vm1244, 1, 0
        %v1845 = vsel %vm1245, 1, 0
        %v1846 = vsel %vm1246, 1, 0
        %v1847 = vsel %vm1247, 1, 0
        %v1848 = vsel %vm1248, 1, 0
        %v1849 = vsel %vm1249, 1, 0
        %v1850 = vsel %vm1250, 1, 0
        %v1851 = vsel %vm1251, 1, 0
        %v1852 = vsel %vm1252, 1, 0
        %v1853 = vsel %vm1253, 1, 0
        %v1854 = vsel %vm1254, 1, 0
        %v1855 = vsel %vm1255, 1, 0
        %v1856 = vsel %vm1256, 1, 0
        %v1857 = vsel %vm1257, 1, 0
        %v1858 = vsel %vm1258, 1, 0
        %v1859 = vsel %vm1259, 1, 0
        %v1860 = vsel %vm1260, 1, 0
        %v1861 = vsel %vm1261, 1, 0
        %v1862 = vsel %vm1262, 1, 0
        %v1863 = vsel %vm1263, 1, 0
        %v1864 = vsel %vm1264, 1, 0
        %v1865 = vsel %vm1265, 1, 0
        %v1866 = vsel %vm1266, 1, 0
        %v1867 = vsel %vm1267, 1, 0
        %v1868 = vsel %vm1268, 1, 0
        %v1869 = vsel %vm1269, 1, 0
        %v1870 = vsel %vm1270, 1, 0
        %v1871 = vsel %vm1271, 1, 0
        %v1872 = vsel %vm1272, 1, 0
        %v1873 = vsel %vm1273, 1, 0
        %v1874 = vsel %vm1274, 1, 0
        %v1875 = vsel %vm1275, 1, 0
        %v1876 = vsel %vm1276, 1, 0
        %v1877 = vsel %vm1277, 1, 0
        %v1878 = vsel %vm1278, 1, 0
        %v1879 = vsel %vm1279, 1, 0
        %v1880 = vsel %vm1280, 1, 0
        %v1881 = vsel %vm1281, 1, 0
        %v1882 = vsel %vm1282, 1, 0
        %v1883 = vsel %vm1283, 1, 0
        %v1884 = vsel %vm1284, 1, 0
        %v1885 = vsel %vm1285, 1, 0
        %v1886 = vsel %vm1286, 1, 0
        %v1887 = vsel %vm1287, 1, 0
        %v1888 = vsel %vm1288, 1, 0
        %v1889 = vsel %vm1289, 1, 0
        %v1890 = vsel %vm1290, 1, 0
        %v1891 = vsel %vm1291, 1, 0
        %v1892 = vsel %vm1292, 1, 0
        %v1893 = vsel %vm1293, 1, 0
        %v1894 = vsel %vm1294, 1, 0
        %v1895 = vsel %vm1295, 1, 0
        %v1896 = vsel %vm1296, 1, 0
        %v1897 = vsel %vm1297, 1, 0
        %v1898 = vsel %vm1298, 1, 0
        %v1899 = vsel %vm1299, 1, 0
        %v1900 = vsel %vm1300, 1, 0
        %v1901 = vsel %vm1301, 1, 0
        %v1902 = vsel %vm1302, 1, 0
        %v1903 = vsel %vm1303, 1, 0
        %v1904 = vsel %vm1304, 1, 0
        %v1905 = vsel %vm1305, 1, 0
        %v1906 = vsel %vm1306, 1, 0
        %v1907 = vsel %vm1307, 1, 0
        %v1908 = vsel %vm1308, 1, 0
        %v1909 = vsel %vm1309, 1, 0
        %v1910 = vsel %vm1310, 1, 0
        %v1911 = vsel %vm1311, 1, 0
        %v1912 = vsel %vm1312, 1, 0
        %v1913 = vsel %vm1313, 1, 0
        %v1914 = vsel %vm1314, 1, 0
        %v1915 = vsel %vm1315, 1, 0
        %v1916 = vsel %vm1316, 1, 0
        %v1917 = vsel %vm1317, 1, 0
        %v1918 = vsel %vm1318, 1, 0
        %v1919 = vsel %vm1319, 1, 0
        %v1920 = vsel %vm1320, 1, 0
        %v1921 = vsel %vm1321, 1, 0
        %v1922 = vsel %vm1322, 1, 0
        %v1923 = vsel %vm1323, 1, 0
        %v1924 = vsel %vm1324, 1, 0
        %v1925 = vsel %vm1325, 1, 0
        %v1926 = vsel %vm1326, 1, 0
        %v1927 = vsel %vm1327, 1, 0
        %v1928 = vsel %vm1328, 1, 0
        %v1929 = vsel %vm1329, 1, 0
        %v1930 = vsel %vm1330, 1, 0
        %v1931 = vsel %vm1331, 1, 0
        %v1932 = vsel %vm1332, 1, 0
        %v1933 = vsel %vm1333, 1, 0
        %v1934 = vsel %vm1334, 1, 0
        %v1935 = vsel %vm1335, 1, 0
        %v1936 = vsel %vm1336, 1, 0
        %v1937 = vsel %vm1337, 1, 0
        %v1938 = vsel %vm1338, 1, 0
        %vm1939 = vcmp.lt.s32.totalorder %v1339, %v1343
        %v1940 = vsel %vm1939, %v1339, %v1343
        %vm1941 = vcmp.lt.s32.totalorder %v1340, %v1344
        %v1942 = vsel %vm1941, %v1340, %v1344
        %vm1943 = vcmp.lt.s32.totalorder %v1341, %v1345
        %v1944 = vsel %vm1943, %v1341, %v1345
        %vm1945 = vcmp.lt.s32.totalorder %v1342, %v1346
        %v1946 = vsel %vm1945, %v1342, %v1346
        %vm1947 = vcmp.lt.s32.totalorder %v1940, %v1347
        %v1948 = vsel %vm1947, %v1940, %v1347
        %vm1949 = vcmp.lt.s32.totalorder %v1942, %v1348
        %v1950 = vsel %vm1949, %v1942, %v1348
        %vm1951 = vcmp.lt.s32.totalorder %v1944, %v1349
        %v1952 = vsel %vm1951, %v1944, %v1349
        %vm1953 = vcmp.lt.s32.totalorder %v1946, %v1350
        %v1954 = vsel %vm1953, %v1946, %v1350
        %vm1955 = vcmp.lt.s32.totalorder %v1948, %v1351
        %v1956 = vsel %vm1955, %v1948, %v1351
        %vm1957 = vcmp.lt.s32.totalorder %v1950, %v1352
        %v1958 = vsel %vm1957, %v1950, %v1352
        %vm1959 = vcmp.lt.s32.totalorder %v1952, %v1353
        %v1960 = vsel %vm1959, %v1952, %v1353
        %vm1961 = vcmp.lt.s32.totalorder %v1954, %v1354
        %v1962 = vsel %vm1961, %v1954, %v1354
        %vm1963 = vcmp.lt.s32.totalorder %v1956, %v1355
        %v1964 = vsel %vm1963, %v1956, %v1355
        %vm1965 = vcmp.lt.s32.totalorder %v1958, %v1356
        %v1966 = vsel %vm1965, %v1958, %v1356
        %vm1967 = vcmp.lt.s32.totalorder %v1960, %v1357
        %v1968 = vsel %vm1967, %v1960, %v1357
        %vm1969 = vcmp.lt.s32.totalorder %v1962, %v1358
        %v1970 = vsel %vm1969, %v1962, %v1358
        %vm1971 = vcmp.lt.s32.totalorder %v1964, %v1359
        %v1972 = vsel %vm1971, %v1964, %v1359
        %vm1973 = vcmp.lt.s32.totalorder %v1966, %v1360
        %v1974 = vsel %vm1973, %v1966, %v1360
        %vm1975 = vcmp.lt.s32.totalorder %v1968, %v1361
        %v1976 = vsel %vm1975, %v1968, %v1361
        %vm1977 = vcmp.lt.s32.totalorder %v1970, %v1362
        %v1978 = vsel %vm1977, %v1970, %v1362
        %vm1979 = vcmp.lt.s32.totalorder %v1972, %v1363
        %v1980 = vsel %vm1979, %v1972, %v1363
        %vm1981 = vcmp.lt.s32.totalorder %v1974, %v1364
        %v1982 = vsel %vm1981, %v1974, %v1364
        %vm1983 = vcmp.lt.s32.totalorder %v1976, %v1365
        %v1984 = vsel %vm1983, %v1976, %v1365
        %vm1985 = vcmp.lt.s32.totalorder %v1978, %v1366
        %v1986 = vsel %vm1985, %v1978, %v1366
        %vm1987 = vcmp.lt.s32.totalorder %v1980, %v1367
        %v1988 = vsel %vm1987, %v1980, %v1367
        %vm1989 = vcmp.lt.s32.totalorder %v1982, %v1368
        %v1990 = vsel %vm1989, %v1982, %v1368
        %vm1991 = vcmp.lt.s32.totalorder %v1984, %v1369
        %v1992 = vsel %vm1991, %v1984, %v1369
        %vm1993 = vcmp.lt.s32.totalorder %v1986, %v1370
        %v1994 = vsel %vm1993, %v1986, %v1370
        %vm1995 = vcmp.lt.s32.totalorder %v1988, %v1371
        %v1996 = vsel %vm1995, %v1988, %v1371
        %vm1997 = vcmp.lt.s32.totalorder %v1990, %v1372
        %v1998 = vsel %vm1997, %v1990, %v1372
        %vm1999 = vcmp.lt.s32.totalorder %v1992, %v1373
        %v2000 = vsel %vm1999, %v1992, %v1373
        %vm2001 = vcmp.lt.s32.totalorder %v1994, %v1374
        %v2002 = vsel %vm2001, %v1994, %v1374
        %vm2003 = vcmp.lt.s32.totalorder %v1996, %v1375
        %v2004 = vsel %vm2003, %v1996, %v1375
        %vm2005 = vcmp.lt.s32.totalorder %v1998, %v1376
        %v2006 = vsel %vm2005, %v1998, %v1376
        %vm2007 = vcmp.lt.s32.totalorder %v2000, %v1377
        %v2008 = vsel %vm2007, %v2000, %v1377
        %vm2009 = vcmp.lt.s32.totalorder %v2002, %v1378
        %v2010 = vsel %vm2009, %v2002, %v1378
        %vm2011 = vcmp.lt.s32.totalorder %v2004, %v1379
        %v2012 = vsel %vm2011, %v2004, %v1379
        %vm2013 = vcmp.lt.s32.totalorder %v2006, %v1380
        %v2014 = vsel %vm2013, %v2006, %v1380
        %vm2015 = vcmp.lt.s32.totalorder %v2008, %v1381
        %v2016 = vsel %vm2015, %v2008, %v1381
        %vm2017 = vcmp.lt.s32.totalorder %v2010, %v1382
        %v2018 = vsel %vm2017, %v2010, %v1382
        %vm2019 = vcmp.lt.s32.totalorder %v2012, %v1383
        %v2020 = vsel %vm2019, %v2012, %v1383
        %vm2021 = vcmp.lt.s32.totalorder %v2014, %v1384
        %v2022 = vsel %vm2021, %v2014, %v1384
        %vm2023 = vcmp.lt.s32.totalorder %v2016, %v1385
        %v2024 = vsel %vm2023, %v2016, %v1385
        %vm2025 = vcmp.lt.s32.totalorder %v2018, %v1386
        %v2026 = vsel %vm2025, %v2018, %v1386
        %vm2027 = vcmp.lt.s32.totalorder %v2020, %v1387
        %v2028 = vsel %vm2027, %v2020, %v1387
        %vm2029 = vcmp.lt.s32.totalorder %v2022, %v1388
        %v2030 = vsel %vm2029, %v2022, %v1388
        %vm2031 = vcmp.lt.s32.totalorder %v2024, %v1389
        %v2032 = vsel %vm2031, %v2024, %v1389
        %vm2033 = vcmp.lt.s32.totalorder %v2026, %v1390
        %v2034 = vsel %vm2033, %v2026, %v1390
        %vm2035 = vcmp.lt.s32.totalorder %v2028, %v1391
        %v2036 = vsel %vm2035, %v2028, %v1391
        %vm2037 = vcmp.lt.s32.totalorder %v2030, %v1392
        %v2038 = vsel %vm2037, %v2030, %v1392
        %vm2039 = vcmp.lt.s32.totalorder %v2032, %v1393
        %v2040 = vsel %vm2039, %v2032, %v1393
        %vm2041 = vcmp.lt.s32.totalorder %v2034, %v1394
        %v2042 = vsel %vm2041, %v2034, %v1394
        %vm2043 = vcmp.lt.s32.totalorder %v2036, %v1395
        %v2044 = vsel %vm2043, %v2036, %v1395
        %vm2045 = vcmp.lt.s32.totalorder %v2038, %v1396
        %v2046 = vsel %vm2045, %v2038, %v1396
        %vm2047 = vcmp.lt.s32.totalorder %v2040, %v1397
        %v2048 = vsel %vm2047, %v2040, %v1397
        %vm2049 = vcmp.lt.s32.totalorder %v2042, %v1398
        %v2050 = vsel %vm2049, %v2042, %v1398
        %vm2051 = vcmp.lt.s32.totalorder %v2044, %v1399
        %v2052 = vsel %vm2051, %v2044, %v1399
        %vm2053 = vcmp.lt.s32.totalorder %v2046, %v1400
        %v2054 = vsel %vm2053, %v2046, %v1400
        %vm2055 = vcmp.lt.s32.totalorder %v2048, %v1401
        %v2056 = vsel %vm2055, %v2048, %v1401
        %vm2057 = vcmp.lt.s32.totalorder %v2050, %v1402
        %v2058 = vsel %vm2057, %v2050, %v1402
        %vm2059 = vcmp.lt.s32.totalorder %v2052, %v1403
        %v2060 = vsel %vm2059, %v2052, %v1403
        %vm2061 = vcmp.lt.s32.totalorder %v2054, %v1404
        %v2062 = vsel %vm2061, %v2054, %v1404
        %vm2063 = vcmp.lt.s32.totalorder %v2056, %v1405
        %v2064 = vsel %vm2063, %v2056, %v1405
        %vm2065 = vcmp.lt.s32.totalorder %v2058, %v1406
        %v2066 = vsel %vm2065, %v2058, %v1406
        %vm2067 = vcmp.lt.s32.totalorder %v2060, %v1407
        %v2068 = vsel %vm2067, %v2060, %v1407
        %vm2069 = vcmp.lt.s32.totalorder %v2062, %v1408
        %v2070 = vsel %vm2069, %v2062, %v1408
        %vm2071 = vcmp.lt.s32.totalorder %v2064, %v1409
        %v2072 = vsel %vm2071, %v2064, %v1409
        %vm2073 = vcmp.lt.s32.totalorder %v2066, %v1410
        %v2074 = vsel %vm2073, %v2066, %v1410
        %vm2075 = vcmp.lt.s32.totalorder %v2068, %v1411
        %v2076 = vsel %vm2075, %v2068, %v1411
        %vm2077 = vcmp.lt.s32.totalorder %v2070, %v1412
        %v2078 = vsel %vm2077, %v2070, %v1412
        %vm2079 = vcmp.lt.s32.totalorder %v2072, %v1413
        %v2080 = vsel %vm2079, %v2072, %v1413
        %vm2081 = vcmp.lt.s32.totalorder %v2074, %v1414
        %v2082 = vsel %vm2081, %v2074, %v1414
        %vm2083 = vcmp.lt.s32.totalorder %v2076, %v1415
        %v2084 = vsel %vm2083, %v2076, %v1415
        %vm2085 = vcmp.lt.s32.totalorder %v2078, %v1416
        %v2086 = vsel %vm2085, %v2078, %v1416
        %vm2087 = vcmp.lt.s32.totalorder %v2080, %v1417
        %v2088 = vsel %vm2087, %v2080, %v1417
        %vm2089 = vcmp.lt.s32.totalorder %v2082, %v1418
        %v2090 = vsel %vm2089, %v2082, %v1418
        %vm2091 = vcmp.lt.s32.totalorder %v2084, %v1419
        %v2092 = vsel %vm2091, %v2084, %v1419
        %vm2093 = vcmp.lt.s32.totalorder %v2086, %v1420
        %v2094 = vsel %vm2093, %v2086, %v1420
        %vm2095 = vcmp.lt.s32.totalorder %v2088, %v1421
        %v2096 = vsel %vm2095, %v2088, %v1421
        %vm2097 = vcmp.lt.s32.totalorder %v2090, %v1422
        %v2098 = vsel %vm2097, %v2090, %v1422
        %vm2099 = vcmp.lt.s32.totalorder %v2092, %v1423
        %v2100 = vsel %vm2099, %v2092, %v1423
        %vm2101 = vcmp.lt.s32.totalorder %v2094, %v1424
        %v2102 = vsel %vm2101, %v2094, %v1424
        %vm2103 = vcmp.lt.s32.totalorder %v2096, %v1425
        %v2104 = vsel %vm2103, %v2096, %v1425
        %vm2105 = vcmp.lt.s32.totalorder %v2098, %v1426
        %v2106 = vsel %vm2105, %v2098, %v1426
        %vm2107 = vcmp.lt.s32.totalorder %v2100, %v1427
        %v2108 = vsel %vm2107, %v2100, %v1427
        %vm2109 = vcmp.lt.s32.totalorder %v2102, %v1428
        %v2110 = vsel %vm2109, %v2102, %v1428
        %vm2111 = vcmp.lt.s32.totalorder %v2104, %v1429
        %v2112 = vsel %vm2111, %v2104, %v1429
        %vm2113 = vcmp.lt.s32.totalorder %v2106, %v1430
        %v2114 = vsel %vm2113, %v2106, %v1430
        %vm2115 = vcmp.lt.s32.totalorder %v2108, %v1431
        %v2116 = vsel %vm2115, %v2108, %v1431
        %vm2117 = vcmp.lt.s32.totalorder %v2110, %v1432
        %v2118 = vsel %vm2117, %v2110, %v1432
        %vm2119 = vcmp.lt.s32.totalorder %v2112, %v1433
        %v2120 = vsel %vm2119, %v2112, %v1433
        %vm2121 = vcmp.lt.s32.totalorder %v2114, %v1434
        %v2122 = vsel %vm2121, %v2114, %v1434
        %vm2123 = vcmp.lt.s32.totalorder %v2116, %v1435
        %v2124 = vsel %vm2123, %v2116, %v1435
        %vm2125 = vcmp.lt.s32.totalorder %v2118, %v1436
        %v2126 = vsel %vm2125, %v2118, %v1436
        %vm2127 = vcmp.lt.s32.totalorder %v2120, %v1437
        %v2128 = vsel %vm2127, %v2120, %v1437
        %vm2129 = vcmp.lt.s32.totalorder %v2122, %v1438
        %v2130 = vsel %vm2129, %v2122, %v1438
        %vm2131 = vcmp.lt.s32.totalorder %v2124, %v1439
        %v2132 = vsel %vm2131, %v2124, %v1439
        %vm2133 = vcmp.lt.s32.totalorder %v2126, %v1440
        %v2134 = vsel %vm2133, %v2126, %v1440
        %vm2135 = vcmp.lt.s32.totalorder %v2128, %v1441
        %v2136 = vsel %vm2135, %v2128, %v1441
        %vm2137 = vcmp.lt.s32.totalorder %v2130, %v1442
        %v2138 = vsel %vm2137, %v2130, %v1442
        %vm2139 = vcmp.lt.s32.totalorder %v2132, %v1443
        %v2140 = vsel %vm2139, %v2132, %v1443
        %vm2141 = vcmp.lt.s32.totalorder %v2134, %v1444
        %v2142 = vsel %vm2141, %v2134, %v1444
        %vm2143 = vcmp.lt.s32.totalorder %v2136, %v1445
        %v2144 = vsel %vm2143, %v2136, %v1445
        %vm2145 = vcmp.lt.s32.totalorder %v2138, %v1446
        %v2146 = vsel %vm2145, %v2138, %v1446
        %vm2147 = vcmp.lt.s32.totalorder %v2140, %v1447
        %v2148 = vsel %vm2147, %v2140, %v1447
        %vm2149 = vcmp.lt.s32.totalorder %v2142, %v1448
        %v2150 = vsel %vm2149, %v2142, %v1448
        %vm2151 = vcmp.lt.s32.totalorder %v2144, %v1449
        %v2152 = vsel %vm2151, %v2144, %v1449
        %vm2153 = vcmp.lt.s32.totalorder %v2146, %v1450
        %v2154 = vsel %vm2153, %v2146, %v1450
        %vm2155 = vcmp.lt.s32.totalorder %v2148, %v1451
        %v2156 = vsel %vm2155, %v2148, %v1451
        %vm2157 = vcmp.lt.s32.totalorder %v2150, %v1452
        %v2158 = vsel %vm2157, %v2150, %v1452
        %vm2159 = vcmp.lt.s32.totalorder %v2152, %v1453
        %v2160 = vsel %vm2159, %v2152, %v1453
        %vm2161 = vcmp.lt.s32.totalorder %v2154, %v1454
        %v2162 = vsel %vm2161, %v2154, %v1454
        %vm2163 = vcmp.lt.s32.totalorder %v2156, %v1455
        %v2164 = vsel %vm2163, %v2156, %v1455
        %vm2165 = vcmp.lt.s32.totalorder %v2158, %v1456
        %v2166 = vsel %vm2165, %v2158, %v1456
        %vm2167 = vcmp.lt.s32.totalorder %v2160, %v1457
        %v2168 = vsel %vm2167, %v2160, %v1457
        %vm2169 = vcmp.lt.s32.totalorder %v2162, %v1458
        %v2170 = vsel %vm2169, %v2162, %v1458
        %vm2171 = vcmp.lt.s32.totalorder %v2164, %v1459
        %v2172 = vsel %vm2171, %v2164, %v1459
        %vm2173 = vcmp.lt.s32.totalorder %v2166, %v1460
        %v2174 = vsel %vm2173, %v2166, %v1460
        %vm2175 = vcmp.lt.s32.totalorder %v2168, %v1461
        %v2176 = vsel %vm2175, %v2168, %v1461
        %vm2177 = vcmp.lt.s32.totalorder %v2170, %v1462
        %v2178 = vsel %vm2177, %v2170, %v1462
        %vm2179 = vcmp.lt.s32.totalorder %v2172, %v1463
        %v2180 = vsel %vm2179, %v2172, %v1463
        %vm2181 = vcmp.lt.s32.totalorder %v2174, %v1464
        %v2182 = vsel %vm2181, %v2174, %v1464
        %vm2183 = vcmp.lt.s32.totalorder %v2176, %v1465
        %v2184 = vsel %vm2183, %v2176, %v1465
        %vm2185 = vcmp.lt.s32.totalorder %v2178, %v1466
        %v2186 = vsel %vm2185, %v2178, %v1466
        %vm2187 = vcmp.lt.s32.totalorder %v2180, %v1467
        %v2188 = vsel %vm2187, %v2180, %v1467
        %vm2189 = vcmp.lt.s32.totalorder %v2182, %v1468
        %v2190 = vsel %vm2189, %v2182, %v1468
        %vm2191 = vcmp.lt.s32.totalorder %v2184, %v1469
        %v2192 = vsel %vm2191, %v2184, %v1469
        %vm2193 = vcmp.lt.s32.totalorder %v2186, %v1470
        %v2194 = vsel %vm2193, %v2186, %v1470
        %vm2195 = vcmp.lt.s32.totalorder %v2188, %v1471
        %v2196 = vsel %vm2195, %v2188, %v1471
        %vm2197 = vcmp.lt.s32.totalorder %v2190, %v1472
        %v2198 = vsel %vm2197, %v2190, %v1472
        %vm2199 = vcmp.lt.s32.totalorder %v2192, %v1473
        %v2200 = vsel %vm2199, %v2192, %v1473
        %vm2201 = vcmp.lt.s32.totalorder %v2194, %v1474
        %v2202 = vsel %vm2201, %v2194, %v1474
        %vm2203 = vcmp.lt.s32.totalorder %v2196, %v1475
        %v2204 = vsel %vm2203, %v2196, %v1475
        %vm2205 = vcmp.lt.s32.totalorder %v2198, %v1476
        %v2206 = vsel %vm2205, %v2198, %v1476
        %vm2207 = vcmp.lt.s32.totalorder %v2200, %v1477
        %v2208 = vsel %vm2207, %v2200, %v1477
        %vm2209 = vcmp.lt.s32.totalorder %v2202, %v1478
        %v2210 = vsel %vm2209, %v2202, %v1478
        %vm2211 = vcmp.lt.s32.totalorder %v2204, %v1479
        %v2212 = vsel %vm2211, %v2204, %v1479
        %vm2213 = vcmp.lt.s32.totalorder %v2206, %v1480
        %v2214 = vsel %vm2213, %v2206, %v1480
        %vm2215 = vcmp.lt.s32.totalorder %v2208, %v1481
        %v2216 = vsel %vm2215, %v2208, %v1481
        %vm2217 = vcmp.lt.s32.totalorder %v2210, %v1482
        %v2218 = vsel %vm2217, %v2210, %v1482
        %vm2219 = vcmp.lt.s32.totalorder %v2212, %v1483
        %v2220 = vsel %vm2219, %v2212, %v1483
        %vm2221 = vcmp.lt.s32.totalorder %v2214, %v1484
        %v2222 = vsel %vm2221, %v2214, %v1484
        %vm2223 = vcmp.lt.s32.totalorder %v2216, %v1485
        %v2224 = vsel %vm2223, %v2216, %v1485
        %vm2225 = vcmp.lt.s32.totalorder %v2218, %v1486
        %v2226 = vsel %vm2225, %v2218, %v1486
        %vm2227 = vcmp.lt.s32.totalorder %v2220, %v1487
        %v2228 = vsel %vm2227, %v2220, %v1487
        %vm2229 = vcmp.lt.s32.totalorder %v2222, %v1488
        %v2230 = vsel %vm2229, %v2222, %v1488
        %vm2231 = vcmp.lt.s32.totalorder %v2224, %v1489
        %v2232 = vsel %vm2231, %v2224, %v1489
        %vm2233 = vcmp.lt.s32.totalorder %v2226, %v1490
        %v2234 = vsel %vm2233, %v2226, %v1490
        %vm2235 = vcmp.lt.s32.totalorder %v2228, %v1491
        %v2236 = vsel %vm2235, %v2228, %v1491
        %vm2237 = vcmp.lt.s32.totalorder %v2230, %v1492
        %v2238 = vsel %vm2237, %v2230, %v1492
        %vm2239 = vcmp.lt.s32.totalorder %v2232, %v1493
        %v2240 = vsel %vm2239, %v2232, %v1493
        %vm2241 = vcmp.lt.s32.totalorder %v2234, %v1494
        %v2242 = vsel %vm2241, %v2234, %v1494
        %vm2243 = vcmp.lt.s32.totalorder %v2236, %v1495
        %v2244 = vsel %vm2243, %v2236, %v1495
        %vm2245 = vcmp.lt.s32.totalorder %v2238, %v1496
        %v2246 = vsel %vm2245, %v2238, %v1496
        %vm2247 = vcmp.lt.s32.totalorder %v2240, %v1497
        %v2248 = vsel %vm2247, %v2240, %v1497
        %vm2249 = vcmp.lt.s32.totalorder %v2242, %v1498
        %v2250 = vsel %vm2249, %v2242, %v1498
        %vm2251 = vcmp.lt.s32.totalorder %v2244, %v1499
        %v2252 = vsel %vm2251, %v2244, %v1499
        %vm2253 = vcmp.lt.s32.totalorder %v2246, %v1500
        %v2254 = vsel %vm2253, %v2246, %v1500
        %vm2255 = vcmp.lt.s32.totalorder %v2248, %v1501
        %v2256 = vsel %vm2255, %v2248, %v1501
        %vm2257 = vcmp.lt.s32.totalorder %v2250, %v1502
        %v2258 = vsel %vm2257, %v2250, %v1502
        %vm2259 = vcmp.lt.s32.totalorder %v2252, %v1503
        %v2260 = vsel %vm2259, %v2252, %v1503
        %vm2261 = vcmp.lt.s32.totalorder %v2254, %v1504
        %v2262 = vsel %vm2261, %v2254, %v1504
        %vm2263 = vcmp.lt.s32.totalorder %v2256, %v1505
        %v2264 = vsel %vm2263, %v2256, %v1505
        %vm2265 = vcmp.lt.s32.totalorder %v2258, %v1506
        %v2266 = vsel %vm2265, %v2258, %v1506
        %vm2267 = vcmp.lt.s32.totalorder %v2260, %v1507
        %v2268 = vsel %vm2267, %v2260, %v1507
        %vm2269 = vcmp.lt.s32.totalorder %v2262, %v1508
        %v2270 = vsel %vm2269, %v2262, %v1508
        %vm2271 = vcmp.lt.s32.totalorder %v2264, %v1509
        %v2272 = vsel %vm2271, %v2264, %v1509
        %vm2273 = vcmp.lt.s32.totalorder %v2266, %v1510
        %v2274 = vsel %vm2273, %v2266, %v1510
        %vm2275 = vcmp.lt.s32.totalorder %v2268, %v1511
        %v2276 = vsel %vm2275, %v2268, %v1511
        %vm2277 = vcmp.lt.s32.totalorder %v2270, %v1512
        %v2278 = vsel %vm2277, %v2270, %v1512
        %vm2279 = vcmp.lt.s32.totalorder %v2272, %v1513
        %v2280 = vsel %vm2279, %v2272, %v1513
        %vm2281 = vcmp.lt.s32.totalorder %v2274, %v1514
        %v2282 = vsel %vm2281, %v2274, %v1514
        %vm2283 = vcmp.lt.s32.totalorder %v2276, %v1515
        %v2284 = vsel %vm2283, %v2276, %v1515
        %vm2285 = vcmp.lt.s32.totalorder %v2278, %v1516
        %v2286 = vsel %vm2285, %v2278, %v1516
        %vm2287 = vcmp.lt.s32.totalorder %v2280, %v1517
        %v2288 = vsel %vm2287, %v2280, %v1517
        %vm2289 = vcmp.lt.s32.totalorder %v2282, %v1518
        %v2290 = vsel %vm2289, %v2282, %v1518
        %vm2291 = vcmp.lt.s32.totalorder %v2284, %v1519
        %v2292 = vsel %vm2291, %v2284, %v1519
        %vm2293 = vcmp.lt.s32.totalorder %v2286, %v1520
        %v2294 = vsel %vm2293, %v2286, %v1520
        %vm2295 = vcmp.lt.s32.totalorder %v2288, %v1521
        %v2296 = vsel %vm2295, %v2288, %v1521
        %vm2297 = vcmp.lt.s32.totalorder %v2290, %v1522
        %v2298 = vsel %vm2297, %v2290, %v1522
        %vm2299 = vcmp.lt.s32.totalorder %v2292, %v1523
        %v2300 = vsel %vm2299, %v2292, %v1523
        %vm2301 = vcmp.lt.s32.totalorder %v2294, %v1524
        %v2302 = vsel %vm2301, %v2294, %v1524
        %vm2303 = vcmp.lt.s32.totalorder %v2296, %v1525
        %v2304 = vsel %vm2303, %v2296, %v1525
        %vm2305 = vcmp.lt.s32.totalorder %v2298, %v1526
        %v2306 = vsel %vm2305, %v2298, %v1526
        %vm2307 = vcmp.lt.s32.totalorder %v2300, %v1527
        %v2308 = vsel %vm2307, %v2300, %v1527
        %vm2309 = vcmp.lt.s32.totalorder %v2302, %v1528
        %v2310 = vsel %vm2309, %v2302, %v1528
        %vm2311 = vcmp.lt.s32.totalorder %v2304, %v1529
        %v2312 = vsel %vm2311, %v2304, %v1529
        %vm2313 = vcmp.lt.s32.totalorder %v2306, %v1530
        %v2314 = vsel %vm2313, %v2306, %v1530
        %vm2315 = vcmp.lt.s32.totalorder %v2308, %v1531
        %v2316 = vsel %vm2315, %v2308, %v1531
        %vm2317 = vcmp.lt.s32.totalorder %v2310, %v1532
        %v2318 = vsel %vm2317, %v2310, %v1532
        %vm2319 = vcmp.lt.s32.totalorder %v2312, %v1533
        %v2320 = vsel %vm2319, %v2312, %v1533
        %vm2321 = vcmp.lt.s32.totalorder %v2314, %v1534
        %v2322 = vsel %vm2321, %v2314, %v1534
        %vm2323 = vcmp.lt.s32.totalorder %v2316, %v1535
        %v2324 = vsel %vm2323, %v2316, %v1535
        %vm2325 = vcmp.lt.s32.totalorder %v2318, %v1536
        %v2326 = vsel %vm2325, %v2318, %v1536
        %vm2327 = vcmp.lt.s32.totalorder %v2320, %v1537
        %v2328 = vsel %vm2327, %v2320, %v1537
        %vm2329 = vcmp.lt.s32.totalorder %v2322, %v1538
        %v2330 = vsel %vm2329, %v2322, %v1538
        %vm2331 = vcmp.lt.s32.totalorder %v2324, %v1539
        %v2332 = vsel %vm2331, %v2324, %v1539
        %vm2333 = vcmp.lt.s32.totalorder %v2326, %v1540
        %v2334 = vsel %vm2333, %v2326, %v1540
        %vm2335 = vcmp.lt.s32.totalorder %v2328, %v1541
        %v2336 = vsel %vm2335, %v2328, %v1541
        %vm2337 = vcmp.lt.s32.totalorder %v2330, %v1542
        %v2338 = vsel %vm2337, %v2330, %v1542
        %vm2339 = vcmp.lt.s32.totalorder %v2332, %v1543
        %v2340 = vsel %vm2339, %v2332, %v1543
        %vm2341 = vcmp.lt.s32.totalorder %v2334, %v1544
        %v2342 = vsel %vm2341, %v2334, %v1544
        %vm2343 = vcmp.lt.s32.totalorder %v2336, %v1545
        %v2344 = vsel %vm2343, %v2336, %v1545
        %vm2345 = vcmp.lt.s32.totalorder %v2338, %v1546
        %v2346 = vsel %vm2345, %v2338, %v1546
        %vm2347 = vcmp.lt.s32.totalorder %v2340, %v1547
        %v2348 = vsel %vm2347, %v2340, %v1547
        %vm2349 = vcmp.lt.s32.totalorder %v2342, %v1548
        %v2350 = vsel %vm2349, %v2342, %v1548
        %vm2351 = vcmp.lt.s32.totalorder %v2344, %v1549
        %v2352 = vsel %vm2351, %v2344, %v1549
        %vm2353 = vcmp.lt.s32.totalorder %v2346, %v1550
        %v2354 = vsel %vm2353, %v2346, %v1550
        %vm2355 = vcmp.lt.s32.totalorder %v2348, %v1551
        %v2356 = vsel %vm2355, %v2348, %v1551
        %vm2357 = vcmp.lt.s32.totalorder %v2350, %v1552
        %v2358 = vsel %vm2357, %v2350, %v1552
        %vm2359 = vcmp.lt.s32.totalorder %v2352, %v1553
        %v2360 = vsel %vm2359, %v2352, %v1553
        %vm2361 = vcmp.lt.s32.totalorder %v2354, %v1554
        %v2362 = vsel %vm2361, %v2354, %v1554
        %vm2363 = vcmp.lt.s32.totalorder %v2356, %v1555
        %v2364 = vsel %vm2363, %v2356, %v1555
        %vm2365 = vcmp.lt.s32.totalorder %v2358, %v1556
        %v2366 = vsel %vm2365, %v2358, %v1556
        %vm2367 = vcmp.lt.s32.totalorder %v2360, %v1557
        %v2368 = vsel %vm2367, %v2360, %v1557
        %vm2369 = vcmp.lt.s32.totalorder %v2362, %v1558
        %v2370 = vsel %vm2369, %v2362, %v1558
        %vm2371 = vcmp.lt.s32.totalorder %v2364, %v1559
        %v2372 = vsel %vm2371, %v2364, %v1559
        %vm2373 = vcmp.lt.s32.totalorder %v2366, %v1560
        %v2374 = vsel %vm2373, %v2366, %v1560
        %vm2375 = vcmp.lt.s32.totalorder %v2368, %v1561
        %v2376 = vsel %vm2375, %v2368, %v1561
        %vm2377 = vcmp.lt.s32.totalorder %v2370, %v1562
        %v2378 = vsel %vm2377, %v2370, %v1562
        %vm2379 = vcmp.lt.s32.totalorder %v2372, %v1563
        %v2380 = vsel %vm2379, %v2372, %v1563
        %vm2381 = vcmp.lt.s32.totalorder %v2374, %v1564
        %v2382 = vsel %vm2381, %v2374, %v1564
        %vm2383 = vcmp.lt.s32.totalorder %v2376, %v1565
        %v2384 = vsel %vm2383, %v2376, %v1565
        %vm2385 = vcmp.lt.s32.totalorder %v2378, %v1566
        %v2386 = vsel %vm2385, %v2378, %v1566
        %vm2387 = vcmp.lt.s32.totalorder %v2380, %v1567
        %v2388 = vsel %vm2387, %v2380, %v1567
        %vm2389 = vcmp.lt.s32.totalorder %v2382, %v1568
        %v2390 = vsel %vm2389, %v2382, %v1568
        %vm2391 = vcmp.lt.s32.totalorder %v2384, %v1569
        %v2392 = vsel %vm2391, %v2384, %v1569
        %vm2393 = vcmp.lt.s32.totalorder %v2386, %v1570
        %v2394 = vsel %vm2393, %v2386, %v1570
        %vm2395 = vcmp.lt.s32.totalorder %v2388, %v1571
        %v2396 = vsel %vm2395, %v2388, %v1571
        %vm2397 = vcmp.lt.s32.totalorder %v2390, %v1572
        %v2398 = vsel %vm2397, %v2390, %v1572
        %vm2399 = vcmp.lt.s32.totalorder %v2392, %v1573
        %v2400 = vsel %vm2399, %v2392, %v1573
        %vm2401 = vcmp.lt.s32.totalorder %v2394, %v1574
        %v2402 = vsel %vm2401, %v2394, %v1574
        %vm2403 = vcmp.lt.s32.totalorder %v2396, %v1575
        %v2404 = vsel %vm2403, %v2396, %v1575
        %vm2405 = vcmp.lt.s32.totalorder %v2398, %v1576
        %v2406 = vsel %vm2405, %v2398, %v1576
        %vm2407 = vcmp.lt.s32.totalorder %v2400, %v1577
        %v2408 = vsel %vm2407, %v2400, %v1577
        %vm2409 = vcmp.lt.s32.totalorder %v2402, %v1578
        %v2410 = vsel %vm2409, %v2402, %v1578
        %vm2411 = vcmp.lt.s32.totalorder %v2404, %v1579
        %v2412 = vsel %vm2411, %v2404, %v1579
        %vm2413 = vcmp.lt.s32.totalorder %v2406, %v1580
        %v2414 = vsel %vm2413, %v2406, %v1580
        %vm2415 = vcmp.lt.s32.totalorder %v2408, %v1581
        %v2416 = vsel %vm2415, %v2408, %v1581
        %vm2417 = vcmp.lt.s32.totalorder %v2410, %v1582
        %v2418 = vsel %vm2417, %v2410, %v1582
        %vm2419 = vcmp.lt.s32.totalorder %v2412, %v1583
        %v2420 = vsel %vm2419, %v2412, %v1583
        %vm2421 = vcmp.lt.s32.totalorder %v2414, %v1584
        %v2422 = vsel %vm2421, %v2414, %v1584
        %vm2423 = vcmp.lt.s32.totalorder %v2416, %v1585
        %v2424 = vsel %vm2423, %v2416, %v1585
        %vm2425 = vcmp.lt.s32.totalorder %v2418, %v1586
        %v2426 = vsel %vm2425, %v2418, %v1586
        %vm2427 = vcmp.lt.s32.totalorder %v2420, %v1587
        %v2428 = vsel %vm2427, %v2420, %v1587
        %vm2429 = vcmp.lt.s32.totalorder %v2422, %v1588
        %v2430 = vsel %vm2429, %v2422, %v1588
        %vm2431 = vcmp.lt.s32.totalorder %v2424, %v1589
        %v2432 = vsel %vm2431, %v2424, %v1589
        %vm2433 = vcmp.lt.s32.totalorder %v2426, %v1590
        %v2434 = vsel %vm2433, %v2426, %v1590
        %vm2435 = vcmp.lt.s32.totalorder %v2428, %v1591
        %v2436 = vsel %vm2435, %v2428, %v1591
        %vm2437 = vcmp.lt.s32.totalorder %v2430, %v1592
        %v2438 = vsel %vm2437, %v2430, %v1592
        %vm2439 = vcmp.lt.s32.totalorder %v2432, %v1593
        %v2440 = vsel %vm2439, %v2432, %v1593
        %vm2441 = vcmp.lt.s32.totalorder %v2434, %v1594
        %v2442 = vsel %vm2441, %v2434, %v1594
        %vm2443 = vcmp.lt.s32.totalorder %v2436, %v1595
        %v2444 = vsel %vm2443, %v2436, %v1595
        %vm2445 = vcmp.lt.s32.totalorder %v2438, %v1596
        %v2446 = vsel %vm2445, %v2438, %v1596
        %vm2447 = vcmp.lt.s32.totalorder %v2440, %v1597
        %v2448 = vsel %vm2447, %v2440, %v1597
        %vm2449 = vcmp.lt.s32.totalorder %v2442, %v1598
        %v2450 = vsel %vm2449, %v2442, %v1598
        %vm2451 = vcmp.lt.s32.totalorder %v2444, %v1599
        %v2452 = vsel %vm2451, %v2444, %v1599
        %vm2453 = vcmp.lt.s32.totalorder %v2446, %v1600
        %v2454 = vsel %vm2453, %v2446, %v1600
        %vm2455 = vcmp.lt.s32.totalorder %v2448, %v1601
        %v2456 = vsel %vm2455, %v2448, %v1601
        %vm2457 = vcmp.lt.s32.totalorder %v2450, %v1602
        %v2458 = vsel %vm2457, %v2450, %v1602
        %vm2459 = vcmp.lt.s32.totalorder %v2452, %v1603
        %v2460 = vsel %vm2459, %v2452, %v1603
        %vm2461 = vcmp.lt.s32.totalorder %v2454, %v1604
        %v2462 = vsel %vm2461, %v2454, %v1604
        %vm2463 = vcmp.lt.s32.totalorder %v2456, %v1605
        %v2464 = vsel %vm2463, %v2456, %v1605
        %vm2465 = vcmp.lt.s32.totalorder %v2458, %v1606
        %v2466 = vsel %vm2465, %v2458, %v1606
        %vm2467 = vcmp.lt.s32.totalorder %v2460, %v1607
        %v2468 = vsel %vm2467, %v2460, %v1607
        %vm2469 = vcmp.lt.s32.totalorder %v2462, %v1608
        %v2470 = vsel %vm2469, %v2462, %v1608
        %vm2471 = vcmp.lt.s32.totalorder %v2464, %v1609
        %v2472 = vsel %vm2471, %v2464, %v1609
        %vm2473 = vcmp.lt.s32.totalorder %v2466, %v1610
        %v2474 = vsel %vm2473, %v2466, %v1610
        %vm2475 = vcmp.lt.s32.totalorder %v2468, %v1611
        %v2476 = vsel %vm2475, %v2468, %v1611
        %vm2477 = vcmp.lt.s32.totalorder %v2470, %v1612
        %v2478 = vsel %vm2477, %v2470, %v1612
        %vm2479 = vcmp.lt.s32.totalorder %v2472, %v1613
        %v2480 = vsel %vm2479, %v2472, %v1613
        %vm2481 = vcmp.lt.s32.totalorder %v2474, %v1614
        %v2482 = vsel %vm2481, %v2474, %v1614
        %vm2483 = vcmp.lt.s32.totalorder %v2476, %v1615
        %v2484 = vsel %vm2483, %v2476, %v1615
        %vm2485 = vcmp.lt.s32.totalorder %v2478, %v1616
        %v2486 = vsel %vm2485, %v2478, %v1616
        %vm2487 = vcmp.lt.s32.totalorder %v2480, %v1617
        %v2488 = vsel %vm2487, %v2480, %v1617
        %vm2489 = vcmp.lt.s32.totalorder %v2482, %v1618
        %v2490 = vsel %vm2489, %v2482, %v1618
        %vm2491 = vcmp.lt.s32.totalorder %v2484, %v1619
        %v2492 = vsel %vm2491, %v2484, %v1619
        %vm2493 = vcmp.lt.s32.totalorder %v2486, %v1620
        %v2494 = vsel %vm2493, %v2486, %v1620
        %vm2495 = vcmp.lt.s32.totalorder %v2488, %v1621
        %v2496 = vsel %vm2495, %v2488, %v1621
        %vm2497 = vcmp.lt.s32.totalorder %v2490, %v1622
        %v2498 = vsel %vm2497, %v2490, %v1622
        %vm2499 = vcmp.lt.s32.totalorder %v2492, %v1623
        %v2500 = vsel %vm2499, %v2492, %v1623
        %vm2501 = vcmp.lt.s32.totalorder %v2494, %v1624
        %v2502 = vsel %vm2501, %v2494, %v1624
        %vm2503 = vcmp.lt.s32.totalorder %v2496, %v1625
        %v2504 = vsel %vm2503, %v2496, %v1625
        %vm2505 = vcmp.lt.s32.totalorder %v2498, %v1626
        %v2506 = vsel %vm2505, %v2498, %v1626
        %vm2507 = vcmp.lt.s32.totalorder %v2500, %v1627
        %v2508 = vsel %vm2507, %v2500, %v1627
        %vm2509 = vcmp.lt.s32.totalorder %v2502, %v1628
        %v2510 = vsel %vm2509, %v2502, %v1628
        %vm2511 = vcmp.lt.s32.totalorder %v2504, %v1629
        %v2512 = vsel %vm2511, %v2504, %v1629
        %vm2513 = vcmp.lt.s32.totalorder %v2506, %v1630
        %v2514 = vsel %vm2513, %v2506, %v1630
        %vm2515 = vcmp.lt.s32.totalorder %v2508, %v1631
        %v2516 = vsel %vm2515, %v2508, %v1631
        %vm2517 = vcmp.lt.s32.totalorder %v2510, %v1632
        %v2518 = vsel %vm2517, %v2510, %v1632
        %vm2519 = vcmp.lt.s32.totalorder %v2512, %v1633
        %v2520 = vsel %vm2519, %v2512, %v1633
        %vm2521 = vcmp.lt.s32.totalorder %v2514, %v1634
        %v2522 = vsel %vm2521, %v2514, %v1634
        %vm2523 = vcmp.lt.s32.totalorder %v2516, %v1635
        %v2524 = vsel %vm2523, %v2516, %v1635
        %vm2525 = vcmp.lt.s32.totalorder %v2518, %v1636
        %v2526 = vsel %vm2525, %v2518, %v1636
        %vm2527 = vcmp.lt.s32.totalorder %v2520, %v1637
        %v2528 = vsel %vm2527, %v2520, %v1637
        %vm2529 = vcmp.lt.s32.totalorder %v2522, %v1638
        %v2530 = vsel %vm2529, %v2522, %v1638
        %vm2531 = vcmp.lt.s32.totalorder %v2524, %v1639
        %v2532 = vsel %vm2531, %v2524, %v1639
        %vm2533 = vcmp.lt.s32.totalorder %v2526, %v1640
        %v2534 = vsel %vm2533, %v2526, %v1640
        %vm2535 = vcmp.lt.s32.totalorder %v2528, %v1641
        %v2536 = vsel %vm2535, %v2528, %v1641
        %vm2537 = vcmp.lt.s32.totalorder %v2530, %v1642
        %v2538 = vsel %vm2537, %v2530, %v1642
        %vm2539 = vcmp.lt.s32.totalorder %v2532, %v1643
        %v2540 = vsel %vm2539, %v2532, %v1643
        %vm2541 = vcmp.lt.s32.totalorder %v2534, %v1644
        %v2542 = vsel %vm2541, %v2534, %v1644
        %vm2543 = vcmp.lt.s32.totalorder %v2536, %v1645
        %v2544 = vsel %vm2543, %v2536, %v1645
        %vm2545 = vcmp.lt.s32.totalorder %v2538, %v1646
        %v2546 = vsel %vm2545, %v2538, %v1646
        %vm2547 = vcmp.lt.s32.totalorder %v2540, %v1647
        %v2548 = vsel %vm2547, %v2540, %v1647
        %vm2549 = vcmp.lt.s32.totalorder %v2542, %v1648
        %v2550 = vsel %vm2549, %v2542, %v1648
        %vm2551 = vcmp.lt.s32.totalorder %v2544, %v1649
        %v2552 = vsel %vm2551, %v2544, %v1649
        %vm2553 = vcmp.lt.s32.totalorder %v2546, %v1650
        %v2554 = vsel %vm2553, %v2546, %v1650
        %vm2555 = vcmp.lt.s32.totalorder %v2548, %v1651
        %v2556 = vsel %vm2555, %v2548, %v1651
        %vm2557 = vcmp.lt.s32.totalorder %v2550, %v1652
        %v2558 = vsel %vm2557, %v2550, %v1652
        %vm2559 = vcmp.lt.s32.totalorder %v2552, %v1653
        %v2560 = vsel %vm2559, %v2552, %v1653
        %vm2561 = vcmp.lt.s32.totalorder %v2554, %v1654
        %v2562 = vsel %vm2561, %v2554, %v1654
        %vm2563 = vcmp.lt.s32.totalorder %v2556, %v1655
        %v2564 = vsel %vm2563, %v2556, %v1655
        %vm2565 = vcmp.lt.s32.totalorder %v2558, %v1656
        %v2566 = vsel %vm2565, %v2558, %v1656
        %vm2567 = vcmp.lt.s32.totalorder %v2560, %v1657
        %v2568 = vsel %vm2567, %v2560, %v1657
        %vm2569 = vcmp.lt.s32.totalorder %v2562, %v1658
        %v2570 = vsel %vm2569, %v2562, %v1658
        %vm2571 = vcmp.lt.s32.totalorder %v2564, %v1659
        %v2572 = vsel %vm2571, %v2564, %v1659
        %vm2573 = vcmp.lt.s32.totalorder %v2566, %v1660
        %v2574 = vsel %vm2573, %v2566, %v1660
        %vm2575 = vcmp.lt.s32.totalorder %v2568, %v1661
        %v2576 = vsel %vm2575, %v2568, %v1661
        %vm2577 = vcmp.lt.s32.totalorder %v2570, %v1662
        %v2578 = vsel %vm2577, %v2570, %v1662
        %vm2579 = vcmp.lt.s32.totalorder %v2572, %v1663
        %v2580 = vsel %vm2579, %v2572, %v1663
        %vm2581 = vcmp.lt.s32.totalorder %v2574, %v1664
        %v2582 = vsel %vm2581, %v2574, %v1664
        %vm2583 = vcmp.lt.s32.totalorder %v2576, %v1665
        %v2584 = vsel %vm2583, %v2576, %v1665
        %vm2585 = vcmp.lt.s32.totalorder %v2578, %v1666
        %v2586 = vsel %vm2585, %v2578, %v1666
        %vm2587 = vcmp.lt.s32.totalorder %v2580, %v1667
        %v2588 = vsel %vm2587, %v2580, %v1667
        %vm2589 = vcmp.lt.s32.totalorder %v2582, %v1668
        %v2590 = vsel %vm2589, %v2582, %v1668
        %vm2591 = vcmp.lt.s32.totalorder %v2584, %v1669
        %v2592 = vsel %vm2591, %v2584, %v1669
        %vm2593 = vcmp.lt.s32.totalorder %v2586, %v1670
        %v2594 = vsel %vm2593, %v2586, %v1670
        %vm2595 = vcmp.lt.s32.totalorder %v2588, %v1671
        %v2596 = vsel %vm2595, %v2588, %v1671
        %vm2597 = vcmp.lt.s32.totalorder %v2590, %v1672
        %v2598 = vsel %vm2597, %v2590, %v1672
        %vm2599 = vcmp.lt.s32.totalorder %v2592, %v1673
        %v2600 = vsel %vm2599, %v2592, %v1673
        %vm2601 = vcmp.lt.s32.totalorder %v2594, %v1674
        %v2602 = vsel %vm2601, %v2594, %v1674
        %vm2603 = vcmp.lt.s32.totalorder %v2596, %v1675
        %v2604 = vsel %vm2603, %v2596, %v1675
        %vm2605 = vcmp.lt.s32.totalorder %v2598, %v1676
        %v2606 = vsel %vm2605, %v2598, %v1676
        %vm2607 = vcmp.lt.s32.totalorder %v2600, %v1677
        %v2608 = vsel %vm2607, %v2600, %v1677
        %vm2609 = vcmp.lt.s32.totalorder %v2602, %v1678
        %v2610 = vsel %vm2609, %v2602, %v1678
        %vm2611 = vcmp.lt.s32.totalorder %v2604, %v1679
        %v2612 = vsel %vm2611, %v2604, %v1679
        %vm2613 = vcmp.lt.s32.totalorder %v2606, %v1680
        %v2614 = vsel %vm2613, %v2606, %v1680
        %vm2615 = vcmp.lt.s32.totalorder %v2608, %v1681
        %v2616 = vsel %vm2615, %v2608, %v1681
        %vm2617 = vcmp.lt.s32.totalorder %v2610, %v1682
        %v2618 = vsel %vm2617, %v2610, %v1682
        %vm2619 = vcmp.lt.s32.totalorder %v2612, %v1683
        %v2620 = vsel %vm2619, %v2612, %v1683
        %vm2621 = vcmp.lt.s32.totalorder %v2614, %v1684
        %v2622 = vsel %vm2621, %v2614, %v1684
        %vm2623 = vcmp.lt.s32.totalorder %v2616, %v1685
        %v2624 = vsel %vm2623, %v2616, %v1685
        %vm2625 = vcmp.lt.s32.totalorder %v2618, %v1686
        %v2626 = vsel %vm2625, %v2618, %v1686
        %vm2627 = vcmp.lt.s32.totalorder %v2620, %v1687
        %v2628 = vsel %vm2627, %v2620, %v1687
        %vm2629 = vcmp.lt.s32.totalorder %v2622, %v1688
        %v2630 = vsel %vm2629, %v2622, %v1688
        %vm2631 = vcmp.lt.s32.totalorder %v2624, %v1689
        %v2632 = vsel %vm2631, %v2624, %v1689
        %vm2633 = vcmp.lt.s32.totalorder %v2626, %v1690
        %v2634 = vsel %vm2633, %v2626, %v1690
        %vm2635 = vcmp.lt.s32.totalorder %v2628, %v1691
        %v2636 = vsel %vm2635, %v2628, %v1691
        %vm2637 = vcmp.lt.s32.totalorder %v2630, %v1692
        %v2638 = vsel %vm2637, %v2630, %v1692
        %vm2639 = vcmp.lt.s32.totalorder %v2632, %v1693
        %v2640 = vsel %vm2639, %v2632, %v1693
        %vm2641 = vcmp.lt.s32.totalorder %v2634, %v1694
        %v2642 = vsel %vm2641, %v2634, %v1694
        %vm2643 = vcmp.lt.s32.totalorder %v2636, %v1695
        %v2644 = vsel %vm2643, %v2636, %v1695
        %vm2645 = vcmp.lt.s32.totalorder %v2638, %v1696
        %v2646 = vsel %vm2645, %v2638, %v1696
        %vm2647 = vcmp.lt.s32.totalorder %v2640, %v1697
        %v2648 = vsel %vm2647, %v2640, %v1697
        %vm2649 = vcmp.lt.s32.totalorder %v2642, %v1698
        %v2650 = vsel %vm2649, %v2642, %v1698
        %vm2651 = vcmp.lt.s32.totalorder %v2644, %v1699
        %v2652 = vsel %vm2651, %v2644, %v1699
        %vm2653 = vcmp.lt.s32.totalorder %v2646, %v1700
        %v2654 = vsel %vm2653, %v2646, %v1700
        %vm2655 = vcmp.lt.s32.totalorder %v2648, %v1701
        %v2656 = vsel %vm2655, %v2648, %v1701
        %vm2657 = vcmp.lt.s32.totalorder %v2650, %v1702
        %v2658 = vsel %vm2657, %v2650, %v1702
        %vm2659 = vcmp.lt.s32.totalorder %v2652, %v1703
        %v2660 = vsel %vm2659, %v2652, %v1703
        %vm2661 = vcmp.lt.s32.totalorder %v2654, %v1704
        %v2662 = vsel %vm2661, %v2654, %v1704
        %vm2663 = vcmp.lt.s32.totalorder %v2656, %v1705
        %v2664 = vsel %vm2663, %v2656, %v1705
        %vm2665 = vcmp.lt.s32.totalorder %v2658, %v1706
        %v2666 = vsel %vm2665, %v2658, %v1706
        %vm2667 = vcmp.lt.s32.totalorder %v2660, %v1707
        %v2668 = vsel %vm2667, %v2660, %v1707
        %vm2669 = vcmp.lt.s32.totalorder %v2662, %v1708
        %v2670 = vsel %vm2669, %v2662, %v1708
        %vm2671 = vcmp.lt.s32.totalorder %v2664, %v1709
        %v2672 = vsel %vm2671, %v2664, %v1709
        %vm2673 = vcmp.lt.s32.totalorder %v2666, %v1710
        %v2674 = vsel %vm2673, %v2666, %v1710
        %vm2675 = vcmp.lt.s32.totalorder %v2668, %v1711
        %v2676 = vsel %vm2675, %v2668, %v1711
        %vm2677 = vcmp.lt.s32.totalorder %v2670, %v1712
        %v2678 = vsel %vm2677, %v2670, %v1712
        %vm2679 = vcmp.lt.s32.totalorder %v2672, %v1713
        %v2680 = vsel %vm2679, %v2672, %v1713
        %vm2681 = vcmp.lt.s32.totalorder %v2674, %v1714
        %v2682 = vsel %vm2681, %v2674, %v1714
        %vm2683 = vcmp.lt.s32.totalorder %v2676, %v1715
        %v2684 = vsel %vm2683, %v2676, %v1715
        %vm2685 = vcmp.lt.s32.totalorder %v2678, %v1716
        %v2686 = vsel %vm2685, %v2678, %v1716
        %vm2687 = vcmp.lt.s32.totalorder %v2680, %v1717
        %v2688 = vsel %vm2687, %v2680, %v1717
        %vm2689 = vcmp.lt.s32.totalorder %v2682, %v1718
        %v2690 = vsel %vm2689, %v2682, %v1718
        %vm2691 = vcmp.lt.s32.totalorder %v2684, %v1719
        %v2692 = vsel %vm2691, %v2684, %v1719
        %vm2693 = vcmp.lt.s32.totalorder %v2686, %v1720
        %v2694 = vsel %vm2693, %v2686, %v1720
        %vm2695 = vcmp.lt.s32.totalorder %v2688, %v1721
        %v2696 = vsel %vm2695, %v2688, %v1721
        %vm2697 = vcmp.lt.s32.totalorder %v2690, %v1722
        %v2698 = vsel %vm2697, %v2690, %v1722
        %vm2699 = vcmp.lt.s32.totalorder %v2692, %v1723
        %v2700 = vsel %vm2699, %v2692, %v1723
        %vm2701 = vcmp.lt.s32.totalorder %v2694, %v1724
        %v2702 = vsel %vm2701, %v2694, %v1724
        %vm2703 = vcmp.lt.s32.totalorder %v2696, %v1725
        %v2704 = vsel %vm2703, %v2696, %v1725
        %vm2705 = vcmp.lt.s32.totalorder %v2698, %v1726
        %v2706 = vsel %vm2705, %v2698, %v1726
        %vm2707 = vcmp.lt.s32.totalorder %v2700, %v1727
        %v2708 = vsel %vm2707, %v2700, %v1727
        %vm2709 = vcmp.lt.s32.totalorder %v2702, %v1728
        %v2710 = vsel %vm2709, %v2702, %v1728
        %vm2711 = vcmp.lt.s32.totalorder %v2704, %v1729
        %v2712 = vsel %vm2711, %v2704, %v1729
        %vm2713 = vcmp.lt.s32.totalorder %v2706, %v1730
        %v2714 = vsel %vm2713, %v2706, %v1730
        %vm2715 = vcmp.lt.s32.totalorder %v2708, %v1731
        %v2716 = vsel %vm2715, %v2708, %v1731
        %vm2717 = vcmp.lt.s32.totalorder %v2710, %v1732
        %v2718 = vsel %vm2717, %v2710, %v1732
        %vm2719 = vcmp.lt.s32.totalorder %v2712, %v1733
        %v2720 = vsel %vm2719, %v2712, %v1733
        %vm2721 = vcmp.lt.s32.totalorder %v2714, %v1734
        %v2722 = vsel %vm2721, %v2714, %v1734
        %vm2723 = vcmp.lt.s32.totalorder %v2716, %v1735
        %v2724 = vsel %vm2723, %v2716, %v1735
        %vm2725 = vcmp.lt.s32.totalorder %v2718, %v1736
        %v2726 = vsel %vm2725, %v2718, %v1736
        %vm2727 = vcmp.lt.s32.totalorder %v2720, %v1737
        %v2728 = vsel %vm2727, %v2720, %v1737
        %vm2729 = vcmp.lt.s32.totalorder %v2722, %v1738
        %v2730 = vsel %vm2729, %v2722, %v1738
        %vm2731 = vcmp.lt.s32.totalorder %v2724, %v1739
        %v2732 = vsel %vm2731, %v2724, %v1739
        %vm2733 = vcmp.lt.s32.totalorder %v2726, %v1740
        %v2734 = vsel %vm2733, %v2726, %v1740
        %vm2735 = vcmp.lt.s32.totalorder %v2728, %v1741
        %v2736 = vsel %vm2735, %v2728, %v1741
        %vm2737 = vcmp.lt.s32.totalorder %v2730, %v1742
        %v2738 = vsel %vm2737, %v2730, %v1742
        %vm2739 = vcmp.lt.s32.totalorder %v2732, %v1743
        %v2740 = vsel %vm2739, %v2732, %v1743
        %vm2741 = vcmp.lt.s32.totalorder %v2734, %v1744
        %v2742 = vsel %vm2741, %v2734, %v1744
        %vm2743 = vcmp.lt.s32.totalorder %v2736, %v1745
        %v2744 = vsel %vm2743, %v2736, %v1745
        %vm2745 = vcmp.lt.s32.totalorder %v2738, %v1746
        %v2746 = vsel %vm2745, %v2738, %v1746
        %vm2747 = vcmp.lt.s32.totalorder %v2740, %v1747
        %v2748 = vsel %vm2747, %v2740, %v1747
        %vm2749 = vcmp.lt.s32.totalorder %v2742, %v1748
        %v2750 = vsel %vm2749, %v2742, %v1748
        %vm2751 = vcmp.lt.s32.totalorder %v2744, %v1749
        %v2752 = vsel %vm2751, %v2744, %v1749
        %vm2753 = vcmp.lt.s32.totalorder %v2746, %v1750
        %v2754 = vsel %vm2753, %v2746, %v1750
        %vm2755 = vcmp.lt.s32.totalorder %v2748, %v1751
        %v2756 = vsel %vm2755, %v2748, %v1751
        %vm2757 = vcmp.lt.s32.totalorder %v2750, %v1752
        %v2758 = vsel %vm2757, %v2750, %v1752
        %vm2759 = vcmp.lt.s32.totalorder %v2752, %v1753
        %v2760 = vsel %vm2759, %v2752, %v1753
        %vm2761 = vcmp.lt.s32.totalorder %v2754, %v1754
        %v2762 = vsel %vm2761, %v2754, %v1754
        %vm2763 = vcmp.lt.s32.totalorder %v2756, %v1755
        %v2764 = vsel %vm2763, %v2756, %v1755
        %vm2765 = vcmp.lt.s32.totalorder %v2758, %v1756
        %v2766 = vsel %vm2765, %v2758, %v1756
        %vm2767 = vcmp.lt.s32.totalorder %v2760, %v1757
        %v2768 = vsel %vm2767, %v2760, %v1757
        %vm2769 = vcmp.lt.s32.totalorder %v2762, %v1758
        %v2770 = vsel %vm2769, %v2762, %v1758
        %vm2771 = vcmp.lt.s32.totalorder %v2764, %v1759
        %v2772 = vsel %vm2771, %v2764, %v1759
        %vm2773 = vcmp.lt.s32.totalorder %v2766, %v1760
        %v2774 = vsel %vm2773, %v2766, %v1760
        %vm2775 = vcmp.lt.s32.totalorder %v2768, %v1761
        %v2776 = vsel %vm2775, %v2768, %v1761
        %vm2777 = vcmp.lt.s32.totalorder %v2770, %v1762
        %v2778 = vsel %vm2777, %v2770, %v1762
        %vm2779 = vcmp.lt.s32.totalorder %v2772, %v1763
        %v2780 = vsel %vm2779, %v2772, %v1763
        %vm2781 = vcmp.lt.s32.totalorder %v2774, %v1764
        %v2782 = vsel %vm2781, %v2774, %v1764
        %vm2783 = vcmp.lt.s32.totalorder %v2776, %v1765
        %v2784 = vsel %vm2783, %v2776, %v1765
        %vm2785 = vcmp.lt.s32.totalorder %v2778, %v1766
        %v2786 = vsel %vm2785, %v2778, %v1766
        %vm2787 = vcmp.lt.s32.totalorder %v2780, %v1767
        %v2788 = vsel %vm2787, %v2780, %v1767
        %vm2789 = vcmp.lt.s32.totalorder %v2782, %v1768
        %v2790 = vsel %vm2789, %v2782, %v1768
        %vm2791 = vcmp.lt.s32.totalorder %v2784, %v1769
        %v2792 = vsel %vm2791, %v2784, %v1769
        %vm2793 = vcmp.lt.s32.totalorder %v2786, %v1770
        %v2794 = vsel %vm2793, %v2786, %v1770
        %vm2795 = vcmp.lt.s32.totalorder %v2788, %v1771
        %v2796 = vsel %vm2795, %v2788, %v1771
        %vm2797 = vcmp.lt.s32.totalorder %v2790, %v1772
        %v2798 = vsel %vm2797, %v2790, %v1772
        %vm2799 = vcmp.lt.s32.totalorder %v2792, %v1773
        %v2800 = vsel %vm2799, %v2792, %v1773
        %vm2801 = vcmp.lt.s32.totalorder %v2794, %v1774
        %v2802 = vsel %vm2801, %v2794, %v1774
        %vm2803 = vcmp.lt.s32.totalorder %v2796, %v1775
        %v2804 = vsel %vm2803, %v2796, %v1775
        %vm2805 = vcmp.lt.s32.totalorder %v2798, %v1776
        %v2806 = vsel %vm2805, %v2798, %v1776
        %vm2807 = vcmp.lt.s32.totalorder %v2800, %v1777
        %v2808 = vsel %vm2807, %v2800, %v1777
        %vm2809 = vcmp.lt.s32.totalorder %v2802, %v1778
        %v2810 = vsel %vm2809, %v2802, %v1778
        %vm2811 = vcmp.lt.s32.totalorder %v2804, %v1779
        %v2812 = vsel %vm2811, %v2804, %v1779
        %vm2813 = vcmp.lt.s32.totalorder %v2806, %v1780
        %v2814 = vsel %vm2813, %v2806, %v1780
        %vm2815 = vcmp.lt.s32.totalorder %v2808, %v1781
        %v2816 = vsel %vm2815, %v2808, %v1781
        %vm2817 = vcmp.lt.s32.totalorder %v2810, %v1782
        %v2818 = vsel %vm2817, %v2810, %v1782
        %vm2819 = vcmp.lt.s32.totalorder %v2812, %v1783
        %v2820 = vsel %vm2819, %v2812, %v1783
        %vm2821 = vcmp.lt.s32.totalorder %v2814, %v1784
        %v2822 = vsel %vm2821, %v2814, %v1784
        %vm2823 = vcmp.lt.s32.totalorder %v2816, %v1785
        %v2824 = vsel %vm2823, %v2816, %v1785
        %vm2825 = vcmp.lt.s32.totalorder %v2818, %v1786
        %v2826 = vsel %vm2825, %v2818, %v1786
        %vm2827 = vcmp.lt.s32.totalorder %v2820, %v1787
        %v2828 = vsel %vm2827, %v2820, %v1787
        %vm2829 = vcmp.lt.s32.totalorder %v2822, %v1788
        %v2830 = vsel %vm2829, %v2822, %v1788
        %vm2831 = vcmp.lt.s32.totalorder %v2824, %v1789
        %v2832 = vsel %vm2831, %v2824, %v1789
        %vm2833 = vcmp.lt.s32.totalorder %v2826, %v1790
        %v2834 = vsel %vm2833, %v2826, %v1790
        %vm2835 = vcmp.lt.s32.totalorder %v2828, %v1791
        %v2836 = vsel %vm2835, %v2828, %v1791
        %vm2837 = vcmp.lt.s32.totalorder %v2830, %v1792
        %v2838 = vsel %vm2837, %v2830, %v1792
        %vm2839 = vcmp.lt.s32.totalorder %v2832, %v1793
        %v2840 = vsel %vm2839, %v2832, %v1793
        %vm2841 = vcmp.lt.s32.totalorder %v2834, %v1794
        %v2842 = vsel %vm2841, %v2834, %v1794
        %vm2843 = vcmp.lt.s32.totalorder %v2836, %v1795
        %v2844 = vsel %vm2843, %v2836, %v1795
        %vm2845 = vcmp.lt.s32.totalorder %v2838, %v1796
        %v2846 = vsel %vm2845, %v2838, %v1796
        %vm2847 = vcmp.lt.s32.totalorder %v2840, %v1797
        %v2848 = vsel %vm2847, %v2840, %v1797
        %vm2849 = vcmp.lt.s32.totalorder %v2842, %v1798
        %v2850 = vsel %vm2849, %v2842, %v1798
        %vm2851 = vcmp.lt.s32.totalorder %v2844, %v1799
        %v2852 = vsel %vm2851, %v2844, %v1799
        %vm2853 = vcmp.lt.s32.totalorder %v2846, %v1800
        %v2854 = vsel %vm2853, %v2846, %v1800
        %vm2855 = vcmp.lt.s32.totalorder %v2848, %v1801
        %v2856 = vsel %vm2855, %v2848, %v1801
        %vm2857 = vcmp.lt.s32.totalorder %v2850, %v1802
        %v2858 = vsel %vm2857, %v2850, %v1802
        %vm2859 = vcmp.lt.s32.totalorder %v2852, %v1803
        %v2860 = vsel %vm2859, %v2852, %v1803
        %vm2861 = vcmp.lt.s32.totalorder %v2854, %v1804
        %v2862 = vsel %vm2861, %v2854, %v1804
        %vm2863 = vcmp.lt.s32.totalorder %v2856, %v1805
        %v2864 = vsel %vm2863, %v2856, %v1805
        %vm2865 = vcmp.lt.s32.totalorder %v2858, %v1806
        %v2866 = vsel %vm2865, %v2858, %v1806
        %vm2867 = vcmp.lt.s32.totalorder %v2860, %v1807
        %v2868 = vsel %vm2867, %v2860, %v1807
        %vm2869 = vcmp.lt.s32.totalorder %v2862, %v1808
        %v2870 = vsel %vm2869, %v2862, %v1808
        %vm2871 = vcmp.lt.s32.totalorder %v2864, %v1809
        %v2872 = vsel %vm2871, %v2864, %v1809
        %vm2873 = vcmp.lt.s32.totalorder %v2866, %v1810
        %v2874 = vsel %vm2873, %v2866, %v1810
        %vm2875 = vcmp.lt.s32.totalorder %v2868, %v1811
        %v2876 = vsel %vm2875, %v2868, %v1811
        %vm2877 = vcmp.lt.s32.totalorder %v2870, %v1812
        %v2878 = vsel %vm2877, %v2870, %v1812
        %vm2879 = vcmp.lt.s32.totalorder %v2872, %v1813
        %v2880 = vsel %vm2879, %v2872, %v1813
        %vm2881 = vcmp.lt.s32.totalorder %v2874, %v1814
        %v2882 = vsel %vm2881, %v2874, %v1814
        %vm2883 = vcmp.lt.s32.totalorder %v2876, %v1815
        %v2884 = vsel %vm2883, %v2876, %v1815
        %vm2885 = vcmp.lt.s32.totalorder %v2878, %v1816
        %v2886 = vsel %vm2885, %v2878, %v1816
        %vm2887 = vcmp.lt.s32.totalorder %v2880, %v1817
        %v2888 = vsel %vm2887, %v2880, %v1817
        %vm2889 = vcmp.lt.s32.totalorder %v2882, %v1818
        %v2890 = vsel %vm2889, %v2882, %v1818
        %vm2891 = vcmp.lt.s32.totalorder %v2884, %v1819
        %v2892 = vsel %vm2891, %v2884, %v1819
        %vm2893 = vcmp.lt.s32.totalorder %v2886, %v1820
        %v2894 = vsel %vm2893, %v2886, %v1820
        %vm2895 = vcmp.lt.s32.totalorder %v2888, %v1821
        %v2896 = vsel %vm2895, %v2888, %v1821
        %vm2897 = vcmp.lt.s32.totalorder %v2890, %v1822
        %v2898 = vsel %vm2897, %v2890, %v1822
        %vm2899 = vcmp.lt.s32.totalorder %v2892, %v1823
        %v2900 = vsel %vm2899, %v2892, %v1823
        %vm2901 = vcmp.lt.s32.totalorder %v2894, %v1824
        %v2902 = vsel %vm2901, %v2894, %v1824
        %vm2903 = vcmp.lt.s32.totalorder %v2896, %v1825
        %v2904 = vsel %vm2903, %v2896, %v1825
        %vm2905 = vcmp.lt.s32.totalorder %v2898, %v1826
        %v2906 = vsel %vm2905, %v2898, %v1826
        %vm2907 = vcmp.lt.s32.totalorder %v2900, %v1827
        %v2908 = vsel %vm2907, %v2900, %v1827
        %vm2909 = vcmp.lt.s32.totalorder %v2902, %v1828
        %v2910 = vsel %vm2909, %v2902, %v1828
        %vm2911 = vcmp.lt.s32.totalorder %v2904, %v1829
        %v2912 = vsel %vm2911, %v2904, %v1829
        %vm2913 = vcmp.lt.s32.totalorder %v2906, %v1830
        %v2914 = vsel %vm2913, %v2906, %v1830
        %vm2915 = vcmp.lt.s32.totalorder %v2908, %v1831
        %v2916 = vsel %vm2915, %v2908, %v1831
        %vm2917 = vcmp.lt.s32.totalorder %v2910, %v1832
        %v2918 = vsel %vm2917, %v2910, %v1832
        %vm2919 = vcmp.lt.s32.totalorder %v2912, %v1833
        %v2920 = vsel %vm2919, %v2912, %v1833
        %vm2921 = vcmp.lt.s32.totalorder %v2914, %v1834
        %v2922 = vsel %vm2921, %v2914, %v1834
        %vm2923 = vcmp.lt.s32.totalorder %v2916, %v1835
        %v2924 = vsel %vm2923, %v2916, %v1835
        %vm2925 = vcmp.lt.s32.totalorder %v2918, %v1836
        %v2926 = vsel %vm2925, %v2918, %v1836
        %vm2927 = vcmp.lt.s32.totalorder %v2920, %v1837
        %v2928 = vsel %vm2927, %v2920, %v1837
        %vm2929 = vcmp.lt.s32.totalorder %v2922, %v1838
        %v2930 = vsel %vm2929, %v2922, %v1838
        %vm2931 = vcmp.lt.s32.totalorder %v2924, %v1839
        %v2932 = vsel %vm2931, %v2924, %v1839
        %vm2933 = vcmp.lt.s32.totalorder %v2926, %v1840
        %v2934 = vsel %vm2933, %v2926, %v1840
        %vm2935 = vcmp.lt.s32.totalorder %v2928, %v1841
        %v2936 = vsel %vm2935, %v2928, %v1841
        %vm2937 = vcmp.lt.s32.totalorder %v2930, %v1842
        %v2938 = vsel %vm2937, %v2930, %v1842
        %vm2939 = vcmp.lt.s32.totalorder %v2932, %v1843
        %v2940 = vsel %vm2939, %v2932, %v1843
        %vm2941 = vcmp.lt.s32.totalorder %v2934, %v1844
        %v2942 = vsel %vm2941, %v2934, %v1844
        %vm2943 = vcmp.lt.s32.totalorder %v2936, %v1845
        %v2944 = vsel %vm2943, %v2936, %v1845
        %vm2945 = vcmp.lt.s32.totalorder %v2938, %v1846
        %v2946 = vsel %vm2945, %v2938, %v1846
        %vm2947 = vcmp.lt.s32.totalorder %v2940, %v1847
        %v2948 = vsel %vm2947, %v2940, %v1847
        %vm2949 = vcmp.lt.s32.totalorder %v2942, %v1848
        %v2950 = vsel %vm2949, %v2942, %v1848
        %vm2951 = vcmp.lt.s32.totalorder %v2944, %v1849
        %v2952 = vsel %vm2951, %v2944, %v1849
        %vm2953 = vcmp.lt.s32.totalorder %v2946, %v1850
        %v2954 = vsel %vm2953, %v2946, %v1850
        %vm2955 = vcmp.lt.s32.totalorder %v2948, %v1851
        %v2956 = vsel %vm2955, %v2948, %v1851
        %vm2957 = vcmp.lt.s32.totalorder %v2950, %v1852
        %v2958 = vsel %vm2957, %v2950, %v1852
        %vm2959 = vcmp.lt.s32.totalorder %v2952, %v1853
        %v2960 = vsel %vm2959, %v2952, %v1853
        %vm2961 = vcmp.lt.s32.totalorder %v2954, %v1854
        %v2962 = vsel %vm2961, %v2954, %v1854
        %vm2963 = vcmp.lt.s32.totalorder %v2956, %v1855
        %v2964 = vsel %vm2963, %v2956, %v1855
        %vm2965 = vcmp.lt.s32.totalorder %v2958, %v1856
        %v2966 = vsel %vm2965, %v2958, %v1856
        %vm2967 = vcmp.lt.s32.totalorder %v2960, %v1857
        %v2968 = vsel %vm2967, %v2960, %v1857
        %vm2969 = vcmp.lt.s32.totalorder %v2962, %v1858
        %v2970 = vsel %vm2969, %v2962, %v1858
        %vm2971 = vcmp.lt.s32.totalorder %v2964, %v1859
        %v2972 = vsel %vm2971, %v2964, %v1859
        %vm2973 = vcmp.lt.s32.totalorder %v2966, %v1860
        %v2974 = vsel %vm2973, %v2966, %v1860
        %vm2975 = vcmp.lt.s32.totalorder %v2968, %v1861
        %v2976 = vsel %vm2975, %v2968, %v1861
        %vm2977 = vcmp.lt.s32.totalorder %v2970, %v1862
        %v2978 = vsel %vm2977, %v2970, %v1862
        %vm2979 = vcmp.lt.s32.totalorder %v2972, %v1863
        %v2980 = vsel %vm2979, %v2972, %v1863
        %vm2981 = vcmp.lt.s32.totalorder %v2974, %v1864
        %v2982 = vsel %vm2981, %v2974, %v1864
        %vm2983 = vcmp.lt.s32.totalorder %v2976, %v1865
        %v2984 = vsel %vm2983, %v2976, %v1865
        %vm2985 = vcmp.lt.s32.totalorder %v2978, %v1866
        %v2986 = vsel %vm2985, %v2978, %v1866
        %vm2987 = vcmp.lt.s32.totalorder %v2980, %v1867
        %v2988 = vsel %vm2987, %v2980, %v1867
        %vm2989 = vcmp.lt.s32.totalorder %v2982, %v1868
        %v2990 = vsel %vm2989, %v2982, %v1868
        %vm2991 = vcmp.lt.s32.totalorder %v2984, %v1869
        %v2992 = vsel %vm2991, %v2984, %v1869
        %vm2993 = vcmp.lt.s32.totalorder %v2986, %v1870
        %v2994 = vsel %vm2993, %v2986, %v1870
        %vm2995 = vcmp.lt.s32.totalorder %v2988, %v1871
        %v2996 = vsel %vm2995, %v2988, %v1871
        %vm2997 = vcmp.lt.s32.totalorder %v2990, %v1872
        %v2998 = vsel %vm2997, %v2990, %v1872
        %vm2999 = vcmp.lt.s32.totalorder %v2992, %v1873
        %v3000 = vsel %vm2999, %v2992, %v1873
        %vm3001 = vcmp.lt.s32.totalorder %v2994, %v1874
        %v3002 = vsel %vm3001, %v2994, %v1874
        %vm3003 = vcmp.lt.s32.totalorder %v2996, %v1875
        %v3004 = vsel %vm3003, %v2996, %v1875
        %vm3005 = vcmp.lt.s32.totalorder %v2998, %v1876
        %v3006 = vsel %vm3005, %v2998, %v1876
        %vm3007 = vcmp.lt.s32.totalorder %v3000, %v1877
        %v3008 = vsel %vm3007, %v3000, %v1877
        %vm3009 = vcmp.lt.s32.totalorder %v3002, %v1878
        %v3010 = vsel %vm3009, %v3002, %v1878
        %vm3011 = vcmp.lt.s32.totalorder %v3004, %v1879
        %v3012 = vsel %vm3011, %v3004, %v1879
        %vm3013 = vcmp.lt.s32.totalorder %v3006, %v1880
        %v3014 = vsel %vm3013, %v3006, %v1880
        %vm3015 = vcmp.lt.s32.totalorder %v3008, %v1881
        %v3016 = vsel %vm3015, %v3008, %v1881
        %vm3017 = vcmp.lt.s32.totalorder %v3010, %v1882
        %v3018 = vsel %vm3017, %v3010, %v1882
        %vm3019 = vcmp.lt.s32.totalorder %v3012, %v1883
        %v3020 = vsel %vm3019, %v3012, %v1883
        %vm3021 = vcmp.lt.s32.totalorder %v3014, %v1884
        %v3022 = vsel %vm3021, %v3014, %v1884
        %vm3023 = vcmp.lt.s32.totalorder %v3016, %v1885
        %v3024 = vsel %vm3023, %v3016, %v1885
        %vm3025 = vcmp.lt.s32.totalorder %v3018, %v1886
        %v3026 = vsel %vm3025, %v3018, %v1886
        %vm3027 = vcmp.lt.s32.totalorder %v3020, %v1887
        %v3028 = vsel %vm3027, %v3020, %v1887
        %vm3029 = vcmp.lt.s32.totalorder %v3022, %v1888
        %v3030 = vsel %vm3029, %v3022, %v1888
        %vm3031 = vcmp.lt.s32.totalorder %v3024, %v1889
        %v3032 = vsel %vm3031, %v3024, %v1889
        %vm3033 = vcmp.lt.s32.totalorder %v3026, %v1890
        %v3034 = vsel %vm3033, %v3026, %v1890
        %vm3035 = vcmp.lt.s32.totalorder %v3028, %v1891
        %v3036 = vsel %vm3035, %v3028, %v1891
        %vm3037 = vcmp.lt.s32.totalorder %v3030, %v1892
        %v3038 = vsel %vm3037, %v3030, %v1892
        %vm3039 = vcmp.lt.s32.totalorder %v3032, %v1893
        %v3040 = vsel %vm3039, %v3032, %v1893
        %vm3041 = vcmp.lt.s32.totalorder %v3034, %v1894
        %v3042 = vsel %vm3041, %v3034, %v1894
        %vm3043 = vcmp.lt.s32.totalorder %v3036, %v1895
        %v3044 = vsel %vm3043, %v3036, %v1895
        %vm3045 = vcmp.lt.s32.totalorder %v3038, %v1896
        %v3046 = vsel %vm3045, %v3038, %v1896
        %vm3047 = vcmp.lt.s32.totalorder %v3040, %v1897
        %v3048 = vsel %vm3047, %v3040, %v1897
        %vm3049 = vcmp.lt.s32.totalorder %v3042, %v1898
        %v3050 = vsel %vm3049, %v3042, %v1898
        %vm3051 = vcmp.lt.s32.totalorder %v3044, %v1899
        %v3052 = vsel %vm3051, %v3044, %v1899
        %vm3053 = vcmp.lt.s32.totalorder %v3046, %v1900
        %v3054 = vsel %vm3053, %v3046, %v1900
        %vm3055 = vcmp.lt.s32.totalorder %v3048, %v1901
        %v3056 = vsel %vm3055, %v3048, %v1901
        %vm3057 = vcmp.lt.s32.totalorder %v3050, %v1902
        %v3058 = vsel %vm3057, %v3050, %v1902
        %vm3059 = vcmp.lt.s32.totalorder %v3052, %v1903
        %v3060 = vsel %vm3059, %v3052, %v1903
        %vm3061 = vcmp.lt.s32.totalorder %v3054, %v1904
        %v3062 = vsel %vm3061, %v3054, %v1904
        %vm3063 = vcmp.lt.s32.totalorder %v3056, %v1905
        %v3064 = vsel %vm3063, %v3056, %v1905
        %vm3065 = vcmp.lt.s32.totalorder %v3058, %v1906
        %v3066 = vsel %vm3065, %v3058, %v1906
        %vm3067 = vcmp.lt.s32.totalorder %v3060, %v1907
        %v3068 = vsel %vm3067, %v3060, %v1907
        %vm3069 = vcmp.lt.s32.totalorder %v3062, %v1908
        %v3070 = vsel %vm3069, %v3062, %v1908
        %vm3071 = vcmp.lt.s32.totalorder %v3064, %v1909
        %v3072 = vsel %vm3071, %v3064, %v1909
        %vm3073 = vcmp.lt.s32.totalorder %v3066, %v1910
        %v3074 = vsel %vm3073, %v3066, %v1910
        %vm3075 = vcmp.lt.s32.totalorder %v3068, %v1911
        %v3076 = vsel %vm3075, %v3068, %v1911
        %vm3077 = vcmp.lt.s32.totalorder %v3070, %v1912
        %v3078 = vsel %vm3077, %v3070, %v1912
        %vm3079 = vcmp.lt.s32.totalorder %v3072, %v1913
        %v3080 = vsel %vm3079, %v3072, %v1913
        %vm3081 = vcmp.lt.s32.totalorder %v3074, %v1914
        %v3082 = vsel %vm3081, %v3074, %v1914
        %vm3083 = vcmp.lt.s32.totalorder %v3076, %v1915
        %v3084 = vsel %vm3083, %v3076, %v1915
        %vm3085 = vcmp.lt.s32.totalorder %v3078, %v1916
        %v3086 = vsel %vm3085, %v3078, %v1916
        %vm3087 = vcmp.lt.s32.totalorder %v3080, %v1917
        %v3088 = vsel %vm3087, %v3080, %v1917
        %vm3089 = vcmp.lt.s32.totalorder %v3082, %v1918
        %v3090 = vsel %vm3089, %v3082, %v1918
        %vm3091 = vcmp.lt.s32.totalorder %v3084, %v1919
        %v3092 = vsel %vm3091, %v3084, %v1919
        %vm3093 = vcmp.lt.s32.totalorder %v3086, %v1920
        %v3094 = vsel %vm3093, %v3086, %v1920
        %vm3095 = vcmp.lt.s32.totalorder %v3088, %v1921
        %v3096 = vsel %vm3095, %v3088, %v1921
        %vm3097 = vcmp.lt.s32.totalorder %v3090, %v1922
        %v3098 = vsel %vm3097, %v3090, %v1922
        %vm3099 = vcmp.lt.s32.totalorder %v3092, %v1923
        %v3100 = vsel %vm3099, %v3092, %v1923
        %vm3101 = vcmp.lt.s32.totalorder %v3094, %v1924
        %v3102 = vsel %vm3101, %v3094, %v1924
        %vm3103 = vcmp.lt.s32.totalorder %v3096, %v1925
        %v3104 = vsel %vm3103, %v3096, %v1925
        %vm3105 = vcmp.lt.s32.totalorder %v3098, %v1926
        %v3106 = vsel %vm3105, %v3098, %v1926
        %vm3107 = vcmp.lt.s32.totalorder %v3100, %v1927
        %v3108 = vsel %vm3107, %v3100, %v1927
        %vm3109 = vcmp.lt.s32.totalorder %v3102, %v1928
        %v3110 = vsel %vm3109, %v3102, %v1928
        %vm3111 = vcmp.lt.s32.totalorder %v3104, %v1929
        %v3112 = vsel %vm3111, %v3104, %v1929
        %vm3113 = vcmp.lt.s32.totalorder %v3106, %v1930
        %v3114 = vsel %vm3113, %v3106, %v1930
        %vm3115 = vcmp.lt.s32.totalorder %v3108, %v1931
        %v3116 = vsel %vm3115, %v3108, %v1931
        %vm3117 = vcmp.lt.s32.totalorder %v3110, %v1932
        %v3118 = vsel %vm3117, %v3110, %v1932
        %vm3119 = vcmp.lt.s32.totalorder %v3112, %v1933
        %v3120 = vsel %vm3119, %v3112, %v1933
        %vm3121 = vcmp.lt.s32.totalorder %v3114, %v1934
        %v3122 = vsel %vm3121, %v3114, %v1934
        %vm3123 = vcmp.lt.s32.totalorder %v3116, %v1935
        %v3124 = vsel %vm3123, %v3116, %v1935
        %vm3125 = vcmp.lt.s32.totalorder %v3118, %v1936
        %v3126 = vsel %vm3125, %v3118, %v1936
        %vm3127 = vcmp.lt.s32.totalorder %v3120, %v1937
        %v3128 = vsel %vm3127, %v3120, %v1937
        %vm3129 = vcmp.lt.s32.totalorder %v3122, %v1938
        %v3130 = vsel %vm3129, %v3122, %v1938
        %vm3131 = vcmp.lt.s32.totalorder %v3124, %v3126
        %v3132 = vsel %vm3131, %v3124, %v3126
        %vm3133 = vcmp.lt.s32.totalorder %v3128, %v3130
        %v3134 = vsel %vm3133, %v3128, %v3130
        %vm3135 = vcmp.lt.s32.totalorder %v3132, %v3134
        %v3136 = vsel %vm3135, %v3132, %v3134
        %v3137 = vand.u32 %v3136, 65535
        %v3138 = vshra.s32 %v3136, 16
        %v3139 = vcvt.s32.f32 %v3137
        %v3140 = vcvt.s32.f32 %v3138
        %3141 = vmin.xlane.f32.xlu0 %v3140
        %v3142 = vpop.xlane.xlu0 %3141
        %vm3143 = vcmp.eq.f32.partialorder %v3140, %v3142
        %v3144 = vsel %vm3143, %v3139, inf
        %3145 = vmin.xlane.f32.xlu0 %v3144
        %v3146 = vpop.xlane.xlu0 %3145
        %v3147 = vcvt.f32.s32 %v3146
        %v3148 = vcvt.f32.s32 %v3142
        %v3149 = vshll.u32 %v3148, 16
        %v3150 = vadd.s32 %v3149, %v3147
        %v3151 = vrot.slane %v3150, 4
        %vm3152 = vcmp.lt.s32.totalorder %v3150, %v3151
        %v3153 = vsel %vm3152, %v3150, %v3151
        %v3154 = vrot.slane %v3153, 2
        %vm3155 = vcmp.lt.s32.totalorder %v3153, %v3154
        %v3156 = vsel %vm3155, %v3153, %v3154
        %v3157 = vrot.slane %v3156, 1
        %vm3158 = vcmp.lt.s32.totalorder %v3156, %v3157
        %v3159 = vsel %vm3158, %v3156, %v3157
        %s3160 = vtos %v3159
        %v3161 = vstv %s3160
        %3162 = vst [vmem:[%s137] sm:$0xff] %v3161
        %s3163 = sand.u32 %s52, 1
        %s3164 = scalar_lea.sflag [#allocation4], %s3163
        %s3165 = sand.u32 %s52, 1
        %s3166 = smul.addr %s3165, 8
        %s3167 = scalar_lea.vmem [#allocation5], %s3166
        // Predicated region
        $region29: #{tpu_custom_call.1} parent=23 // pred_check
          %p3168 = pneg %p62
        $region30: #{tpu_custom_call.1} parent=23 // pred_check_branch
          %3170 = sbr.rel (%p3168) target = $region32
        $region31: #{tpu_custom_call.1} parent=23 // pred_region
          %3172 = vsyncadd %s3164, 0
          %s3173 = smul.addr %s18, 8
          %s3174 = scalar_lea.hbm %s1, %s3173
          %s3176 = sshll.u32 %s3167, 4
          %s3177 = int_to_ptr.vmem [resolvable:$true] %s3176
          %s3178 = sshll.u32 %s3174, 4
          %s3179 = int_to_ptr.hbm [resolvable:$true] %s3178
          %3181 = dma.vmem_to_hbm [thread:$0]  %s3177, 128, %s3179, %s3164
        $region32: #{tpu_custom_call.1} parent=23 // pred_fallthru
          _
      $region24: #{tpu_custom_call.1} parent=5 // pred_fallthru
        _
      %p3182 = scmp.le.s32.totalorder 2, %s13
      // Predicated region
      $region33: #{tpu_custom_call.1} parent=5 // pred_check
        %p3183 = pneg %p3182
      $region34: #{tpu_custom_call.1} parent=5 // pred_check_branch
        %3185 = sbr.rel (%p3183) target = $region36
      $region35: #{tpu_custom_call.1} parent=5 // pred_region
        %s3186 = ssub.s32 %s13, 2
        // Predicated region
        $region37: #{tpu_custom_call.1} parent=35 // pred_check
          %p3187 = pneg %p68
        $region38: #{tpu_custom_call.1} parent=35 // pred_check_branch
          %3189 = sbr.rel (%p3187) target = $region40
        $region39: #{tpu_custom_call.1} parent=35 // pred_region
          %s3190 = sand.u32 %s53, 1
          %s3191 = scalar_lea.sflag [#allocation4], %s3190
          %s3192 = sand.u32 %s53, 1
          %s3193 = smul.addr %s3192, 8
          %s3194 = scalar_lea.vmem [#allocation5], %s3193
          %3196 = dma.done %s3191, 128
        $region40: #{tpu_custom_call.1} parent=35 // pred_fallthru
          _
      $region36: #{tpu_custom_call.1} parent=5 // pred_fallthru
        _
    $region6: #{tpu_custom_call.1} parent=1 // loop_footer
      %s17 = sadd.s32 1, %s13
    $region7: #{tpu_custom_call.1} parent=1 // loop_footer_branch
      %12 = sbr.rel target = $region3
    $region8: #{tpu_custom_call.1} parent=1 // loop_exit
      _
    %3197 = vsyncpa [#allocation3], 1
    %s3198 = scalar_lea.sflag [#allocation3], 1
    %3199 = vsyncpa %s3198, 1
    %3200 = vsyncpa [#allocation4], 1
    %s3201 = scalar_lea.sflag [#allocation4], 1
    %3202 = vsyncpa %s3201, 1

</llo_original>
